<compile_context>
chip_gen: v6e
topology: v6e:2x2x1
jax: 0.10.0
libtpu: 0.0.40
codegen_flags: <defaults>
</compile_context>

<pallas_src>
import numpy as np
import jax
import jax.numpy as jnp
from jax import lax
from jax.experimental import pallas as pl
from jax.experimental.pallas import tpu as pltpu

# ---- static problem sizes (small demo shapes) ----
B = 2                        # batch
L = 16                       # sequence length == adjacency side
D = 32                       # mlp_size
C = 4                        # adj_conv_channels
KS1, KS2 = 7, 17             # conv kernel sizes
P1, P2 = 3, 8                # conv paddings
A1C = 32                     # lane-padded conv1 column width (>= L + 2*P1)
NBLK = 4                     # bp1, seq1, bp2, seq2
T2_PAIRS = (KS2 + 1) // 2    # conv2 dy values processed two at a time -> 9
LN_EPS = 1e-5

ORDER = ("bp1", "seq1", "bp2", "seq2")   # round r uses blocks (2r, 2r+1)


# ----------------------------------------------------------------------------
# Fused Pallas kernel: entire NeighborAttnStage forward
# ----------------------------------------------------------------------------
def stage_kernel(x_ref, lhs1_ref, t1_ref, t2_ref, wn_ref, wr_ref, wg_ref,
                 pe_ref, small_ref, out_ref):
    f32 = jnp.float32
    x_in = x_ref[...]                        # (B*L, D) = (32, 32)
    small = small_ref[...]                   # (8, 128) packed small params

    def layer_norm(h, g, b):
        mu = jnp.mean(h, axis=-1, keepdims=True)
        var = jnp.mean((h - mu) ** 2, axis=-1, keepdims=True)
        return (h - mu) * lax.rsqrt(var + LN_EPS) * g + b

    # ---------- adjacency smoothing: conv1 -> conv2 -> channel mean ----------
    # conv1 for all 4 blocks / both adjacencies / both batches: one 256-lane matmul.
    # y1[b*L+i, blk*64 + c*16 + j] = conv1_blk(adj)[b, c, i, j]   (bias folded in)
    y1 = jnp.dot(lhs1_ref[...], t1_ref[...], preferred_element_type=f32)    # (32, 256)

    # zero row-padding (pad = 8) per batch for conv2's row window -> (64, 256)
    zpad8 = jnp.zeros((P2, NBLK * C * L), f32)
    zpad16 = jnp.zeros((2 * P2, NBLK * C * L), f32)
    ypad = jnp.concatenate([zpad8, y1[0:L], zpad16, y1[L:2 * L], zpad8], axis=0)

    # conv2: column Toeplitz handled by the matmul, row shifts by static
    # diagonal slice-adds; output channels are pre-averaged in the table.
    b2row = small[4:5, 0:NBLK * L]                           # (1, 64) conv2 mean-bias
    zb0 = jnp.broadcast_to(b2row, (L, NBLK * L))             # batch-0 accumulator
    zb1 = jnp.broadcast_to(b2row, (L, NBLK * L))             # batch-1 accumulator
    for ph in range(T2_PAIRS):
        wp = jnp.dot(ypad, t2_ref[ph], preferred_element_type=f32)          # (64, 128)
        for h in range(2):
            dy = 2 * ph + h
            if dy < KS2:
                blkcols = wp[:, h * NBLK * L:(h + 1) * NBLK * L]            # (64, 64)
                zb0 = zb0 + blkcols[dy:dy + L, :]
                zb1 = zb1 + blkcols[2 * L + dy:3 * L + dy, :]
    # adjf[b*L + i, blk*L + j] = smoothed adjacency of block `blk`, batch b
    adjf = jnp.concatenate([zb0, zb1], axis=0)               # (32, 64)

    zero_ll = jnp.zeros((L, L), f32)

    def block_diag_adj(blk):
        a0 = adjf[0:L, blk * L:(blk + 1) * L]
        a1 = adjf[L:2 * L, blk * L:(blk + 1) * L]
        top = jnp.concatenate([a0, zero_ll], axis=1)
        bot = jnp.concatenate([zero_ll, a1], axis=1)
        return jnp.concatenate([top, bot], axis=0)           # (32, 32) block-diag

    # ---------- ConvAttnBlock pair (post-conv): blocks (2r, 2r+1) share x ----------
    def conv_attn_round(x, r):
        wn = wn_ref[:, r * 2 * D:(r + 1) * 2 * D]            # (32, 64)  [W_bp | W_seq]
        bn = small[0:1, r * 2 * D:(r + 1) * 2 * D]           # (1, 64)
        nemb = jnp.tanh(jnp.dot(x, wn, preferred_element_type=f32) + bn)    # (32, 64)
        acc = None
        for p in range(2):
            blk = 2 * r + p
            nsum = jnp.dot(block_diag_adj(blk), nemb[:, p * D:(p + 1) * D],
                           preferred_element_type=f32)                      # (32, 32)
            h = jnp.tanh(jnp.dot(x + nsum, wr_ref[:, blk * D:(blk + 1) * D],
                                 preferred_element_type=f32)
                         + small[1:2, blk * D:(blk + 1) * D])
            o = layer_norm(h, small[2:3, blk * D:(blk + 1) * D],
                           small[3:4, blk * D:(blk + 1) * D])
            acc = o if acc is None else acc + o
        return acc

    # ---------- GraphBlock ----------
    def graph_block(x):
        node = jnp.tanh(jnp.dot(x, wg_ref[...], preferred_element_type=f32)
                        + small[5:6, 0:D])                                   # (32, 32)
        # per-batch mean over the sequence, expressed as a block-averaging matmul
        one_blk = jnp.full((L, L), 1.0 / L, f32)
        mean_mat = jnp.concatenate(
            [jnp.concatenate([one_blk, zero_ll], axis=1),
             jnp.concatenate([zero_ll, one_blk], axis=1)], axis=0)           # (32, 32)
        graph_emb = jnp.dot(mean_mat, node, preferred_element_type=f32)
        h = x + pe_ref[...] + graph_emb
        return layer_norm(h, small[5:6, D:2 * D], small[5:6, 2 * D:3 * D])

    # TODO(synk): nn.Dropout layers are identity (inference mode).
    x1 = graph_block(x_in) + conv_attn_round(x_in, 0)
    out_ref[...] = conv_attn_round(x1, 1) + x_in


# ----------------------------------------------------------------------------
# Wrapper (layout plumbing + pallas_call)
# ----------------------------------------------------------------------------
def _conv1_im2col(adj):
    """(B, L, L) adjacency -> (B*L, KS1*A1C) im2col rows + bias ones-column."""
    ap = jnp.pad(adj, ((0, 0), (P1, P1), (P1, A1C - L - P1)))        # (B, 22, 32)
    lhs = jnp.concatenate([ap[:, dy:dy + L, :] for dy in range(KS1)], axis=2)
    lhs = lhs.reshape(B * L, KS1 * A1C)
    # column 31 of the dy=0 block is always-zero padding -> carries the conv1 bias
    return lhs.at[:, A1C - 1].set(1.0)


def neighbor_attn_stage(x_in, seq_adj, bp_adj, packed):
    lhs1 = jnp.concatenate([_conv1_im2col(bp_adj), _conv1_im2col(seq_adj)], axis=1)
    out = pl.pallas_call(
        stage_kernel,
        out_shape=jax.ShapeDtypeStruct((B * L, D), jnp.float32),
        compiler_params=pltpu.CompilerParams(vmem_limit_bytes=16 * 1024 * 1024),
    )(x_in.reshape(B * L, D), lhs1, packed["T1"], packed["T2"], packed["WN"],
      packed["WR"], packed["WG"], packed["PE2"], packed["SMALL"])
    return out.reshape(B, L, D)


# ----------------------------------------------------------------------------
# Parameter packing: merged Toeplitz tables + packed small params
# ----------------------------------------------------------------------------
def pack_params(params):
    T1 = np.zeros((2 * KS1 * A1C, NBLK * C * L), np.float32)         # (448, 256)
    T2 = np.zeros((T2_PAIRS, NBLK * C * L, 128), np.float32)         # (9, 256, 128)
    WN = np.zeros((D, NBLK * D), np.float32)
    WR = np.zeros((D, NBLK * D), np.float32)
    SMALL = np.zeros((8, 128), np.float32)
    for blk, name in enumerate(ORDER):
        p = params[name]
        atype = blk % 2                       # 0: uses bp_adj rows, 1: uses seq_adj rows
        rb = atype * KS1 * A1C
        cb = blk * C * L
        w1 = np.asarray(p["c1w"]); b1 = np.asarray(p["c1b"])
        for dy in range(KS1):
            for c in range(C):
                for dx in range(KS1):
                    for j in range(L):
                        T1[rb + dy * A1C + j + dx, cb + c * L + j] = w1[c, 0, dy, dx]
        for c in range(C):
            T1[rb + A1C - 1, cb + c * L:cb + (c + 1) * L] = b1[c]     # bias row
        w2m = np.asarray(p["c2w"]).mean(axis=0)                       # mean over out-ch
        for dy in range(KS2):
            ph, half = divmod(dy, 2)
            for c in range(C):
                for s in range(L):
                    for j in range(L):
                        dx = s - j + P2
                        if 0 <= dx < KS2:
                            T2[ph, cb + c * L + s,
                               half * NBLK * L + blk * L + j] = w2m[c, dy, dx]
        SMALL[4, blk * L:(blk + 1) * L] = float(np.asarray(p["c2b"]).mean())
        WN[:, blk * D:(blk + 1) * D] = np.asarray(p["wn"])
        WR[:, blk * D:(blk + 1) * D] = np.asarray(p["wr"])
        SMALL[0, blk * D:(blk + 1) * D] = np.asarray(p["bn"])
        SMALL[1, blk * D:(blk + 1) * D] = np.asarray(p["br"])
        SMALL[2, blk * D:(blk + 1) * D] = np.asarray(p["g"])
        SMALL[3, blk * D:(blk + 1) * D] = np.asarray(p["be"])
    gb = params["gb"]
    SMALL[5, 0:D] = np.asarray(gb["bg"])
    SMALL[5, D:2 * D] = np.asarray(gb["g"])
    SMALL[5, 2 * D:3 * D] = np.asarray(gb["be"])
    return dict(
        T1=jnp.asarray(T1), T2=jnp.asarray(T2), WN=jnp.asarray(WN), WR=jnp.asarray(WR),
        WG=jnp.asarray(gb["wg"]),
        PE2=jnp.asarray(np.tile(np.asarray(gb["pe"]), (B, 1))),
        SMALL=jnp.asarray(SMALL),
    )


# ----------------------------------------------------------------------------
# Deterministic synthetic parameters
# ----------------------------------------------------------------------------
def init_linear(key, fan_in, fan_out):
    k1, k2 = jax.random.split(key)
    bound = 1.0 / np.sqrt(fan_in)
    # stored as (in, out) = torch W.T so the kernel computes x @ W.T + b
    w = jax.random.uniform(k1, (fan_in, fan_out), jnp.float32, -bound, bound)
    b = jax.random.uniform(k2, (fan_out,), jnp.float32, -bound, bound)
    return w, b


def init_conv(key, cin, cout, ksz):
    k1, k2 = jax.random.split(key)
    bound = 1.0 / np.sqrt(cin * ksz * ksz)
    w = jax.random.uniform(k1, (cout, cin, ksz, ksz), jnp.float32, -bound, bound)
    b = jax.random.uniform(k2, (cout,), jnp.float32, -bound, bound)
    return w, b


def init_conv_attn_block(key):
    ks = jax.random.split(key, 4)
    wn, bn = init_linear(ks[0], D, D)
    wr, br = init_linear(ks[1], D, D)
    c1w, c1b = init_conv(ks[2], 1, C, KS1)
    c2w, c2b = init_conv(ks[3], C, C, KS2)
    return dict(wn=wn, bn=bn, wr=wr, br=br, c1w=c1w, c1b=c1b, c2w=c2w, c2b=c2b,
                g=jnp.ones((D,), jnp.float32), be=jnp.zeros((D,), jnp.float32))


def make_pe(max_len, d):
    pe = np.zeros((max_len, d), np.float32)
    position = np.arange(max_len, dtype=np.float32)[:, None]
    div_term = np.exp(np.arange(0, d, 2, dtype=np.float32) * (-np.log(10000.0) / d))
    pe[:, 0::2] = np.sin(position * div_term)
    pe[:, 1::2] = np.cos(position * div_term)
    return jnp.asarray(pe)


def init_graph_block(key):
    wg, bg = init_linear(key, D, D)
    return dict(wg=wg, bg=bg, g=jnp.ones((D,), jnp.float32),
                be=jnp.zeros((D,), jnp.float32), pe=make_pe(300, D)[:L])


# ----------------------------------------------------------------------------
# Pure-JAX reference (mirrors the PyTorch module, inference mode)
# ----------------------------------------------------------------------------
def _layer_norm_ref(h, g, b):
    mu = jnp.mean(h, -1, keepdims=True)
    var = jnp.mean((h - mu) ** 2, -1, keepdims=True)
    return (h - mu) * lax.rsqrt(var + LN_EPS) * g + b


def _conv2d_ref(x, w, b, pad):
    out = lax.conv_general_dilated(x, w, (1, 1), [(pad, pad), (pad, pad)],
                                   dimension_numbers=("NCHW", "OIHW", "NCHW"))
    return out + b[None, :, None, None]


def _conv_attn_block_ref(x, adj, p):
    nb, d1, d2 = adj.shape
    a = _conv2d_ref(adj.reshape(nb, 1, d1, d2), p["c1w"], p["c1b"], P1)
    a = _conv2d_ref(a, p["c2w"], p["c2b"], P2)
    a = jnp.mean(a, axis=1)[:, :d1, :d2]
    nemb = jnp.tanh(x @ p["wn"] + p["bn"])
    nsum = jnp.einsum("bij,bjd->bid", a, nemb)
    h = jnp.tanh((x + nsum) @ p["wr"] + p["br"])
    return _layer_norm_ref(h, p["g"], p["be"])


def _graph_block_ref(x, p):
    node_emb = jnp.tanh(x @ p["wg"] + p["bg"])
    graph_emb = jnp.mean(node_emb, axis=1, keepdims=True)
    pos = x + p["pe"][None]
    return _layer_norm_ref(pos + graph_emb, p["g"], p["be"])


def neighbor_attn_stage_ref(x_in, seq_adj, bp_adj, params):
    x_bp1 = _conv_attn_block_ref(x_in, bp_adj, params["bp1"])
    x_seq1 = _conv_attn_block_ref(x_in, seq_adj, params["seq1"])
    x = _graph_block_ref(x_in, params["gb"]) + x_bp1 + x_seq1
    x_bp2 = _conv_attn_block_ref(x, bp_adj, params["bp2"])
    x_seq2 = _conv_attn_block_ref(x, seq_adj, params["seq2"])
    return x_bp2 + x_seq2 + x_in


# ----------------------------------------------------------------------------
if __name__ == "__main__":
    key = jax.random.PRNGKey(0)
    kx, ks, kb, kp = jax.random.split(key, 4)
    x_in = jax.random.normal(kx, (B, L, D), jnp.float32)
    seq_adj = jax.random.normal(ks, (B, L, L), jnp.float32)
    bp_adj = jax.random.normal(kb, (B, L, L), jnp.float32)

    pks = jax.random.split(kp, 5)
    params = dict(
        bp1=init_conv_attn_block(pks[0]),
        seq1=init_conv_attn_block(pks[1]),
        bp2=init_conv_attn_block(pks[2]),
        seq2=init_conv_attn_block(pks[3]),
        gb=init_graph_block(pks[4]),
    )
    packed = pack_params(params)

    fwd = jax.jit(neighbor_attn_stage)
    out = jax.block_until_ready(fwd(x_in, seq_adj, bp_adj, packed))
    assert out.shape == (B, L, D) and out.dtype == jnp.float32

    ref = jax.block_until_ready(neighbor_attn_stage_ref(x_in, seq_adj, bp_adj, params))
    err = float(jnp.max(jnp.abs(out - ref)))
    if err > 5e-3:
        raise AssertionError(f"Pallas output mismatch vs reference: max abs err {err}")
    print("KERNEL_OK")
</pallas_src>

<mosaic_0001>
module attributes {stable_mosaic.version = 11 : i64} {
  func.func @stage_kernel(%arg0: memref<32x32xf32, #tpu.memory_space<vmem>>, %arg1: memref<32x448xf32, #tpu.memory_space<vmem>>, %arg2: memref<448x256xf32, #tpu.memory_space<vmem>>, %arg3: memref<9x256x128xf32, #tpu.memory_space<vmem>>, %arg4: memref<32x128xf32, #tpu.memory_space<vmem>>, %arg5: memref<32x128xf32, #tpu.memory_space<vmem>>, %arg6: memref<32x32xf32, #tpu.memory_space<vmem>>, %arg7: memref<32x32xf32, #tpu.memory_space<vmem>>, %arg8: memref<8x128xf32, #tpu.memory_space<vmem>>, %arg9: memref<32x32xf32, #tpu.memory_space<vmem>>) attributes {dimension_semantics = [], scalar_prefetch = 0 : i64, scratch_operands = 0 : i64, tpu.core_type = #tpu.core_type<tc>} {
    %c0 = arith.constant 0 : index
    %c0_0 = arith.constant 0 : index
    %0 = vector.load %arg0[%c0, %c0_0] : memref<32x32xf32, #tpu.memory_space<vmem>>, vector<32x32xf32>
    %c0_1 = arith.constant 0 : index
    %c0_2 = arith.constant 0 : index
    %1 = vector.load %arg8[%c0_1, %c0_2] : memref<8x128xf32, #tpu.memory_space<vmem>>, vector<8x128xf32>
    %c0_3 = arith.constant 0 : index
    %c0_4 = arith.constant 0 : index
    %2 = vector.load %arg1[%c0_3, %c0_4] : memref<32x448xf32, #tpu.memory_space<vmem>>, vector<32x448xf32>
    %c0_5 = arith.constant 0 : index
    %c0_6 = arith.constant 0 : index
    %3 = vector.load %arg2[%c0_5, %c0_6] : memref<448x256xf32, #tpu.memory_space<vmem>>, vector<448x256xf32>
    %cst = arith.constant dense<0.000000e+00> : vector<32x256xf32>
    %4 = tpu.matmul %2, %3, %cst {dimension_numbers = #tpu.dot_dimension_numbers<[1], [0], [0], [1], [0, 0, 1, 1], [], []>} : vector<32x448xf32>, vector<448x256xf32>, vector<32x256xf32> -> vector<32x256xf32>
    %cst_7 = arith.constant 0.000000e+00 : f32
    %5 = vector.broadcast %cst_7 : f32 to vector<8x256xf32>
    %cst_8 = arith.constant 0.000000e+00 : f32
    %6 = vector.broadcast %cst_8 : f32 to vector<16x256xf32>
    %7 = vector.extract_strided_slice %4 {offsets = [0, 0], sizes = [16, 256], strides = [1, 1]} : vector<32x256xf32> to vector<16x256xf32>
    %8 = vector.extract_strided_slice %4 {offsets = [16, 0], sizes = [16, 256], strides = [1, 1]} : vector<32x256xf32> to vector<16x256xf32>
    %9 = tpu.concatenate %5, %7, %6, %8, %5 in 0 : vector<8x256xf32>, vector<16x256xf32>, vector<16x256xf32>, vector<16x256xf32>, vector<8x256xf32> -> vector<64x256xf32>
    %10 = vector.extract_strided_slice %1 {offsets = [4, 0], sizes = [1, 64], strides = [1, 1]} : vector<8x128xf32> to vector<1x64xf32>
    %11 = vector.shape_cast %10 : vector<1x64xf32> to vector<1x64xf32>
    %12 = vector.broadcast %11 : vector<1x64xf32> to vector<16x64xf32>
    %13 = vector.shape_cast %10 : vector<1x64xf32> to vector<1x64xf32>
    %14 = vector.broadcast %13 : vector<1x64xf32> to vector<16x64xf32>
    %c0_9 = arith.constant 0 : index
    %c0_10 = arith.constant 0 : index
    %c0_11 = arith.constant 0 : index
    %15 = vector.load %arg3[%c0_9, %c0_10, %c0_11] : memref<9x256x128xf32, #tpu.memory_space<vmem>>, vector<1x256x128xf32>
    %16 = vector.shape_cast %15 : vector<1x256x128xf32> to vector<256x128xf32>
    %cst_12 = arith.constant dense<0.000000e+00> : vector<64x128xf32>
    %17 = tpu.matmul %9, %16, %cst_12 {dimension_numbers = #tpu.dot_dimension_numbers<[1], [0], [0], [1], [0, 0, 1, 1], [], []>} : vector<64x256xf32>, vector<256x128xf32>, vector<64x128xf32> -> vector<64x128xf32>
    %18 = vector.extract_strided_slice %17 {offsets = [0, 0], sizes = [64, 64], strides = [1, 1]} : vector<64x128xf32> to vector<64x64xf32>
    %19 = vector.extract_strided_slice %18 {offsets = [0, 0], sizes = [16, 64], strides = [1, 1]} : vector<64x64xf32> to vector<16x64xf32>
    %20 = arith.addf %12, %19 : vector<16x64xf32>
    %21 = vector.extract_strided_slice %18 {offsets = [32, 0], sizes = [16, 64], strides = [1, 1]} : vector<64x64xf32> to vector<16x64xf32>
    %22 = arith.addf %14, %21 : vector<16x64xf32>
    %23 = vector.extract_strided_slice %17 {offsets = [0, 64], sizes = [64, 64], strides = [1, 1]} : vector<64x128xf32> to vector<64x64xf32>
    %24 = vector.extract_strided_slice %23 {offsets = [1, 0], sizes = [16, 64], strides = [1, 1]} : vector<64x64xf32> to vector<16x64xf32>
    %25 = arith.addf %20, %24 : vector<16x64xf32>
    %26 = vector.extract_strided_slice %23 {offsets = [33, 0], sizes = [16, 64], strides = [1, 1]} : vector<64x64xf32> to vector<16x64xf32>
    %27 = arith.addf %22, %26 : vector<16x64xf32>
    %c1 = arith.constant 1 : index
    %c0_13 = arith.constant 0 : index
    %c0_14 = arith.constant 0 : index
    %28 = vector.load %arg3[%c1, %c0_13, %c0_14] : memref<9x256x128xf32, #tpu.memory_space<vmem>>, vector<1x256x128xf32>
    %29 = vector.shape_cast %28 : vector<1x256x128xf32> to vector<256x128xf32>
    %cst_15 = arith.constant dense<0.000000e+00> : vector<64x128xf32>
    %30 = tpu.matmul %9, %29, %cst_15 {dimension_numbers = #tpu.dot_dimension_numbers<[1], [0], [0], [1], [0, 0, 1, 1], [], []>} : vector<64x256xf32>, vector<256x128xf32>, vector<64x128xf32> -> vector<64x128xf32>
    %31 = vector.extract_strided_slice %30 {offsets = [0, 0], sizes = [64, 64], strides = [1, 1]} : vector<64x128xf32> to vector<64x64xf32>
    %32 = vector.extract_strided_slice %31 {offsets = [2, 0], sizes = [16, 64], strides = [1, 1]} : vector<64x64xf32> to vector<16x64xf32>
    %33 = arith.addf %25, %32 : vector<16x64xf32>
    %34 = vector.extract_strided_slice %31 {offsets = [34, 0], sizes = [16, 64], strides = [1, 1]} : vector<64x64xf32> to vector<16x64xf32>
    %35 = arith.addf %27, %34 : vector<16x64xf32>
    %36 = vector.extract_strided_slice %30 {offsets = [0, 64], sizes = [64, 64], strides = [1, 1]} : vector<64x128xf32> to vector<64x64xf32>
    %37 = vector.extract_strided_slice %36 {offsets = [3, 0], sizes = [16, 64], strides = [1, 1]} : vector<64x64xf32> to vector<16x64xf32>
    %38 = arith.addf %33, %37 : vector<16x64xf32>
    %39 = vector.extract_strided_slice %36 {offsets = [35, 0], sizes = [16, 64], strides = [1, 1]} : vector<64x64xf32> to vector<16x64xf32>
    %40 = arith.addf %35, %39 : vector<16x64xf32>
    %c2 = arith.constant 2 : index
    %c0_16 = arith.constant 0 : index
    %c0_17 = arith.constant 0 : index
    %41 = vector.load %arg3[%c2, %c0_16, %c0_17] : memref<9x256x128xf32, #tpu.memory_space<vmem>>, vector<1x256x128xf32>
    %42 = vector.shape_cast %41 : vector<1x256x128xf32> to vector<256x128xf32>
    %cst_18 = arith.constant dense<0.000000e+00> : vector<64x128xf32>
    %43 = tpu.matmul %9, %42, %cst_18 {dimension_numbers = #tpu.dot_dimension_numbers<[1], [0], [0], [1], [0, 0, 1, 1], [], []>} : vector<64x256xf32>, vector<256x128xf32>, vector<64x128xf32> -> vector<64x128xf32>
    %44 = vector.extract_strided_slice %43 {offsets = [0, 0], sizes = [64, 64], strides = [1, 1]} : vector<64x128xf32> to vector<64x64xf32>
    %45 = vector.extract_strided_slice %44 {offsets = [4, 0], sizes = [16, 64], strides = [1, 1]} : vector<64x64xf32> to vector<16x64xf32>
    %46 = arith.addf %38, %45 : vector<16x64xf32>
    %47 = vector.extract_strided_slice %44 {offsets = [36, 0], sizes = [16, 64], strides = [1, 1]} : vector<64x64xf32> to vector<16x64xf32>
    %48 = arith.addf %40, %47 : vector<16x64xf32>
    %49 = vector.extract_strided_slice %43 {offsets = [0, 64], sizes = [64, 64], strides = [1, 1]} : vector<64x128xf32> to vector<64x64xf32>
    %50 = vector.extract_strided_slice %49 {offsets = [5, 0], sizes = [16, 64], strides = [1, 1]} : vector<64x64xf32> to vector<16x64xf32>
    %51 = arith.addf %46, %50 : vector<16x64xf32>
    %52 = vector.extract_strided_slice %49 {offsets = [37, 0], sizes = [16, 64], strides = [1, 1]} : vector<64x64xf32> to vector<16x64xf32>
    %53 = arith.addf %48, %52 : vector<16x64xf32>
    %c3 = arith.constant 3 : index
    %c0_19 = arith.constant 0 : index
    %c0_20 = arith.constant 0 : index
    %54 = vector.load %arg3[%c3, %c0_19, %c0_20] : memref<9x256x128xf32, #tpu.memory_space<vmem>>, vector<1x256x128xf32>
    %55 = vector.shape_cast %54 : vector<1x256x128xf32> to vector<256x128xf32>
    %cst_21 = arith.constant dense<0.000000e+00> : vector<64x128xf32>
    %56 = tpu.matmul %9, %55, %cst_21 {dimension_numbers = #tpu.dot_dimension_numbers<[1], [0], [0], [1], [0, 0, 1, 1], [], []>} : vector<64x256xf32>, vector<256x128xf32>, vector<64x128xf32> -> vector<64x128xf32>
    %57 = vector.extract_strided_slice %56 {offsets = [0, 0], sizes = [64, 64], strides = [1, 1]} : vector<64x128xf32> to vector<64x64xf32>
    %58 = vector.extract_strided_slice %57 {offsets = [6, 0], sizes = [16, 64], strides = [1, 1]} : vector<64x64xf32> to vector<16x64xf32>
    %59 = arith.addf %51, %58 : vector<16x64xf32>
    %60 = vector.extract_strided_slice %57 {offsets = [38, 0], sizes = [16, 64], strides = [1, 1]} : vector<64x64xf32> to vector<16x64xf32>
    %61 = arith.addf %53, %60 : vector<16x64xf32>
    %62 = vector.extract_strided_slice %56 {offsets = [0, 64], sizes = [64, 64], strides = [1, 1]} : vector<64x128xf32> to vector<64x64xf32>
    %63 = vector.extract_strided_slice %62 {offsets = [7, 0], sizes = [16, 64], strides = [1, 1]} : vector<64x64xf32> to vector<16x64xf32>
    %64 = arith.addf %59, %63 : vector<16x64xf32>
    %65 = vector.extract_strided_slice %62 {offsets = [39, 0], sizes = [16, 64], strides = [1, 1]} : vector<64x64xf32> to vector<16x64xf32>
    %66 = arith.addf %61, %65 : vector<16x64xf32>
    %c4 = arith.constant 4 : index
    %c0_22 = arith.constant 0 : index
    %c0_23 = arith.constant 0 : index
    %67 = vector.load %arg3[%c4, %c0_22, %c0_23] : memref<9x256x128xf32, #tpu.memory_space<vmem>>, vector<1x256x128xf32>
    %68 = vector.shape_cast %67 : vector<1x256x128xf32> to vector<256x128xf32>
    %cst_24 = arith.constant dense<0.000000e+00> : vector<64x128xf32>
    %69 = tpu.matmul %9, %68, %cst_24 {dimension_numbers = #tpu.dot_dimension_numbers<[1], [0], [0], [1], [0, 0, 1, 1], [], []>} : vector<64x256xf32>, vector<256x128xf32>, vector<64x128xf32> -> vector<64x128xf32>
    %70 = vector.extract_strided_slice %69 {offsets = [0, 0], sizes = [64, 64], strides = [1, 1]} : vector<64x128xf32> to vector<64x64xf32>
    %71 = vector.extract_strided_slice %70 {offsets = [8, 0], sizes = [16, 64], strides = [1, 1]} : vector<64x64xf32> to vector<16x64xf32>
    %72 = arith.addf %64, %71 : vector<16x64xf32>
    %73 = vector.extract_strided_slice %70 {offsets = [40, 0], sizes = [16, 64], strides = [1, 1]} : vector<64x64xf32> to vector<16x64xf32>
    %74 = arith.addf %66, %73 : vector<16x64xf32>
    %75 = vector.extract_strided_slice %69 {offsets = [0, 64], sizes = [64, 64], strides = [1, 1]} : vector<64x128xf32> to vector<64x64xf32>
    %76 = vector.extract_strided_slice %75 {offsets = [9, 0], sizes = [16, 64], strides = [1, 1]} : vector<64x64xf32> to vector<16x64xf32>
    %77 = arith.addf %72, %76 : vector<16x64xf32>
    %78 = vector.extract_strided_slice %75 {offsets = [41, 0], sizes = [16, 64], strides = [1, 1]} : vector<64x64xf32> to vector<16x64xf32>
    %79 = arith.addf %74, %78 : vector<16x64xf32>
    %c5 = arith.constant 5 : index
    %c0_25 = arith.constant 0 : index
    %c0_26 = arith.constant 0 : index
    %80 = vector.load %arg3[%c5, %c0_25, %c0_26] : memref<9x256x128xf32, #tpu.memory_space<vmem>>, vector<1x256x128xf32>
    %81 = vector.shape_cast %80 : vector<1x256x128xf32> to vector<256x128xf32>
    %cst_27 = arith.constant dense<0.000000e+00> : vector<64x128xf32>
    %82 = tpu.matmul %9, %81, %cst_27 {dimension_numbers = #tpu.dot_dimension_numbers<[1], [0], [0], [1], [0, 0, 1, 1], [], []>} : vector<64x256xf32>, vector<256x128xf32>, vector<64x128xf32> -> vector<64x128xf32>
    %83 = vector.extract_strided_slice %82 {offsets = [0, 0], sizes = [64, 64], strides = [1, 1]} : vector<64x128xf32> to vector<64x64xf32>
    %84 = vector.extract_strided_slice %83 {offsets = [10, 0], sizes = [16, 64], strides = [1, 1]} : vector<64x64xf32> to vector<16x64xf32>
    %85 = arith.addf %77, %84 : vector<16x64xf32>
    %86 = vector.extract_strided_slice %83 {offsets = [42, 0], sizes = [16, 64], strides = [1, 1]} : vector<64x64xf32> to vector<16x64xf32>
    %87 = arith.addf %79, %86 : vector<16x64xf32>
    %88 = vector.extract_strided_slice %82 {offsets = [0, 64], sizes = [64, 64], strides = [1, 1]} : vector<64x128xf32> to vector<64x64xf32>
    %89 = vector.extract_strided_slice %88 {offsets = [11, 0], sizes = [16, 64], strides = [1, 1]} : vector<64x64xf32> to vector<16x64xf32>
    %90 = arith.addf %85, %89 : vector<16x64xf32>
    %91 = vector.extract_strided_slice %88 {offsets = [43, 0], sizes = [16, 64], strides = [1, 1]} : vector<64x64xf32> to vector<16x64xf32>
    %92 = arith.addf %87, %91 : vector<16x64xf32>
    %c6 = arith.constant 6 : index
    %c0_28 = arith.constant 0 : index
    %c0_29 = arith.constant 0 : index
    %93 = vector.load %arg3[%c6, %c0_28, %c0_29] : memref<9x256x128xf32, #tpu.memory_space<vmem>>, vector<1x256x128xf32>
    %94 = vector.shape_cast %93 : vector<1x256x128xf32> to vector<256x128xf32>
    %cst_30 = arith.constant dense<0.000000e+00> : vector<64x128xf32>
    %95 = tpu.matmul %9, %94, %cst_30 {dimension_numbers = #tpu.dot_dimension_numbers<[1], [0], [0], [1], [0, 0, 1, 1], [], []>} : vector<64x256xf32>, vector<256x128xf32>, vector<64x128xf32> -> vector<64x128xf32>
    %96 = vector.extract_strided_slice %95 {offsets = [0, 0], sizes = [64, 64], strides = [1, 1]} : vector<64x128xf32> to vector<64x64xf32>
    %97 = vector.extract_strided_slice %96 {offsets = [12, 0], sizes = [16, 64], strides = [1, 1]} : vector<64x64xf32> to vector<16x64xf32>
    %98 = arith.addf %90, %97 : vector<16x64xf32>
    %99 = vector.extract_strided_slice %96 {offsets = [44, 0], sizes = [16, 64], strides = [1, 1]} : vector<64x64xf32> to vector<16x64xf32>
    %100 = arith.addf %92, %99 : vector<16x64xf32>
    %101 = vector.extract_strided_slice %95 {offsets = [0, 64], sizes = [64, 64], strides = [1, 1]} : vector<64x128xf32> to vector<64x64xf32>
    %102 = vector.extract_strided_slice %101 {offsets = [13, 0], sizes = [16, 64], strides = [1, 1]} : vector<64x64xf32> to vector<16x64xf32>
    %103 = arith.addf %98, %102 : vector<16x64xf32>
    %104 = vector.extract_strided_slice %101 {offsets = [45, 0], sizes = [16, 64], strides = [1, 1]} : vector<64x64xf32> to vector<16x64xf32>
    %105 = arith.addf %100, %104 : vector<16x64xf32>
    %c7 = arith.constant 7 : index
    %c0_31 = arith.constant 0 : index
    %c0_32 = arith.constant 0 : index
    %106 = vector.load %arg3[%c7, %c0_31, %c0_32] : memref<9x256x128xf32, #tpu.memory_space<vmem>>, vector<1x256x128xf32>
    %107 = vector.shape_cast %106 : vector<1x256x128xf32> to vector<256x128xf32>
    %cst_33 = arith.constant dense<0.000000e+00> : vector<64x128xf32>
    %108 = tpu.matmul %9, %107, %cst_33 {dimension_numbers = #tpu.dot_dimension_numbers<[1], [0], [0], [1], [0, 0, 1, 1], [], []>} : vector<64x256xf32>, vector<256x128xf32>, vector<64x128xf32> -> vector<64x128xf32>
    %109 = vector.extract_strided_slice %108 {offsets = [0, 0], sizes = [64, 64], strides = [1, 1]} : vector<64x128xf32> to vector<64x64xf32>
    %110 = vector.extract_strided_slice %109 {offsets = [14, 0], sizes = [16, 64], strides = [1, 1]} : vector<64x64xf32> to vector<16x64xf32>
    %111 = arith.addf %103, %110 : vector<16x64xf32>
    %112 = vector.extract_strided_slice %109 {offsets = [46, 0], sizes = [16, 64], strides = [1, 1]} : vector<64x64xf32> to vector<16x64xf32>
    %113 = arith.addf %105, %112 : vector<16x64xf32>
    %114 = vector.extract_strided_slice %108 {offsets = [0, 64], sizes = [64, 64], strides = [1, 1]} : vector<64x128xf32> to vector<64x64xf32>
    %115 = vector.extract_strided_slice %114 {offsets = [15, 0], sizes = [16, 64], strides = [1, 1]} : vector<64x64xf32> to vector<16x64xf32>
    %116 = arith.addf %111, %115 : vector<16x64xf32>
    %117 = vector.extract_strided_slice %114 {offsets = [47, 0], sizes = [16, 64], strides = [1, 1]} : vector<64x64xf32> to vector<16x64xf32>
    %118 = arith.addf %113, %117 : vector<16x64xf32>
    %c8 = arith.constant 8 : index
    %c0_34 = arith.constant 0 : index
    %c0_35 = arith.constant 0 : index
    %119 = vector.load %arg3[%c8, %c0_34, %c0_35] : memref<9x256x128xf32, #tpu.memory_space<vmem>>, vector<1x256x128xf32>
    %120 = vector.shape_cast %119 : vector<1x256x128xf32> to vector<256x128xf32>
    %cst_36 = arith.constant dense<0.000000e+00> : vector<64x128xf32>
    %121 = tpu.matmul %9, %120, %cst_36 {dimension_numbers = #tpu.dot_dimension_numbers<[1], [0], [0], [1], [0, 0, 1, 1], [], []>} : vector<64x256xf32>, vector<256x128xf32>, vector<64x128xf32> -> vector<64x128xf32>
    %122 = vector.extract_strided_slice %121 {offsets = [0, 0], sizes = [64, 64], strides = [1, 1]} : vector<64x128xf32> to vector<64x64xf32>
    %123 = vector.extract_strided_slice %122 {offsets = [16, 0], sizes = [16, 64], strides = [1, 1]} : vector<64x64xf32> to vector<16x64xf32>
    %124 = arith.addf %116, %123 : vector<16x64xf32>
    %125 = vector.extract_strided_slice %122 {offsets = [48, 0], sizes = [16, 64], strides = [1, 1]} : vector<64x64xf32> to vector<16x64xf32>
    %126 = arith.addf %118, %125 : vector<16x64xf32>
    %127 = tpu.concatenate %124, %126 in 0 : vector<16x64xf32>, vector<16x64xf32> -> vector<32x64xf32>
    %cst_37 = arith.constant 0.000000e+00 : f32
    %128 = vector.broadcast %cst_37 : f32 to vector<16x16xf32>
    %c0_38 = arith.constant 0 : index
    %c0_39 = arith.constant 0 : index
    %129 = vector.load %arg6[%c0_38, %c0_39] : memref<32x32xf32, #tpu.memory_space<vmem>>, vector<32x32xf32>
    %cst_40 = arith.constant dense<0.000000e+00> : vector<32x32xf32>
    %130 = tpu.matmul %0, %129, %cst_40 {dimension_numbers = #tpu.dot_dimension_numbers<[1], [0], [0], [1], [0, 0, 1, 1], [], []>} : vector<32x32xf32>, vector<32x32xf32>, vector<32x32xf32> -> vector<32x32xf32>
    %131 = vector.extract_strided_slice %1 {offsets = [5, 0], sizes = [1, 32], strides = [1, 1]} : vector<8x128xf32> to vector<1x32xf32>
    %132 = vector.broadcast %131 : vector<1x32xf32> to vector<32x32xf32>
    %133 = arith.addf %130, %132 : vector<32x32xf32>
    %134 = math.tanh %133 : vector<32x32xf32>
    %cst_41 = arith.constant 6.250000e-02 : f32
    %135 = vector.broadcast %cst_41 : f32 to vector<16x16xf32>
    %136 = tpu.concatenate %135, %128 in 1 : vector<16x16xf32>, vector<16x16xf32> -> vector<16x32xf32>
    %137 = tpu.concatenate %128, %135 in 1 : vector<16x16xf32>, vector<16x16xf32> -> vector<16x32xf32>
    %138 = tpu.concatenate %136, %137 in 0 : vector<16x32xf32>, vector<16x32xf32> -> vector<32x32xf32>
    %cst_42 = arith.constant dense<0.000000e+00> : vector<32x32xf32>
    %139 = tpu.matmul %138, %134, %cst_42 {dimension_numbers = #tpu.dot_dimension_numbers<[1], [0], [0], [1], [0, 0, 1, 1], [], []>} : vector<32x32xf32>, vector<32x32xf32>, vector<32x32xf32> -> vector<32x32xf32>
    %c0_43 = arith.constant 0 : index
    %c0_44 = arith.constant 0 : index
    %140 = vector.load %arg7[%c0_43, %c0_44] : memref<32x32xf32, #tpu.memory_space<vmem>>, vector<32x32xf32>
    %141 = arith.addf %0, %140 : vector<32x32xf32>
    %142 = arith.addf %141, %139 : vector<32x32xf32>
    %143 = vector.extract_strided_slice %1 {offsets = [5, 32], sizes = [1, 32], strides = [1, 1]} : vector<8x128xf32> to vector<1x32xf32>
    %144 = vector.extract_strided_slice %1 {offsets = [5, 64], sizes = [1, 32], strides = [1, 1]} : vector<8x128xf32> to vector<1x32xf32>
    %cst_45 = arith.constant dense<0.000000e+00> : vector<32xf32>
    %145 = vector.multi_reduction <add>, %142, %cst_45 [1] : vector<32x32xf32> to vector<32xf32>
    %146 = vector.shape_cast %145 : vector<32xf32> to vector<32x1xf32>
    %cst_46 = arith.constant 3.200000e+01 : f32
    %147 = vector.broadcast %cst_46 : f32 to vector<32x1xf32>
    %148 = arith.divf %146, %147 : vector<32x1xf32>
    %149 = vector.broadcast %148 : vector<32x1xf32> to vector<32x32xf32>
    %150 = arith.subf %142, %149 : vector<32x32xf32>
    %151 = arith.mulf %150, %150 : vector<32x32xf32>
    %cst_47 = arith.constant dense<0.000000e+00> : vector<32xf32>
    %152 = vector.multi_reduction <add>, %151, %cst_47 [1] : vector<32x32xf32> to vector<32xf32>
    %153 = vector.shape_cast %152 : vector<32xf32> to vector<32x1xf32>
    %cst_48 = arith.constant 3.200000e+01 : f32
    %154 = vector.broadcast %cst_48 : f32 to vector<32x1xf32>
    %155 = arith.divf %153, %154 : vector<32x1xf32>
    %156 = vector.broadcast %148 : vector<32x1xf32> to vector<32x32xf32>
    %157 = arith.subf %142, %156 : vector<32x32xf32>
    %cst_49 = arith.constant 9.99999974E-6 : f32
    %158 = vector.broadcast %cst_49 : f32 to vector<32x1xf32>
    %159 = arith.addf %155, %158 : vector<32x1xf32>
    %160 = math.rsqrt %159 : vector<32x1xf32>
    %161 = vector.broadcast %160 : vector<32x1xf32> to vector<32x32xf32>
    %162 = arith.mulf %157, %161 : vector<32x32xf32>
    %163 = vector.broadcast %143 : vector<1x32xf32> to vector<32x32xf32>
    %164 = arith.mulf %162, %163 : vector<32x32xf32>
    %165 = vector.broadcast %144 : vector<1x32xf32> to vector<32x32xf32>
    %166 = arith.addf %164, %165 : vector<32x32xf32>
    %c0_50 = arith.constant 0 : index
    %c0_51 = arith.constant 0 : index
    %167 = vector.load %arg4[%c0_50, %c0_51] : memref<32x128xf32, #tpu.memory_space<vmem>>, vector<32x64xf32>
    %168 = vector.extract_strided_slice %1 {offsets = [0, 0], sizes = [1, 64], strides = [1, 1]} : vector<8x128xf32> to vector<1x64xf32>
    %cst_52 = arith.constant dense<0.000000e+00> : vector<32x64xf32>
    %169 = tpu.matmul %0, %167, %cst_52 {dimension_numbers = #tpu.dot_dimension_numbers<[1], [0], [0], [1], [0, 0, 1, 1], [], []>} : vector<32x32xf32>, vector<32x64xf32>, vector<32x64xf32> -> vector<32x64xf32>
    %170 = vector.broadcast %168 : vector<1x64xf32> to vector<32x64xf32>
    %171 = arith.addf %169, %170 : vector<32x64xf32>
    %172 = math.tanh %171 : vector<32x64xf32>
    %173 = vector.extract_strided_slice %127 {offsets = [0, 0], sizes = [16, 16], strides = [1, 1]} : vector<32x64xf32> to vector<16x16xf32>
    %174 = vector.extract_strided_slice %127 {offsets = [16, 0], sizes = [16, 16], strides = [1, 1]} : vector<32x64xf32> to vector<16x16xf32>
    %175 = tpu.concatenate %173, %128 in 1 : vector<16x16xf32>, vector<16x16xf32> -> vector<16x32xf32>
    %176 = tpu.concatenate %128, %174 in 1 : vector<16x16xf32>, vector<16x16xf32> -> vector<16x32xf32>
    %177 = tpu.concatenate %175, %176 in 0 : vector<16x32xf32>, vector<16x32xf32> -> vector<32x32xf32>
    %178 = vector.extract_strided_slice %172 {offsets = [0, 0], sizes = [32, 32], strides = [1, 1]} : vector<32x64xf32> to vector<32x32xf32>
    %cst_53 = arith.constant dense<0.000000e+00> : vector<32x32xf32>
    %179 = tpu.matmul %177, %178, %cst_53 {dimension_numbers = #tpu.dot_dimension_numbers<[1], [0], [0], [1], [0, 0, 1, 1], [], []>} : vector<32x32xf32>, vector<32x32xf32>, vector<32x32xf32> -> vector<32x32xf32>
    %180 = arith.addf %0, %179 : vector<32x32xf32>
    %c0_54 = arith.constant 0 : index
    %c0_55 = arith.constant 0 : index
    %181 = vector.load %arg5[%c0_54, %c0_55] : memref<32x128xf32, #tpu.memory_space<vmem>>, vector<32x32xf32>
    %cst_56 = arith.constant dense<0.000000e+00> : vector<32x32xf32>
    %182 = tpu.matmul %180, %181, %cst_56 {dimension_numbers = #tpu.dot_dimension_numbers<[1], [0], [0], [1], [0, 0, 1, 1], [], []>} : vector<32x32xf32>, vector<32x32xf32>, vector<32x32xf32> -> vector<32x32xf32>
    %183 = vector.extract_strided_slice %1 {offsets = [1, 0], sizes = [1, 32], strides = [1, 1]} : vector<8x128xf32> to vector<1x32xf32>
    %184 = vector.broadcast %183 : vector<1x32xf32> to vector<32x32xf32>
    %185 = arith.addf %182, %184 : vector<32x32xf32>
    %186 = math.tanh %185 : vector<32x32xf32>
    %187 = vector.extract_strided_slice %1 {offsets = [2, 0], sizes = [1, 32], strides = [1, 1]} : vector<8x128xf32> to vector<1x32xf32>
    %188 = vector.extract_strided_slice %1 {offsets = [3, 0], sizes = [1, 32], strides = [1, 1]} : vector<8x128xf32> to vector<1x32xf32>
    %cst_57 = arith.constant dense<0.000000e+00> : vector<32xf32>
    %189 = vector.multi_reduction <add>, %186, %cst_57 [1] : vector<32x32xf32> to vector<32xf32>
    %190 = vector.shape_cast %189 : vector<32xf32> to vector<32x1xf32>
    %cst_58 = arith.constant 3.200000e+01 : f32
    %191 = vector.broadcast %cst_58 : f32 to vector<32x1xf32>
    %192 = arith.divf %190, %191 : vector<32x1xf32>
    %193 = vector.broadcast %192 : vector<32x1xf32> to vector<32x32xf32>
    %194 = arith.subf %186, %193 : vector<32x32xf32>
    %195 = arith.mulf %194, %194 : vector<32x32xf32>
    %cst_59 = arith.constant dense<0.000000e+00> : vector<32xf32>
    %196 = vector.multi_reduction <add>, %195, %cst_59 [1] : vector<32x32xf32> to vector<32xf32>
    %197 = vector.shape_cast %196 : vector<32xf32> to vector<32x1xf32>
    %cst_60 = arith.constant 3.200000e+01 : f32
    %198 = vector.broadcast %cst_60 : f32 to vector<32x1xf32>
    %199 = arith.divf %197, %198 : vector<32x1xf32>
    %200 = vector.broadcast %192 : vector<32x1xf32> to vector<32x32xf32>
    %201 = arith.subf %186, %200 : vector<32x32xf32>
    %cst_61 = arith.constant 9.99999974E-6 : f32
    %202 = vector.broadcast %cst_61 : f32 to vector<32x1xf32>
    %203 = arith.addf %199, %202 : vector<32x1xf32>
    %204 = math.rsqrt %203 : vector<32x1xf32>
    %205 = vector.broadcast %204 : vector<32x1xf32> to vector<32x32xf32>
    %206 = arith.mulf %201, %205 : vector<32x32xf32>
    %207 = vector.broadcast %187 : vector<1x32xf32> to vector<32x32xf32>
    %208 = arith.mulf %206, %207 : vector<32x32xf32>
    %209 = vector.broadcast %188 : vector<1x32xf32> to vector<32x32xf32>
    %210 = arith.addf %208, %209 : vector<32x32xf32>
    %211 = vector.extract_strided_slice %127 {offsets = [0, 16], sizes = [16, 16], strides = [1, 1]} : vector<32x64xf32> to vector<16x16xf32>
    %212 = vector.extract_strided_slice %127 {offsets = [16, 16], sizes = [16, 16], strides = [1, 1]} : vector<32x64xf32> to vector<16x16xf32>
    %213 = tpu.concatenate %211, %128 in 1 : vector<16x16xf32>, vector<16x16xf32> -> vector<16x32xf32>
    %214 = tpu.concatenate %128, %212 in 1 : vector<16x16xf32>, vector<16x16xf32> -> vector<16x32xf32>
    %215 = tpu.concatenate %213, %214 in 0 : vector<16x32xf32>, vector<16x32xf32> -> vector<32x32xf32>
    %216 = vector.extract_strided_slice %172 {offsets = [0, 32], sizes = [32, 32], strides = [1, 1]} : vector<32x64xf32> to vector<32x32xf32>
    %cst_62 = arith.constant dense<0.000000e+00> : vector<32x32xf32>
    %217 = tpu.matmul %215, %216, %cst_62 {dimension_numbers = #tpu.dot_dimension_numbers<[1], [0], [0], [1], [0, 0, 1, 1], [], []>} : vector<32x32xf32>, vector<32x32xf32>, vector<32x32xf32> -> vector<32x32xf32>
    %218 = arith.addf %0, %217 : vector<32x32xf32>
    %c0_63 = arith.constant 0 : index
    %c32 = arith.constant 32 : index
    %219 = vector.load %arg5[%c0_63, %c32] : memref<32x128xf32, #tpu.memory_space<vmem>>, vector<32x32xf32>
    %cst_64 = arith.constant dense<0.000000e+00> : vector<32x32xf32>
    %220 = tpu.matmul %218, %219, %cst_64 {dimension_numbers = #tpu.dot_dimension_numbers<[1], [0], [0], [1], [0, 0, 1, 1], [], []>} : vector<32x32xf32>, vector<32x32xf32>, vector<32x32xf32> -> vector<32x32xf32>
    %221 = vector.extract_strided_slice %1 {offsets = [1, 32], sizes = [1, 32], strides = [1, 1]} : vector<8x128xf32> to vector<1x32xf32>
    %222 = vector.broadcast %221 : vector<1x32xf32> to vector<32x32xf32>
    %223 = arith.addf %220, %222 : vector<32x32xf32>
    %224 = math.tanh %223 : vector<32x32xf32>
    %225 = vector.extract_strided_slice %1 {offsets = [2, 32], sizes = [1, 32], strides = [1, 1]} : vector<8x128xf32> to vector<1x32xf32>
    %226 = vector.extract_strided_slice %1 {offsets = [3, 32], sizes = [1, 32], strides = [1, 1]} : vector<8x128xf32> to vector<1x32xf32>
    %cst_65 = arith.constant dense<0.000000e+00> : vector<32xf32>
    %227 = vector.multi_reduction <add>, %224, %cst_65 [1] : vector<32x32xf32> to vector<32xf32>
    %228 = vector.shape_cast %227 : vector<32xf32> to vector<32x1xf32>
    %cst_66 = arith.constant 3.200000e+01 : f32
    %229 = vector.broadcast %cst_66 : f32 to vector<32x1xf32>
    %230 = arith.divf %228, %229 : vector<32x1xf32>
    %231 = vector.broadcast %230 : vector<32x1xf32> to vector<32x32xf32>
    %232 = arith.subf %224, %231 : vector<32x32xf32>
    %233 = arith.mulf %232, %232 : vector<32x32xf32>
    %cst_67 = arith.constant dense<0.000000e+00> : vector<32xf32>
    %234 = vector.multi_reduction <add>, %233, %cst_67 [1] : vector<32x32xf32> to vector<32xf32>
    %235 = vector.shape_cast %234 : vector<32xf32> to vector<32x1xf32>
    %cst_68 = arith.constant 3.200000e+01 : f32
    %236 = vector.broadcast %cst_68 : f32 to vector<32x1xf32>
    %237 = arith.divf %235, %236 : vector<32x1xf32>
    %238 = vector.broadcast %230 : vector<32x1xf32> to vector<32x32xf32>
    %239 = arith.subf %224, %238 : vector<32x32xf32>
    %cst_69 = arith.constant 9.99999974E-6 : f32
    %240 = vector.broadcast %cst_69 : f32 to vector<32x1xf32>
    %241 = arith.addf %237, %240 : vector<32x1xf32>
    %242 = math.rsqrt %241 : vector<32x1xf32>
    %243 = vector.broadcast %242 : vector<32x1xf32> to vector<32x32xf32>
    %244 = arith.mulf %239, %243 : vector<32x32xf32>
    %245 = vector.broadcast %225 : vector<1x32xf32> to vector<32x32xf32>
    %246 = arith.mulf %244, %245 : vector<32x32xf32>
    %247 = vector.broadcast %226 : vector<1x32xf32> to vector<32x32xf32>
    %248 = arith.addf %246, %247 : vector<32x32xf32>
    %249 = arith.addf %210, %248 : vector<32x32xf32>
    %250 = arith.addf %166, %249 : vector<32x32xf32>
    %c0_70 = arith.constant 0 : index
    %c64 = arith.constant 64 : index
    %251 = vector.load %arg4[%c0_70, %c64] : memref<32x128xf32, #tpu.memory_space<vmem>>, vector<32x64xf32>
    %252 = vector.extract_strided_slice %1 {offsets = [0, 64], sizes = [1, 64], strides = [1, 1]} : vector<8x128xf32> to vector<1x64xf32>
    %cst_71 = arith.constant dense<0.000000e+00> : vector<32x64xf32>
    %253 = tpu.matmul %250, %251, %cst_71 {dimension_numbers = #tpu.dot_dimension_numbers<[1], [0], [0], [1], [0, 0, 1, 1], [], []>} : vector<32x32xf32>, vector<32x64xf32>, vector<32x64xf32> -> vector<32x64xf32>
    %254 = vector.broadcast %252 : vector<1x64xf32> to vector<32x64xf32>
    %255 = arith.addf %253, %254 : vector<32x64xf32>
    %256 = math.tanh %255 : vector<32x64xf32>
    %257 = vector.extract_strided_slice %127 {offsets = [0, 32], sizes = [16, 16], strides = [1, 1]} : vector<32x64xf32> to vector<16x16xf32>
    %258 = vector.extract_strided_slice %127 {offsets = [16, 32], sizes = [16, 16], strides = [1, 1]} : vector<32x64xf32> to vector<16x16xf32>
    %259 = tpu.concatenate %257, %128 in 1 : vector<16x16xf32>, vector<16x16xf32> -> vector<16x32xf32>
    %260 = tpu.concatenate %128, %258 in 1 : vector<16x16xf32>, vector<16x16xf32> -> vector<16x32xf32>
    %261 = tpu.concatenate %259, %260 in 0 : vector<16x32xf32>, vector<16x32xf32> -> vector<32x32xf32>
    %262 = vector.extract_strided_slice %256 {offsets = [0, 0], sizes = [32, 32], strides = [1, 1]} : vector<32x64xf32> to vector<32x32xf32>
    %cst_72 = arith.constant dense<0.000000e+00> : vector<32x32xf32>
    %263 = tpu.matmul %261, %262, %cst_72 {dimension_numbers = #tpu.dot_dimension_numbers<[1], [0], [0], [1], [0, 0, 1, 1], [], []>} : vector<32x32xf32>, vector<32x32xf32>, vector<32x32xf32> -> vector<32x32xf32>
    %264 = arith.addf %250, %263 : vector<32x32xf32>
    %c0_73 = arith.constant 0 : index
    %c64_74 = arith.constant 64 : index
    %265 = vector.load %arg5[%c0_73, %c64_74] : memref<32x128xf32, #tpu.memory_space<vmem>>, vector<32x32xf32>
    %cst_75 = arith.constant dense<0.000000e+00> : vector<32x32xf32>
    %266 = tpu.matmul %264, %265, %cst_75 {dimension_numbers = #tpu.dot_dimension_numbers<[1], [0], [0], [1], [0, 0, 1, 1], [], []>} : vector<32x32xf32>, vector<32x32xf32>, vector<32x32xf32> -> vector<32x32xf32>
    %267 = vector.extract_strided_slice %1 {offsets = [1, 64], sizes = [1, 32], strides = [1, 1]} : vector<8x128xf32> to vector<1x32xf32>
    %268 = vector.broadcast %267 : vector<1x32xf32> to vector<32x32xf32>
    %269 = arith.addf %266, %268 : vector<32x32xf32>
    %270 = math.tanh %269 : vector<32x32xf32>
    %271 = vector.extract_strided_slice %1 {offsets = [2, 64], sizes = [1, 32], strides = [1, 1]} : vector<8x128xf32> to vector<1x32xf32>
    %272 = vector.extract_strided_slice %1 {offsets = [3, 64], sizes = [1, 32], strides = [1, 1]} : vector<8x128xf32> to vector<1x32xf32>
    %cst_76 = arith.constant dense<0.000000e+00> : vector<32xf32>
    %273 = vector.multi_reduction <add>, %270, %cst_76 [1] : vector<32x32xf32> to vector<32xf32>
    %274 = vector.shape_cast %273 : vector<32xf32> to vector<32x1xf32>
    %cst_77 = arith.constant 3.200000e+01 : f32
    %275 = vector.broadcast %cst_77 : f32 to vector<32x1xf32>
    %276 = arith.divf %274, %275 : vector<32x1xf32>
    %277 = vector.broadcast %276 : vector<32x1xf32> to vector<32x32xf32>
    %278 = arith.subf %270, %277 : vector<32x32xf32>
    %279 = arith.mulf %278, %278 : vector<32x32xf32>
    %cst_78 = arith.constant dense<0.000000e+00> : vector<32xf32>
    %280 = vector.multi_reduction <add>, %279, %cst_78 [1] : vector<32x32xf32> to vector<32xf32>
    %281 = vector.shape_cast %280 : vector<32xf32> to vector<32x1xf32>
    %cst_79 = arith.constant 3.200000e+01 : f32
    %282 = vector.broadcast %cst_79 : f32 to vector<32x1xf32>
    %283 = arith.divf %281, %282 : vector<32x1xf32>
    %284 = vector.broadcast %276 : vector<32x1xf32> to vector<32x32xf32>
    %285 = arith.subf %270, %284 : vector<32x32xf32>
    %cst_80 = arith.constant 9.99999974E-6 : f32
    %286 = vector.broadcast %cst_80 : f32 to vector<32x1xf32>
    %287 = arith.addf %283, %286 : vector<32x1xf32>
    %288 = math.rsqrt %287 : vector<32x1xf32>
    %289 = vector.broadcast %288 : vector<32x1xf32> to vector<32x32xf32>
    %290 = arith.mulf %285, %289 : vector<32x32xf32>
    %291 = vector.broadcast %271 : vector<1x32xf32> to vector<32x32xf32>
    %292 = arith.mulf %290, %291 : vector<32x32xf32>
    %293 = vector.broadcast %272 : vector<1x32xf32> to vector<32x32xf32>
    %294 = arith.addf %292, %293 : vector<32x32xf32>
    %295 = vector.extract_strided_slice %127 {offsets = [0, 48], sizes = [16, 16], strides = [1, 1]} : vector<32x64xf32> to vector<16x16xf32>
    %296 = vector.extract_strided_slice %127 {offsets = [16, 48], sizes = [16, 16], strides = [1, 1]} : vector<32x64xf32> to vector<16x16xf32>
    %297 = tpu.concatenate %295, %128 in 1 : vector<16x16xf32>, vector<16x16xf32> -> vector<16x32xf32>
    %298 = tpu.concatenate %128, %296 in 1 : vector<16x16xf32>, vector<16x16xf32> -> vector<16x32xf32>
    %299 = tpu.concatenate %297, %298 in 0 : vector<16x32xf32>, vector<16x32xf32> -> vector<32x32xf32>
    %300 = vector.extract_strided_slice %256 {offsets = [0, 32], sizes = [32, 32], strides = [1, 1]} : vector<32x64xf32> to vector<32x32xf32>
    %cst_81 = arith.constant dense<0.000000e+00> : vector<32x32xf32>
    %301 = tpu.matmul %299, %300, %cst_81 {dimension_numbers = #tpu.dot_dimension_numbers<[1], [0], [0], [1], [0, 0, 1, 1], [], []>} : vector<32x32xf32>, vector<32x32xf32>, vector<32x32xf32> -> vector<32x32xf32>
    %302 = arith.addf %250, %301 : vector<32x32xf32>
    %c0_82 = arith.constant 0 : index
    %c96 = arith.constant 96 : index
    %303 = vector.load %arg5[%c0_82, %c96] : memref<32x128xf32, #tpu.memory_space<vmem>>, vector<32x32xf32>
    %cst_83 = arith.constant dense<0.000000e+00> : vector<32x32xf32>
    %304 = tpu.matmul %302, %303, %cst_83 {dimension_numbers = #tpu.dot_dimension_numbers<[1], [0], [0], [1], [0, 0, 1, 1], [], []>} : vector<32x32xf32>, vector<32x32xf32>, vector<32x32xf32> -> vector<32x32xf32>
    %305 = vector.extract_strided_slice %1 {offsets = [1, 96], sizes = [1, 32], strides = [1, 1]} : vector<8x128xf32> to vector<1x32xf32>
    %306 = vector.broadcast %305 : vector<1x32xf32> to vector<32x32xf32>
    %307 = arith.addf %304, %306 : vector<32x32xf32>
    %308 = math.tanh %307 : vector<32x32xf32>
    %309 = vector.extract_strided_slice %1 {offsets = [2, 96], sizes = [1, 32], strides = [1, 1]} : vector<8x128xf32> to vector<1x32xf32>
    %310 = vector.extract_strided_slice %1 {offsets = [3, 96], sizes = [1, 32], strides = [1, 1]} : vector<8x128xf32> to vector<1x32xf32>
    %cst_84 = arith.constant dense<0.000000e+00> : vector<32xf32>
    %311 = vector.multi_reduction <add>, %308, %cst_84 [1] : vector<32x32xf32> to vector<32xf32>
    %312 = vector.shape_cast %311 : vector<32xf32> to vector<32x1xf32>
    %cst_85 = arith.constant 3.200000e+01 : f32
    %313 = vector.broadcast %cst_85 : f32 to vector<32x1xf32>
    %314 = arith.divf %312, %313 : vector<32x1xf32>
    %315 = vector.broadcast %314 : vector<32x1xf32> to vector<32x32xf32>
    %316 = arith.subf %308, %315 : vector<32x32xf32>
    %317 = arith.mulf %316, %316 : vector<32x32xf32>
    %cst_86 = arith.constant dense<0.000000e+00> : vector<32xf32>
    %318 = vector.multi_reduction <add>, %317, %cst_86 [1] : vector<32x32xf32> to vector<32xf32>
    %319 = vector.shape_cast %318 : vector<32xf32> to vector<32x1xf32>
    %cst_87 = arith.constant 3.200000e+01 : f32
    %320 = vector.broadcast %cst_87 : f32 to vector<32x1xf32>
    %321 = arith.divf %319, %320 : vector<32x1xf32>
    %322 = vector.broadcast %314 : vector<32x1xf32> to vector<32x32xf32>
    %323 = arith.subf %308, %322 : vector<32x32xf32>
    %cst_88 = arith.constant 9.99999974E-6 : f32
    %324 = vector.broadcast %cst_88 : f32 to vector<32x1xf32>
    %325 = arith.addf %321, %324 : vector<32x1xf32>
    %326 = math.rsqrt %325 : vector<32x1xf32>
    %327 = vector.broadcast %326 : vector<32x1xf32> to vector<32x32xf32>
    %328 = arith.mulf %323, %327 : vector<32x32xf32>
    %329 = vector.broadcast %309 : vector<1x32xf32> to vector<32x32xf32>
    %330 = arith.mulf %328, %329 : vector<32x32xf32>
    %331 = vector.broadcast %310 : vector<1x32xf32> to vector<32x32xf32>
    %332 = arith.addf %330, %331 : vector<32x32xf32>
    %333 = arith.addf %294, %332 : vector<32x32xf32>
    %334 = arith.addf %333, %0 : vector<32x32xf32>
    %c0_89 = arith.constant 0 : index
    %c0_90 = arith.constant 0 : index
    %335 = vector.load %arg9[%c0_89, %c0_90] : memref<32x32xf32, #tpu.memory_space<vmem>>, vector<32x32xf32>
    tpu.vector_store %arg9[%c0_89, %c0_90], %334 {strides = array<i32>} : memref<32x32xf32, #tpu.memory_space<vmem>>, vector<32x32xf32>,
    return
  }
}

</mosaic_0001>

<llo_original>
// kernel: neighbor_attn_stage.1
$region0: #{neighbor_attn_stage.1}
  #allocation0 [shape = 'u32[]', space=smem, size = 0x4, offset = 0x4, fixed_abs, tag = 'smem constant byte address 0x4 - core index']
  #allocation1 [shape = 'u32[144,128]{1,0:T(1,128)}', space=vmem, size = 0x12000, scoped, tag = 'internal scratch']
  %s0 = inlined_call_operand.hbm [shape: f32[32,32], index: 0, kind: input, shape index: {}]
  %s1 = inlined_call_operand.vmem [shape: f32[32,448], index: 1, kind: input, shape index: {}]
  %s2 = inlined_call_operand.vmem [shape: f32[448,256], index: 2, kind: input, shape index: {}]
  %s3 = inlined_call_operand.hbm [shape: f32[9,256,128], index: 3, kind: input, shape index: {}]
  %s4 = inlined_call_operand.hbm [shape: f32[32,128], index: 4, kind: input, shape index: {}]
  %s5 = inlined_call_operand.hbm [shape: f32[32,128], index: 5, kind: input, shape index: {}]
  %s6 = inlined_call_operand.hbm [shape: f32[32,32], index: 6, kind: input, shape index: {}]
  %s7 = inlined_call_operand.hbm [shape: f32[32,32], index: 7, kind: input, shape index: {}]
  %s8 = inlined_call_operand.hbm [shape: f32[8,128], index: 8, kind: input, shape index: {}]
  %s9 = inlined_call_operand.hbm [shape: f32[32,32], index: 9, kind: output, shape index: {}]
  %s10 = sld [smem:[#allocation0]]
  $region74: #{neighbor_attn_stage.1} parent=0
    _
  %s12 = ssub.s32 1, %s10
  %s13 = scalar_select 0, %s12, %s10
  $region1: #{neighbor_attn_stage.1} parent=0
    #allocation2 [shape = 'u8[16384]{0}', space=vmem, size = 0x4000, scoped, tag = 'input window, operand 0, single buffered']
    #allocation3 [shape = 's32[1]{0}', space=sflag, size = 0x4, scoped, tag = 'scoped memory for neighbor_attn_stage.1']
    #allocation4 [shape = 's32[1]{0}', space=sflag, size = 0x4, scoped, tag = 'scoped memory for neighbor_attn_stage.1']
    #allocation5 [shape = 'u8[1179648]{0}', space=vmem, size = 0x120000, scoped, tag = 'input window, operand 3, single buffered']
    #allocation6 [shape = 's32[1]{0}', space=sflag, size = 0x4, scoped, tag = 'scoped memory for neighbor_attn_stage.1']
    #allocation7 [shape = 'u8[16384]{0}', space=vmem, size = 0x4000, scoped, tag = 'input window, operand 4, single buffered']
    #allocation8 [shape = 'u8[16384]{0}', space=vmem, size = 0x4000, scoped, tag = 'input window, operand 5, single buffered']
    #allocation9 [shape = 's32[1]{0}', space=sflag, size = 0x4, scoped, tag = 'scoped memory for neighbor_attn_stage.1']
    #allocation10 [shape = 'u8[16384]{0}', space=vmem, size = 0x4000, scoped, tag = 'input window, operand 6, single buffered']
    #allocation11 [shape = 'u8[16384]{0}', space=vmem, size = 0x4000, scoped, tag = 'input window, operand 7, single buffered']
    #allocation12 [shape = 's32[1]{0}', space=sflag, size = 0x4, scoped, tag = 'scoped memory for neighbor_attn_stage.1']
    #allocation13 [shape = 'u8[4096]{0}', space=vmem, size = 0x1000, scoped, tag = 'input window, operand 8, single buffered']
    #allocation14 [shape = 'u8[16384]{0}', space=vmem, size = 0x4000, scoped, tag = 'output window, operand 0, single buffered']
    %14 = vsyncpa [#allocation3], 0
    %15 = vsyncpa [#allocation6], 0
    %16 = vsyncpa [#allocation9], 0
    %17 = vsyncpa [#allocation12], 0
    %18 = vsyncpa [#allocation4], 0
    // Predicated region
    $region2: #{neighbor_attn_stage.1} parent=1 // pred_check
      _
    $region3: #{neighbor_attn_stage.1} parent=1 // pred_check_branch
      %20 = sbr.rel (0) target = $region5
    $region4: #{neighbor_attn_stage.1} parent=1 // pred_region
      %s22 = ssub.s32 512, 512
      %23 = vsyncadd [#allocation3], %s22
      %s24 = sshll.u32 [#allocation2], 4
      %s25 = int_to_ptr.vmem [resolvable:$true] %s24
      %30 = dma.hbm_to_vmem [thread:$0]  %s0, 512, %s25, [#allocation3], 128, 128, 8
    $region5: #{neighbor_attn_stage.1} parent=1 // pred_fallthru
      _
    // Predicated region
    $region6: #{neighbor_attn_stage.1} parent=1 // pred_check
      _
    $region7: #{neighbor_attn_stage.1} parent=1 // pred_check_branch
      %32 = sbr.rel (0) target = $region9
    $region8: #{neighbor_attn_stage.1} parent=1 // pred_region
      _
    $region9: #{neighbor_attn_stage.1} parent=1 // pred_fallthru
      _
    // Predicated region
    $region10: #{neighbor_attn_stage.1} parent=1 // pred_check
      _
    $region11: #{neighbor_attn_stage.1} parent=1 // pred_check_branch
      %34 = sbr.rel (0) target = $region13
    $region12: #{neighbor_attn_stage.1} parent=1 // pred_region
      _
    $region13: #{neighbor_attn_stage.1} parent=1 // pred_fallthru
      _
    // Predicated region
    $region14: #{neighbor_attn_stage.1} parent=1 // pred_check
      _
    $region15: #{neighbor_attn_stage.1} parent=1 // pred_check_branch
      %36 = sbr.rel (0) target = $region17
    $region16: #{neighbor_attn_stage.1} parent=1 // pred_region
      %s38 = ssub.s32 36864, 36864
      %39 = vsyncadd [#allocation6], %s38
      %s40 = sshll.u32 [#allocation5], 4
      %s41 = int_to_ptr.vmem [resolvable:$true] %s40
      %46 = dma.hbm_to_vmem [thread:$0]  %s3, 36864, %s41, [#allocation6], 128, 128, 8
    $region17: #{neighbor_attn_stage.1} parent=1 // pred_fallthru
      _
    // Predicated region
    $region18: #{neighbor_attn_stage.1} parent=1 // pred_check
      _
    $region19: #{neighbor_attn_stage.1} parent=1 // pred_check_branch
      %48 = sbr.rel (0) target = $region21
    $region20: #{neighbor_attn_stage.1} parent=1 // pred_region
      %s50 = ssub.s32 512, 512
      %51 = vsyncadd [#allocation6], %s50
      %s52 = sshll.u32 [#allocation7], 4
      %s53 = int_to_ptr.vmem [resolvable:$true] %s52
      %58 = dma.hbm_to_vmem [thread:$0]  %s4, 512, %s53, [#allocation6], 128, 128, 8
    $region21: #{neighbor_attn_stage.1} parent=1 // pred_fallthru
      _
    // Predicated region
    $region22: #{neighbor_attn_stage.1} parent=1 // pred_check
      _
    $region23: #{neighbor_attn_stage.1} parent=1 // pred_check_branch
      %60 = sbr.rel (0) target = $region25
    $region24: #{neighbor_attn_stage.1} parent=1 // pred_region
      %s62 = ssub.s32 512, 512
      %63 = vsyncadd [#allocation9], %s62
      %s64 = sshll.u32 [#allocation8], 4
      %s65 = int_to_ptr.vmem [resolvable:$true] %s64
      %70 = dma.hbm_to_vmem [thread:$0]  %s5, 512, %s65, [#allocation9], 128, 128, 8
    $region25: #{neighbor_attn_stage.1} parent=1 // pred_fallthru
      _
    // Predicated region
    $region26: #{neighbor_attn_stage.1} parent=1 // pred_check
      _
    $region27: #{neighbor_attn_stage.1} parent=1 // pred_check_branch
      %72 = sbr.rel (0) target = $region29
    $region28: #{neighbor_attn_stage.1} parent=1 // pred_region
      %s74 = ssub.s32 512, 512
      %75 = vsyncadd [#allocation9], %s74
      %s76 = sshll.u32 [#allocation10], 4
      %s77 = int_to_ptr.vmem [resolvable:$true] %s76
      %82 = dma.hbm_to_vmem [thread:$0]  %s6, 512, %s77, [#allocation9], 128, 128, 8
    $region29: #{neighbor_attn_stage.1} parent=1 // pred_fallthru
      _
    // Predicated region
    $region30: #{neighbor_attn_stage.1} parent=1 // pred_check
      _
    $region31: #{neighbor_attn_stage.1} parent=1 // pred_check_branch
      %84 = sbr.rel (0) target = $region33
    $region32: #{neighbor_attn_stage.1} parent=1 // pred_region
      %s86 = ssub.s32 512, 512
      %87 = vsyncadd [#allocation12], %s86
      %s88 = sshll.u32 [#allocation11], 4
      %s89 = int_to_ptr.vmem [resolvable:$true] %s88
      %94 = dma.hbm_to_vmem [thread:$0]  %s7, 512, %s89, [#allocation12], 128, 128, 8
    $region33: #{neighbor_attn_stage.1} parent=1 // pred_fallthru
      _
    // Predicated region
    $region34: #{neighbor_attn_stage.1} parent=1 // pred_check
      _
    $region35: #{neighbor_attn_stage.1} parent=1 // pred_check_branch
      %96 = sbr.rel (0) target = $region37
    $region36: #{neighbor_attn_stage.1} parent=1 // pred_region
      %s98 = ssub.s32 128, 128
      %99 = vsyncadd [#allocation12], %s98
      %s101 = sshll.u32 [#allocation13], 4
      %s102 = int_to_ptr.vmem [resolvable:$true] %s101
      %104 = dma.hbm_to_vmem [thread:$0]  %s8, 128, %s102, [#allocation12]
    $region37: #{neighbor_attn_stage.1} parent=1 // pred_fallthru
      _
    // Predicated region
    $region38: #{neighbor_attn_stage.1} parent=1 // pred_check
      _
    $region39: #{neighbor_attn_stage.1} parent=1 // pred_check_branch
      %106 = sbr.rel (0) target = $region41
    $region40: #{neighbor_attn_stage.1} parent=1 // pred_region
      %107 = dma.done [#allocation3], 512
    $region41: #{neighbor_attn_stage.1} parent=1 // pred_fallthru
      _
    // Predicated region
    $region42: #{neighbor_attn_stage.1} parent=1 // pred_check
      _
    $region43: #{neighbor_attn_stage.1} parent=1 // pred_check_branch
      %109 = sbr.rel (0) target = $region45
    $region44: #{neighbor_attn_stage.1} parent=1 // pred_region
      %110 = dma.done [#allocation6], 36864
    $region45: #{neighbor_attn_stage.1} parent=1 // pred_fallthru
      _
    // Predicated region
    $region46: #{neighbor_attn_stage.1} parent=1 // pred_check
      _
    $region47: #{neighbor_attn_stage.1} parent=1 // pred_check_branch
      %112 = sbr.rel (0) target = $region49
    $region48: #{neighbor_attn_stage.1} parent=1 // pred_region
      %113 = dma.done [#allocation6], 512
    $region49: #{neighbor_attn_stage.1} parent=1 // pred_fallthru
      _
    // Predicated region
    $region50: #{neighbor_attn_stage.1} parent=1 // pred_check
      _
    $region51: #{neighbor_attn_stage.1} parent=1 // pred_check_branch
      %115 = sbr.rel (0) target = $region53
    $region52: #{neighbor_attn_stage.1} parent=1 // pred_region
      %116 = dma.done [#allocation9], 512
    $region53: #{neighbor_attn_stage.1} parent=1 // pred_fallthru
      _
    // Predicated region
    $region54: #{neighbor_attn_stage.1} parent=1 // pred_check
      _
    $region55: #{neighbor_attn_stage.1} parent=1 // pred_check_branch
      %118 = sbr.rel (0) target = $region57
    $region56: #{neighbor_attn_stage.1} parent=1 // pred_region
      %119 = dma.done [#allocation9], 512
    $region57: #{neighbor_attn_stage.1} parent=1 // pred_fallthru
      _
    // Predicated region
    $region58: #{neighbor_attn_stage.1} parent=1 // pred_check
      _
    $region59: #{neighbor_attn_stage.1} parent=1 // pred_check_branch
      %121 = sbr.rel (0) target = $region61
    $region60: #{neighbor_attn_stage.1} parent=1 // pred_region
      %122 = dma.done [#allocation12], 512
    $region61: #{neighbor_attn_stage.1} parent=1 // pred_fallthru
      _
    // Predicated region
    $region62: #{neighbor_attn_stage.1} parent=1 // pred_check
      _
    $region63: #{neighbor_attn_stage.1} parent=1 // pred_check_branch
      %124 = sbr.rel (0) target = $region65
    $region64: #{neighbor_attn_stage.1} parent=1 // pred_region
      %125 = dma.done [#allocation12], 128
    $region65: #{neighbor_attn_stage.1} parent=1 // pred_fallthru
      _
    %v126 = vld [vmem:[#allocation2] sm:$0xff]
    %v127 = vld [vmem:[#allocation2 + $0x8] sm:$0xff]
    %v128 = vld [vmem:[#allocation2 + $0x10] sm:$0xff]
    %v129 = vld [vmem:[#allocation2 + $0x18] sm:$0xff]
    %v130 = vld [vmem:[#allocation13] sm:$0xff]
    %v131 = vld [vmem:[%s1] sm:$0xff]
    %v132 = vld [vmem:[%s1 + $0x8] sm:$0xff]
    %v133 = vld [vmem:[%s1 + $0x10] sm:$0xff]
    %v134 = vld [vmem:[%s1 + $0x18] sm:$0xff]
    %v135 = vld [vmem:[%s1 + $0x20] sm:$0xff]
    %v136 = vld [vmem:[%s1 + $0x28] sm:$0xff]
    %v137 = vld [vmem:[%s1 + $0x30] sm:$0xff]
    %v138 = vld [vmem:[%s1 + $0x38] sm:$0xff]
    %v139 = vld [vmem:[%s1 + $0x40] sm:$0xff]
    %v140 = vld [vmem:[%s1 + $0x48] sm:$0xff]
    %v141 = vld [vmem:[%s1 + $0x50] sm:$0xff]
    %v142 = vld [vmem:[%s1 + $0x58] sm:$0xff]
    %v143 = vld [vmem:[%s1 + $0x60] sm:$0xff]
    %v144 = vld [vmem:[%s1 + $0x68] sm:$0xff]
    %v145 = vld [vmem:[%s1 + $0x70] sm:$0xff]
    %v146 = vld [vmem:[%s1 + $0x78] sm:$0xff]
    %v147 = vld [vmem:[%s2] sm:$0xff]
    %v148 = vld [vmem:[%s2 + $0x8] sm:$0xff]
    %v149 = vld [vmem:[%s2 + $0x10] sm:$0xff]
    %v150 = vld [vmem:[%s2 + $0x18] sm:$0xff]
    %v151 = vld [vmem:[%s2 + $0x20] sm:$0xff]
    %v152 = vld [vmem:[%s2 + $0x28] sm:$0xff]
    %v153 = vld [vmem:[%s2 + $0x30] sm:$0xff]
    %v154 = vld [vmem:[%s2 + $0x38] sm:$0xff]
    %v155 = vld [vmem:[%s2 + $0x40] sm:$0xff]
    %v156 = vld [vmem:[%s2 + $0x48] sm:$0xff]
    %v157 = vld [vmem:[%s2 + $0x50] sm:$0xff]
    %v158 = vld [vmem:[%s2 + $0x58] sm:$0xff]
    %v159 = vld [vmem:[%s2 + $0x60] sm:$0xff]
    %v160 = vld [vmem:[%s2 + $0x68] sm:$0xff]
    %v161 = vld [vmem:[%s2 + $0x70] sm:$0xff]
    %v162 = vld [vmem:[%s2 + $0x78] sm:$0xff]
    %v163 = vld [vmem:[%s2 + $0x80] sm:$0xff]
    %v164 = vld [vmem:[%s2 + $0x88] sm:$0xff]
    %v165 = vld [vmem:[%s2 + $0x90] sm:$0xff]
    %v166 = vld [vmem:[%s2 + $0x98] sm:$0xff]
    %v167 = vld [vmem:[%s2 + $0xa0] sm:$0xff]
    %v168 = vld [vmem:[%s2 + $0xa8] sm:$0xff]
    %v169 = vld [vmem:[%s2 + $0xb0] sm:$0xff]
    %v170 = vld [vmem:[%s2 + $0xb8] sm:$0xff]
    %v171 = vld [vmem:[%s2 + $0xc0] sm:$0xff]
    %v172 = vld [vmem:[%s2 + $0xc8] sm:$0xff]
    %v173 = vld [vmem:[%s2 + $0xd0] sm:$0xff]
    %v174 = vld [vmem:[%s2 + $0xd8] sm:$0xff]
    %v175 = vld [vmem:[%s2 + $0xe0] sm:$0xff]
    %v176 = vld [vmem:[%s2 + $0xe8] sm:$0xff]
    %v177 = vld [vmem:[%s2 + $0xf0] sm:$0xff]
    %v178 = vld [vmem:[%s2 + $0xf8] sm:$0xff]
    %v179 = vld [vmem:[%s2 + $0x100] sm:$0xff]
    %v180 = vld [vmem:[%s2 + $0x108] sm:$0xff]
    %v181 = vld [vmem:[%s2 + $0x110] sm:$0xff]
    %v182 = vld [vmem:[%s2 + $0x118] sm:$0xff]
    %v183 = vld [vmem:[%s2 + $0x120] sm:$0xff]
    %v184 = vld [vmem:[%s2 + $0x128] sm:$0xff]
    %v185 = vld [vmem:[%s2 + $0x130] sm:$0xff]
    %v186 = vld [vmem:[%s2 + $0x138] sm:$0xff]
    %v187 = vld [vmem:[%s2 + $0x140] sm:$0xff]
    %v188 = vld [vmem:[%s2 + $0x148] sm:$0xff]
    %v189 = vld [vmem:[%s2 + $0x150] sm:$0xff]
    %v190 = vld [vmem:[%s2 + $0x158] sm:$0xff]
    %v191 = vld [vmem:[%s2 + $0x160] sm:$0xff]
    %v192 = vld [vmem:[%s2 + $0x168] sm:$0xff]
    %v193 = vld [vmem:[%s2 + $0x170] sm:$0xff]
    %v194 = vld [vmem:[%s2 + $0x178] sm:$0xff]
    %v195 = vld [vmem:[%s2 + $0x180] sm:$0xff]
    %v196 = vld [vmem:[%s2 + $0x188] sm:$0xff]
    %v197 = vld [vmem:[%s2 + $0x190] sm:$0xff]
    %v198 = vld [vmem:[%s2 + $0x198] sm:$0xff]
    %v199 = vld [vmem:[%s2 + $0x1a0] sm:$0xff]
    %v200 = vld [vmem:[%s2 + $0x1a8] sm:$0xff]
    %v201 = vld [vmem:[%s2 + $0x1b0] sm:$0xff]
    %v202 = vld [vmem:[%s2 + $0x1b8] sm:$0xff]
    %v203 = vld [vmem:[%s2 + $0x1c0] sm:$0xff]
    %v204 = vld [vmem:[%s2 + $0x1c8] sm:$0xff]
    %v205 = vld [vmem:[%s2 + $0x1d0] sm:$0xff]
    %v206 = vld [vmem:[%s2 + $0x1d8] sm:$0xff]
    %v207 = vld [vmem:[%s2 + $0x1e0] sm:$0xff]
    %v208 = vld [vmem:[%s2 + $0x1e8] sm:$0xff]
    %v209 = vld [vmem:[%s2 + $0x1f0] sm:$0xff]
    %v210 = vld [vmem:[%s2 + $0x1f8] sm:$0xff]
    %v211 = vld [vmem:[%s2 + $0x200] sm:$0xff]
    %v212 = vld [vmem:[%s2 + $0x208] sm:$0xff]
    %v213 = vld [vmem:[%s2 + $0x210] sm:$0xff]
    %v214 = vld [vmem:[%s2 + $0x218] sm:$0xff]
    %v215 = vld [vmem:[%s2 + $0x220] sm:$0xff]
    %v216 = vld [vmem:[%s2 + $0x228] sm:$0xff]
    %v217 = vld [vmem:[%s2 + $0x230] sm:$0xff]
    %v218 = vld [vmem:[%s2 + $0x238] sm:$0xff]
    %v219 = vld [vmem:[%s2 + $0x240] sm:$0xff]
    %v220 = vld [vmem:[%s2 + $0x248] sm:$0xff]
    %v221 = vld [vmem:[%s2 + $0x250] sm:$0xff]
    %v222 = vld [vmem:[%s2 + $0x258] sm:$0xff]
    %v223 = vld [vmem:[%s2 + $0x260] sm:$0xff]
    %v224 = vld [vmem:[%s2 + $0x268] sm:$0xff]
    %v225 = vld [vmem:[%s2 + $0x270] sm:$0xff]
    %v226 = vld [vmem:[%s2 + $0x278] sm:$0xff]
    %v227 = vld [vmem:[%s2 + $0x280] sm:$0xff]
    %v228 = vld [vmem:[%s2 + $0x288] sm:$0xff]
    %v229 = vld [vmem:[%s2 + $0x290] sm:$0xff]
    %v230 = vld [vmem:[%s2 + $0x298] sm:$0xff]
    %v231 = vld [vmem:[%s2 + $0x2a0] sm:$0xff]
    %v232 = vld [vmem:[%s2 + $0x2a8] sm:$0xff]
    %v233 = vld [vmem:[%s2 + $0x2b0] sm:$0xff]
    %v234 = vld [vmem:[%s2 + $0x2b8] sm:$0xff]
    %v235 = vld [vmem:[%s2 + $0x2c0] sm:$0xff]
    %v236 = vld [vmem:[%s2 + $0x2c8] sm:$0xff]
    %v237 = vld [vmem:[%s2 + $0x2d0] sm:$0xff]
    %v238 = vld [vmem:[%s2 + $0x2d8] sm:$0xff]
    %v239 = vld [vmem:[%s2 + $0x2e0] sm:$0xff]
    %v240 = vld [vmem:[%s2 + $0x2e8] sm:$0xff]
    %v241 = vld [vmem:[%s2 + $0x2f0] sm:$0xff]
    %v242 = vld [vmem:[%s2 + $0x2f8] sm:$0xff]
    %v243 = vld [vmem:[%s2 + $0x300] sm:$0xff]
    %v244 = vld [vmem:[%s2 + $0x308] sm:$0xff]
    %v245 = vld [vmem:[%s2 + $0x310] sm:$0xff]
    %v246 = vld [vmem:[%s2 + $0x318] sm:$0xff]
    %v247 = vld [vmem:[%s2 + $0x320] sm:$0xff]
    %v248 = vld [vmem:[%s2 + $0x328] sm:$0xff]
    %v249 = vld [vmem:[%s2 + $0x330] sm:$0xff]
    %v250 = vld [vmem:[%s2 + $0x338] sm:$0xff]
    %v251 = vld [vmem:[%s2 + $0x340] sm:$0xff]
    %v252 = vld [vmem:[%s2 + $0x348] sm:$0xff]
    %v253 = vld [vmem:[%s2 + $0x350] sm:$0xff]
    %v254 = vld [vmem:[%s2 + $0x358] sm:$0xff]
    %v255 = vld [vmem:[%s2 + $0x360] sm:$0xff]
    %v256 = vld [vmem:[%s2 + $0x368] sm:$0xff]
    %v257 = vld [vmem:[%s2 + $0x370] sm:$0xff]
    %v258 = vld [vmem:[%s2 + $0x378] sm:$0xff]
    %vm259 = vcmask 523264
    %v261 = vsel %vm259, %v134, 0
    %v264 = vsel %vm259, %v138, 0
    %v267 = vsel %vm259, %v142, 0
    %v270 = vsel %vm259, %v146, 0
    %272 = vmatprep.subr.mxu0 %v178
    %273 = vmatpush1.msra.mxu0 %v177
    %274 = vmatprep.subr.mxu0 %v176
    %275 = vmatpush1.msra.mxu0 %v175
    %276 = vmatprep.subr.mxu0 %v174
    %277 = vmatpush1.msra.mxu0 %v173
    %278 = vmatprep.subr.mxu0 %v172
    %279 = vmatpush1.msra.mxu0 %v171
    %280 = vmatprep.subr.mxu0 %v170
    %281 = vmatpush1.msra.mxu0 %v169
    %282 = vmatprep.subr.mxu0 %v168
    %283 = vmatpush1.msra.mxu0 %v167
    %284 = vmatprep.subr.mxu0 %v166
    %285 = vmatpush1.msra.mxu0 %v165
    %286 = vmatprep.subr.mxu0 %v164
    %287 = vmatpush1.msra.mxu0 %v163
    %288 = vmatprep.subr.mxu0 %v162
    %289 = vmatpush1.msra.mxu0 %v161
    %290 = vmatprep.subr.mxu0 %v160
    %291 = vmatpush1.msra.mxu0 %v159
    %292 = vmatprep.subr.mxu0 %v158
    %293 = vmatpush1.msra.mxu0 %v157
    %294 = vmatprep.subr.mxu0 %v156
    %295 = vmatpush1.msra.mxu0 %v155
    %296 = vmatprep.subr.mxu0 %v154
    %297 = vmatpush1.msra.mxu0 %v153
    %298 = vmatprep.subr.mxu0 %v152
    %299 = vmatpush1.msra.mxu0 %v151
    %300 = vmatprep.subr.mxu0 %v150
    %301 = vmatpush1.msra.mxu0 %v149
    %302 = vmatprep.subr.mxu0 %v148
    %303 = vmatpush1.msra.mxu0 %v147
    %304 = vmatprep.subr.mxu0 %v210
    %305 = vmatpush2.msra.mxu0 %v209
    %306 = vmatprep.subr.mxu0 %v208
    %307 = vmatpush2.msra.mxu0 %v207
    %308 = vmatprep.subr.mxu0 %v206
    %309 = vmatpush2.msra.mxu0 %v205
    %310 = vmatprep.subr.mxu0 %v204
    %311 = vmatpush2.msra.mxu0 %v203
    %312 = vmatprep.subr.mxu0 %v202
    %313 = vmatpush2.msra.mxu0 %v201
    %314 = vmatprep.subr.mxu0 %v200
    %315 = vmatpush2.msra.mxu0 %v199
    %316 = vmatprep.subr.mxu0 %v198
    %317 = vmatpush2.msra.mxu0 %v197
    %318 = vmatprep.subr.mxu0 %v196
    %319 = vmatpush2.msra.mxu0 %v195
    %320 = vmatprep.subr.mxu0 %v194
    %321 = vmatpush2.msra.mxu0 %v193
    %322 = vmatprep.subr.mxu0 %v192
    %323 = vmatpush2.msra.mxu0 %v191
    %324 = vmatprep.subr.mxu0 %v190
    %325 = vmatpush2.msra.mxu0 %v189
    %326 = vmatprep.subr.mxu0 %v188
    %327 = vmatpush2.msra.mxu0 %v187
    %328 = vmatprep.subr.mxu0 %v186
    %329 = vmatpush2.msra.mxu0 %v185
    %330 = vmatprep.subr.mxu0 %v184
    %331 = vmatpush2.msra.mxu0 %v183
    %332 = vmatprep.subr.mxu0 %v182
    %333 = vmatpush2.msra.mxu0 %v181
    %334 = vmatprep.subr.mxu0 %v180
    %335 = vmatpush2.msra.mxu0 %v179
    %336 = vmatprep.mubr.f32.mxu0 %v132
    %337 = vmatmul.mubr.f32.gmra.mxu0 %v131
    %v338 = vpop.f32.mrf.mxu0
    %v339 = vadd.f32 0.0, %v338
    %v340 = vpop.f32.mrf.mxu0
    %v341 = vadd.f32 0.0, %v340
    %342 = vmatprep.mubr.f32.mxu0 %v136
    %343 = vmatmul.mubr.f32.gmra.mxu0 %v135
    %v344 = vpop.f32.mrf.mxu0
    %v345 = vadd.f32 0.0, %v344
    %v346 = vpop.f32.mrf.mxu0
    %v347 = vadd.f32 0.0, %v346
    %348 = vmatprep.mubr.f32.mxu0 %v140
    %349 = vmatmul.mubr.f32.gmra.mxu0 %v139
    %v350 = vpop.f32.mrf.mxu0
    %v351 = vadd.f32 0.0, %v350
    %v352 = vpop.f32.mrf.mxu0
    %v353 = vadd.f32 0.0, %v352
    %354 = vmatprep.mubr.f32.mxu0 %v144
    %355 = vmatmul.mubr.f32.gmra.mxu0 %v143
    %v356 = vpop.f32.mrf.mxu0
    %v357 = vadd.f32 0.0, %v356
    %v358 = vpop.f32.mrf.mxu0
    %v359 = vadd.f32 0.0, %v358
    %360 = vdwg.mxu0
    %361 = vmatprep.subr.mxu0 %v242
    %362 = vmatpush1.msra.mxu0 %v241
    %363 = vmatprep.subr.mxu0 %v240
    %364 = vmatpush1.msra.mxu0 %v239
    %365 = vmatprep.subr.mxu0 %v238
    %366 = vmatpush1.msra.mxu0 %v237
    %367 = vmatprep.subr.mxu0 %v236
    %368 = vmatpush1.msra.mxu0 %v235
    %369 = vmatprep.subr.mxu0 %v234
    %370 = vmatpush1.msra.mxu0 %v233
    %371 = vmatprep.subr.mxu0 %v232
    %372 = vmatpush1.msra.mxu0 %v231
    %373 = vmatprep.subr.mxu0 %v230
    %374 = vmatpush1.msra.mxu0 %v229
    %375 = vmatprep.subr.mxu0 %v228
    %376 = vmatpush1.msra.mxu0 %v227
    %377 = vmatprep.subr.mxu0 %v226
    %378 = vmatpush1.msra.mxu0 %v225
    %379 = vmatprep.subr.mxu0 %v224
    %380 = vmatpush1.msra.mxu0 %v223
    %381 = vmatprep.subr.mxu0 %v222
    %382 = vmatpush1.msra.mxu0 %v221
    %383 = vmatprep.subr.mxu0 %v220
    %384 = vmatpush1.msra.mxu0 %v219
    %385 = vmatprep.subr.mxu0 %v218
    %386 = vmatpush1.msra.mxu0 %v217
    %387 = vmatprep.subr.mxu0 %v216
    %388 = vmatpush1.msra.mxu0 %v215
    %389 = vmatprep.subr.mxu0 %v214
    %390 = vmatpush1.msra.mxu0 %v213
    %391 = vmatprep.subr.mxu0 %v212
    %392 = vmatpush1.msra.mxu0 %v211
    %393 = vmatprep.subr.mxu0 0.0
    %394 = vmatpush2.msra.mxu0 0.0
    %395 = vmatprep.subr.mxu0 0.0
    %396 = vmatpush2.msra.mxu0 0.0
    %397 = vmatprep.subr.mxu0 0.0
    %398 = vmatpush2.msra.mxu0 0.0
    %399 = vmatprep.subr.mxu0 0.0
    %400 = vmatpush2.msra.mxu0 0.0
    %401 = vmatprep.subr.mxu0 0.0
    %402 = vmatpush2.msra.mxu0 0.0
    %403 = vmatprep.subr.mxu0 0.0
    %404 = vmatpush2.msra.mxu0 0.0
    %405 = vmatprep.subr.mxu0 0.0
    %406 = vmatpush2.msra.mxu0 0.0
    %407 = vmatprep.subr.mxu0 0.0
    %408 = vmatpush2.msra.mxu0 0.0
    %409 = vmatprep.subr.mxu0 %v258
    %410 = vmatpush2.msra.mxu0 %v257
    %411 = vmatprep.subr.mxu0 %v256
    %412 = vmatpush2.msra.mxu0 %v255
    %413 = vmatprep.subr.mxu0 %v254
    %414 = vmatpush2.msra.mxu0 %v253
    %415 = vmatprep.subr.mxu0 %v252
    %416 = vmatpush2.msra.mxu0 %v251
    %417 = vmatprep.subr.mxu0 %v250
    %418 = vmatpush2.msra.mxu0 %v249
    %419 = vmatprep.subr.mxu0 %v248
    %420 = vmatpush2.msra.mxu0 %v247
    %421 = vmatprep.subr.mxu0 %v246
    %422 = vmatpush2.msra.mxu0 %v245
    %423 = vmatprep.subr.mxu0 %v244
    %424 = vmatpush2.msra.mxu0 %v243
    %425 = vmatprep.mubr.f32.mxu0 %v261
    %426 = vmatmul.mubr.f32.gmra.mxu0 %v133
    %v427 = vpop.f32.mrf.mxu0
    %v428 = vadd.f32 %v339, %v427
    %v429 = vpop.f32.mrf.mxu0
    %v430 = vadd.f32 %v341, %v429
    %431 = vmatprep.mubr.f32.mxu0 %v264
    %432 = vmatmul.mubr.f32.gmra.mxu0 %v137
    %v433 = vpop.f32.mrf.mxu0
    %v434 = vadd.f32 %v345, %v433
    %v435 = vpop.f32.mrf.mxu0
    %v436 = vadd.f32 %v347, %v435
    %437 = vmatprep.mubr.f32.mxu0 %v267
    %438 = vmatmul.mubr.f32.gmra.mxu0 %v141
    %v439 = vpop.f32.mrf.mxu0
    %v440 = vadd.f32 %v351, %v439
    %v441 = vpop.f32.mrf.mxu0
    %v442 = vadd.f32 %v353, %v441
    %443 = vmatprep.mubr.f32.mxu0 %v270
    %444 = vmatmul.mubr.f32.gmra.mxu0 %v145
    %v445 = vpop.f32.mrf.mxu0
    %v446 = vadd.f32 %v357, %v445
    %v447 = vpop.f32.mrf.mxu0
    %v448 = vadd.f32 %v359, %v447
    %449 = vdwg.mxu0
    %v450 = vlaneseq
    %v451 = vshrl.u32 %v450, 7
    %v452 = vsub.s32 4, %v451
    %v453 = vrot.slane %v130, %v452
    %v454 = vld [vmem:[#allocation5] sm:$0xff]
    %v455 = vld [vmem:[#allocation5 + $0x8] sm:$0xff]
    %v456 = vld [vmem:[#allocation5 + $0x10] sm:$0xff]
    %v457 = vld [vmem:[#allocation5 + $0x18] sm:$0xff]
    %v458 = vld [vmem:[#allocation5 + $0x20] sm:$0xff]
    %v459 = vld [vmem:[#allocation5 + $0x28] sm:$0xff]
    %v460 = vld [vmem:[#allocation5 + $0x30] sm:$0xff]
    %v461 = vld [vmem:[#allocation5 + $0x38] sm:$0xff]
    %v462 = vld [vmem:[#allocation5 + $0x40] sm:$0xff]
    %v463 = vld [vmem:[#allocation5 + $0x48] sm:$0xff]
    %v464 = vld [vmem:[#allocation5 + $0x50] sm:$0xff]
    %v465 = vld [vmem:[#allocation5 + $0x58] sm:$0xff]
    %v466 = vld [vmem:[#allocation5 + $0x60] sm:$0xff]
    %v467 = vld [vmem:[#allocation5 + $0x68] sm:$0xff]
    %v468 = vld [vmem:[#allocation5 + $0x70] sm:$0xff]
    %v469 = vld [vmem:[#allocation5 + $0x78] sm:$0xff]
    %v470 = vld [vmem:[#allocation5 + $0x80] sm:$0xff]
    %v471 = vld [vmem:[#allocation5 + $0x88] sm:$0xff]
    %v472 = vld [vmem:[#allocation5 + $0x90] sm:$0xff]
    %v473 = vld [vmem:[#allocation5 + $0x98] sm:$0xff]
    %v474 = vld [vmem:[#allocation5 + $0xa0] sm:$0xff]
    %v475 = vld [vmem:[#allocation5 + $0xa8] sm:$0xff]
    %v476 = vld [vmem:[#allocation5 + $0xb0] sm:$0xff]
    %v477 = vld [vmem:[#allocation5 + $0xb8] sm:$0xff]
    %v478 = vld [vmem:[#allocation5 + $0xc0] sm:$0xff]
    %v479 = vld [vmem:[#allocation5 + $0xc8] sm:$0xff]
    %v480 = vld [vmem:[#allocation5 + $0xd0] sm:$0xff]
    %v481 = vld [vmem:[#allocation5 + $0xd8] sm:$0xff]
    %v482 = vld [vmem:[#allocation5 + $0xe0] sm:$0xff]
    %v483 = vld [vmem:[#allocation5 + $0xe8] sm:$0xff]
    %v484 = vld [vmem:[#allocation5 + $0xf0] sm:$0xff]
    %v485 = vld [vmem:[#allocation5 + $0xf8] sm:$0xff]
    %486 = vmatprep.subr.mxu0 0.0
    %487 = vmatpush1.msra.mxu0 %v469
    %488 = vmatprep.subr.mxu0 0.0
    %489 = vmatpush1.msra.mxu0 %v468
    %490 = vmatprep.subr.mxu0 0.0
    %491 = vmatpush1.msra.mxu0 %v467
    %492 = vmatprep.subr.mxu0 0.0
    %493 = vmatpush1.msra.mxu0 %v466
    %494 = vmatprep.subr.mxu0 0.0
    %495 = vmatpush1.msra.mxu0 %v465
    %496 = vmatprep.subr.mxu0 0.0
    %497 = vmatpush1.msra.mxu0 %v464
    %498 = vmatprep.subr.mxu0 0.0
    %499 = vmatpush1.msra.mxu0 %v463
    %500 = vmatprep.subr.mxu0 0.0
    %501 = vmatpush1.msra.mxu0 %v462
    %502 = vmatprep.subr.mxu0 0.0
    %503 = vmatpush1.msra.mxu0 %v461
    %504 = vmatprep.subr.mxu0 0.0
    %505 = vmatpush1.msra.mxu0 %v460
    %506 = vmatprep.subr.mxu0 0.0
    %507 = vmatpush1.msra.mxu0 %v459
    %508 = vmatprep.subr.mxu0 0.0
    %509 = vmatpush1.msra.mxu0 %v458
    %510 = vmatprep.subr.mxu0 0.0
    %511 = vmatpush1.msra.mxu0 %v457
    %512 = vmatprep.subr.mxu0 0.0
    %513 = vmatpush1.msra.mxu0 %v456
    %514 = vmatprep.subr.mxu0 0.0
    %515 = vmatpush1.msra.mxu0 %v455
    %516 = vmatprep.subr.mxu0 0.0
    %517 = vmatpush1.msra.mxu0 %v454
    %518 = vmatprep.subr.mxu0 0.0
    %519 = vmatpush2.msra.mxu0 %v485
    %520 = vmatprep.subr.mxu0 0.0
    %521 = vmatpush2.msra.mxu0 %v484
    %522 = vmatprep.subr.mxu0 0.0
    %523 = vmatpush2.msra.mxu0 %v483
    %524 = vmatprep.subr.mxu0 0.0
    %525 = vmatpush2.msra.mxu0 %v482
    %526 = vmatprep.subr.mxu0 0.0
    %527 = vmatpush2.msra.mxu0 %v481
    %528 = vmatprep.subr.mxu0 0.0
    %529 = vmatpush2.msra.mxu0 %v480
    %530 = vmatprep.subr.mxu0 0.0
    %531 = vmatpush2.msra.mxu0 %v479
    %532 = vmatprep.subr.mxu0 0.0
    %533 = vmatpush2.msra.mxu0 %v478
    %534 = vmatprep.subr.mxu0 0.0
    %535 = vmatpush2.msra.mxu0 %v477
    %536 = vmatprep.subr.mxu0 0.0
    %537 = vmatpush2.msra.mxu0 %v476
    %538 = vmatprep.subr.mxu0 0.0
    %539 = vmatpush2.msra.mxu0 %v475
    %540 = vmatprep.subr.mxu0 0.0
    %541 = vmatpush2.msra.mxu0 %v474
    %542 = vmatprep.subr.mxu0 0.0
    %543 = vmatpush2.msra.mxu0 %v473
    %544 = vmatprep.subr.mxu0 0.0
    %545 = vmatpush2.msra.mxu0 %v472
    %546 = vmatprep.subr.mxu0 0.0
    %547 = vmatpush2.msra.mxu0 %v471
    %548 = vmatprep.subr.mxu0 0.0
    %549 = vmatpush2.msra.mxu0 %v470
    %550 = vmatprep.mubr.f32.mxu0 0.0
    %551 = vmatmul.mubr.f32.gmra.mxu0 0.0
    %v552 = vpop.f32.mrf.mxu0
    %v553 = vadd.f32 0.0, %v552
    %v554 = vpop.f32.mrf.mxu0
    %555 = vmatprep.mubr.f32.mxu0 %v430
    %556 = vmatmul.mubr.f32.gmra.mxu0 %v428
    %v557 = vpop.f32.mrf.mxu0
    %v558 = vadd.f32 0.0, %v557
    %v559 = vpop.f32.mrf.mxu0
    %560 = vmatprep.mubr.f32.mxu0 %v436
    %561 = vmatmul.mubr.f32.gmra.mxu0 %v434
    %v562 = vpop.f32.mrf.mxu0
    %v563 = vadd.f32 0.0, %v562
    %v564 = vpop.f32.mrf.mxu0
    %565 = vmatprep.mubr.f32.mxu0 0.0
    %566 = vmatmul.mubr.f32.gmra.mxu0 0.0
    %v567 = vpop.f32.mrf.mxu0
    %v568 = vpop.f32.mrf.mxu0
    %569 = vmatprep.mubr.f32.mxu0 0.0
    %570 = vmatmul.mubr.f32.gmra.mxu0 0.0
    %v571 = vpop.f32.mrf.mxu0
    %v572 = vadd.f32 0.0, %v571
    %v573 = vpop.f32.mrf.mxu0
    %574 = vmatprep.mubr.f32.mxu0 %v442
    %575 = vmatmul.mubr.f32.gmra.mxu0 %v440
    %v576 = vpop.f32.mrf.mxu0
    %v577 = vadd.f32 0.0, %v576
    %v578 = vpop.f32.mrf.mxu0
    %579 = vmatprep.mubr.f32.mxu0 %v448
    %580 = vmatmul.mubr.f32.gmra.mxu0 %v446
    %v581 = vpop.f32.mrf.mxu0
    %v582 = vadd.f32 0.0, %v581
    %v583 = vpop.f32.mrf.mxu0
    %584 = vmatprep.mubr.f32.mxu0 0.0
    %585 = vmatmul.mubr.f32.gmra.mxu0 0.0
    %v586 = vpop.f32.mrf.mxu0
    %v587 = vpop.f32.mrf.mxu0
    %588 = vdwg.mxu0
    %v589 = vadd.f32 %v453, %v553
    %v590 = vadd.f32 %v453, %v558
    %v591 = vadd.f32 %v453, %v572
    %v592 = vadd.f32 %v453, %v577
    %vm596 = vcmask 1046528
    %v597 = vrot.slane %v553, 1
    %v598 = vrot.slane %v558, 1
    %v599 = vsel %vm596, %v597, %v598
    %v600 = vrot.slane %v563, 1
    %v601 = vsel %vm596, %v598, %v600
    %602 = vrot.lane.b32.xlu0 %v599, 64
    %v603 = vpop.permute.xlu0 %602
    %604 = vrot.lane.b32.xlu0 %v601, 64
    %v605 = vpop.permute.xlu0 %604
    %v608 = vadd.f32 %v589, %v603
    %v609 = vadd.f32 %v590, %v605
    %v613 = vrot.slane %v572, 1
    %v614 = vrot.slane %v577, 1
    %v615 = vsel %vm596, %v613, %v614
    %v616 = vrot.slane %v582, 1
    %v617 = vsel %vm596, %v614, %v616
    %618 = vrot.lane.b32.xlu0 %v615, 64
    %v619 = vpop.permute.xlu0 %618
    %620 = vrot.lane.b32.xlu0 %v617, 64
    %v621 = vpop.permute.xlu0 %620
    %v624 = vadd.f32 %v591, %v619
    %v625 = vadd.f32 %v592, %v621
    %s626 = scalar_lea.vmem [#allocation5], 256
    %v627 = vld [vmem:[%s626] sm:$0xff]
    %v628 = vld [vmem:[%s626 + $0x8] sm:$0xff]
    %v629 = vld [vmem:[%s626 + $0x10] sm:$0xff]
    %v630 = vld [vmem:[%s626 + $0x18] sm:$0xff]
    %v631 = vld [vmem:[%s626 + $0x20] sm:$0xff]
    %v632 = vld [vmem:[%s626 + $0x28] sm:$0xff]
    %v633 = vld [vmem:[%s626 + $0x30] sm:$0xff]
    %v634 = vld [vmem:[%s626 + $0x38] sm:$0xff]
    %v635 = vld [vmem:[%s626 + $0x40] sm:$0xff]
    %v636 = vld [vmem:[%s626 + $0x48] sm:$0xff]
    %v637 = vld [vmem:[%s626 + $0x50] sm:$0xff]
    %v638 = vld [vmem:[%s626 + $0x58] sm:$0xff]
    %v639 = vld [vmem:[%s626 + $0x60] sm:$0xff]
    %v640 = vld [vmem:[%s626 + $0x68] sm:$0xff]
    %v641 = vld [vmem:[%s626 + $0x70] sm:$0xff]
    %v642 = vld [vmem:[%s626 + $0x78] sm:$0xff]
    %v643 = vld [vmem:[%s626 + $0x80] sm:$0xff]
    %v644 = vld [vmem:[%s626 + $0x88] sm:$0xff]
    %v645 = vld [vmem:[%s626 + $0x90] sm:$0xff]
    %v646 = vld [vmem:[%s626 + $0x98] sm:$0xff]
    %v647 = vld [vmem:[%s626 + $0xa0] sm:$0xff]
    %v648 = vld [vmem:[%s626 + $0xa8] sm:$0xff]
    %v649 = vld [vmem:[%s626 + $0xb0] sm:$0xff]
    %v650 = vld [vmem:[%s626 + $0xb8] sm:$0xff]
    %v651 = vld [vmem:[%s626 + $0xc0] sm:$0xff]
    %v652 = vld [vmem:[%s626 + $0xc8] sm:$0xff]
    %v653 = vld [vmem:[%s626 + $0xd0] sm:$0xff]
    %v654 = vld [vmem:[%s626 + $0xd8] sm:$0xff]
    %v655 = vld [vmem:[%s626 + $0xe0] sm:$0xff]
    %v656 = vld [vmem:[%s626 + $0xe8] sm:$0xff]
    %v657 = vld [vmem:[%s626 + $0xf0] sm:$0xff]
    %v658 = vld [vmem:[%s626 + $0xf8] sm:$0xff]
    %659 = vmatprep.subr.mxu0 0.0
    %660 = vmatpush1.msra.mxu0 %v642
    %661 = vmatprep.subr.mxu0 0.0
    %662 = vmatpush1.msra.mxu0 %v641
    %663 = vmatprep.subr.mxu0 0.0
    %664 = vmatpush1.msra.mxu0 %v640
    %665 = vmatprep.subr.mxu0 0.0
    %666 = vmatpush1.msra.mxu0 %v639
    %667 = vmatprep.subr.mxu0 0.0
    %668 = vmatpush1.msra.mxu0 %v638
    %669 = vmatprep.subr.mxu0 0.0
    %670 = vmatpush1.msra.mxu0 %v637
    %671 = vmatprep.subr.mxu0 0.0
    %672 = vmatpush1.msra.mxu0 %v636
    %673 = vmatprep.subr.mxu0 0.0
    %674 = vmatpush1.msra.mxu0 %v635
    %675 = vmatprep.subr.mxu0 0.0
    %676 = vmatpush1.msra.mxu0 %v634
    %677 = vmatprep.subr.mxu0 0.0
    %678 = vmatpush1.msra.mxu0 %v633
    %679 = vmatprep.subr.mxu0 0.0
    %680 = vmatpush1.msra.mxu0 %v632
    %681 = vmatprep.subr.mxu0 0.0
    %682 = vmatpush1.msra.mxu0 %v631
    %683 = vmatprep.subr.mxu0 0.0
    %684 = vmatpush1.msra.mxu0 %v630
    %685 = vmatprep.subr.mxu0 0.0
    %686 = vmatpush1.msra.mxu0 %v629
    %687 = vmatprep.subr.mxu0 0.0
    %688 = vmatpush1.msra.mxu0 %v628
    %689 = vmatprep.subr.mxu0 0.0
    %690 = vmatpush1.msra.mxu0 %v627
    %691 = vmatprep.subr.mxu0 0.0
    %692 = vmatpush2.msra.mxu0 %v658
    %693 = vmatprep.subr.mxu0 0.0
    %694 = vmatpush2.msra.mxu0 %v657
    %695 = vmatprep.subr.mxu0 0.0
    %696 = vmatpush2.msra.mxu0 %v656
    %697 = vmatprep.subr.mxu0 0.0
    %698 = vmatpush2.msra.mxu0 %v655
    %699 = vmatprep.subr.mxu0 0.0
    %700 = vmatpush2.msra.mxu0 %v654
    %701 = vmatprep.subr.mxu0 0.0
    %702 = vmatpush2.msra.mxu0 %v653
    %703 = vmatprep.subr.mxu0 0.0
    %704 = vmatpush2.msra.mxu0 %v652
    %705 = vmatprep.subr.mxu0 0.0
    %706 = vmatpush2.msra.mxu0 %v651
    %707 = vmatprep.subr.mxu0 0.0
    %708 = vmatpush2.msra.mxu0 %v650
    %709 = vmatprep.subr.mxu0 0.0
    %710 = vmatpush2.msra.mxu0 %v649
    %711 = vmatprep.subr.mxu0 0.0
    %712 = vmatpush2.msra.mxu0 %v648
    %713 = vmatprep.subr.mxu0 0.0
    %714 = vmatpush2.msra.mxu0 %v647
    %715 = vmatprep.subr.mxu0 0.0
    %716 = vmatpush2.msra.mxu0 %v646
    %717 = vmatprep.subr.mxu0 0.0
    %718 = vmatpush2.msra.mxu0 %v645
    %719 = vmatprep.subr.mxu0 0.0
    %720 = vmatpush2.msra.mxu0 %v644
    %721 = vmatprep.subr.mxu0 0.0
    %722 = vmatpush2.msra.mxu0 %v643
    %723 = vmatprep.mubr.f32.mxu0 0.0
    %724 = vmatmul.mubr.f32.gmra.mxu0 0.0
    %v725 = vpop.f32.mrf.mxu0
    %v726 = vadd.f32 0.0, %v725
    %v727 = vpop.f32.mrf.mxu0
    %728 = vmatprep.mubr.f32.mxu0 %v430
    %729 = vmatmul.mubr.f32.gmra.mxu0 %v428
    %v730 = vpop.f32.mrf.mxu0
    %v731 = vadd.f32 0.0, %v730
    %v732 = vpop.f32.mrf.mxu0
    %733 = vmatprep.mubr.f32.mxu0 %v436
    %734 = vmatmul.mubr.f32.gmra.mxu0 %v434
    %v735 = vpop.f32.mrf.mxu0
    %v736 = vadd.f32 0.0, %v735
    %v737 = vpop.f32.mrf.mxu0
    %738 = vmatprep.mubr.f32.mxu0 0.0
    %739 = vmatmul.mubr.f32.gmra.mxu0 0.0
    %v740 = vpop.f32.mrf.mxu0
    %v741 = vpop.f32.mrf.mxu0
    %742 = vmatprep.mubr.f32.mxu0 0.0
    %743 = vmatmul.mubr.f32.gmra.mxu0 0.0
    %v744 = vpop.f32.mrf.mxu0
    %v745 = vadd.f32 0.0, %v744
    %v746 = vpop.f32.mrf.mxu0
    %747 = vmatprep.mubr.f32.mxu0 %v442
    %748 = vmatmul.mubr.f32.gmra.mxu0 %v440
    %v749 = vpop.f32.mrf.mxu0
    %v750 = vadd.f32 0.0, %v749
    %v751 = vpop.f32.mrf.mxu0
    %752 = vmatprep.mubr.f32.mxu0 %v448
    %753 = vmatmul.mubr.f32.gmra.mxu0 %v446
    %v754 = vpop.f32.mrf.mxu0
    %v755 = vadd.f32 0.0, %v754
    %v756 = vpop.f32.mrf.mxu0
    %757 = vmatprep.mubr.f32.mxu0 0.0
    %758 = vmatmul.mubr.f32.gmra.mxu0 0.0
    %v759 = vpop.f32.mrf.mxu0
    %v760 = vpop.f32.mrf.mxu0
    %761 = vdwg.mxu0
    %vm765 = vcmask 1045504
    %v766 = vrot.slane %v726, 2
    %v767 = vrot.slane %v731, 2
    %v768 = vsel %vm765, %v766, %v767
    %v769 = vrot.slane %v736, 2
    %v770 = vsel %vm765, %v767, %v769
    %v773 = vadd.f32 %v608, %v768
    %v774 = vadd.f32 %v609, %v770
    %v778 = vrot.slane %v745, 2
    %v779 = vrot.slane %v750, 2
    %v780 = vsel %vm765, %v778, %v779
    %v781 = vrot.slane %v755, 2
    %v782 = vsel %vm765, %v779, %v781
    %v785 = vadd.f32 %v624, %v780
    %v786 = vadd.f32 %v625, %v782
    %vm787 = vcmask 1044480
    %v788 = vrot.slane %v726, 3
    %v789 = vrot.slane %v731, 3
    %v790 = vsel %vm787, %v788, %v789
    %v791 = vrot.slane %v736, 3
    %v792 = vsel %vm787, %v789, %v791
    %793 = vrot.lane.b32.xlu0 %v790, 64
    %v794 = vpop.permute.xlu0 %793
    %795 = vrot.lane.b32.xlu0 %v792, 64
    %v796 = vpop.permute.xlu0 %795
    %v799 = vadd.f32 %v773, %v794
    %v800 = vadd.f32 %v774, %v796
    %v801 = vrot.slane %v745, 3
    %v802 = vrot.slane %v750, 3
    %v803 = vsel %vm787, %v801, %v802
    %v804 = vrot.slane %v755, 3
    %v805 = vsel %vm787, %v802, %v804
    %806 = vrot.lane.b32.xlu0 %v803, 64
    %v807 = vpop.permute.xlu0 %806
    %808 = vrot.lane.b32.xlu0 %v805, 64
    %v809 = vpop.permute.xlu0 %808
    %v812 = vadd.f32 %v785, %v807
    %v813 = vadd.f32 %v786, %v809
    %s814 = scalar_lea.vmem [#allocation5], 512
    %v815 = vld [vmem:[%s814] sm:$0xff]
    %v816 = vld [vmem:[%s814 + $0x8] sm:$0xff]
    %v817 = vld [vmem:[%s814 + $0x10] sm:$0xff]
    %v818 = vld [vmem:[%s814 + $0x18] sm:$0xff]
    %v819 = vld [vmem:[%s814 + $0x20] sm:$0xff]
    %v820 = vld [vmem:[%s814 + $0x28] sm:$0xff]
    %v821 = vld [vmem:[%s814 + $0x30] sm:$0xff]
    %v822 = vld [vmem:[%s814 + $0x38] sm:$0xff]
    %v823 = vld [vmem:[%s814 + $0x40] sm:$0xff]
    %v824 = vld [vmem:[%s814 + $0x48] sm:$0xff]
    %v825 = vld [vmem:[%s814 + $0x50] sm:$0xff]
    %v826 = vld [vmem:[%s814 + $0x58] sm:$0xff]
    %v827 = vld [vmem:[%s814 + $0x60] sm:$0xff]
    %v828 = vld [vmem:[%s814 + $0x68] sm:$0xff]
    %v829 = vld [vmem:[%s814 + $0x70] sm:$0xff]
    %v830 = vld [vmem:[%s814 + $0x78] sm:$0xff]
    %v831 = vld [vmem:[%s814 + $0x80] sm:$0xff]
    %v832 = vld [vmem:[%s814 + $0x88] sm:$0xff]
    %v833 = vld [vmem:[%s814 + $0x90] sm:$0xff]
    %v834 = vld [vmem:[%s814 + $0x98] sm:$0xff]
    %v835 = vld [vmem:[%s814 + $0xa0] sm:$0xff]
    %v836 = vld [vmem:[%s814 + $0xa8] sm:$0xff]
    %v837 = vld [vmem:[%s814 + $0xb0] sm:$0xff]
    %v838 = vld [vmem:[%s814 + $0xb8] sm:$0xff]
    %v839 = vld [vmem:[%s814 + $0xc0] sm:$0xff]
    %v840 = vld [vmem:[%s814 + $0xc8] sm:$0xff]
    %v841 = vld [vmem:[%s814 + $0xd0] sm:$0xff]
    %v842 = vld [vmem:[%s814 + $0xd8] sm:$0xff]
    %v843 = vld [vmem:[%s814 + $0xe0] sm:$0xff]
    %v844 = vld [vmem:[%s814 + $0xe8] sm:$0xff]
    %v845 = vld [vmem:[%s814 + $0xf0] sm:$0xff]
    %v846 = vld [vmem:[%s814 + $0xf8] sm:$0xff]
    %847 = vmatprep.subr.mxu0 0.0
    %848 = vmatpush1.msra.mxu0 %v830
    %849 = vmatprep.subr.mxu0 0.0
    %850 = vmatpush1.msra.mxu0 %v829
    %851 = vmatprep.subr.mxu0 0.0
    %852 = vmatpush1.msra.mxu0 %v828
    %853 = vmatprep.subr.mxu0 0.0
    %854 = vmatpush1.msra.mxu0 %v827
    %855 = vmatprep.subr.mxu0 0.0
    %856 = vmatpush1.msra.mxu0 %v826
    %857 = vmatprep.subr.mxu0 0.0
    %858 = vmatpush1.msra.mxu0 %v825
    %859 = vmatprep.subr.mxu0 0.0
    %860 = vmatpush1.msra.mxu0 %v824
    %861 = vmatprep.subr.mxu0 0.0
    %862 = vmatpush1.msra.mxu0 %v823
    %863 = vmatprep.subr.mxu0 0.0
    %864 = vmatpush1.msra.mxu0 %v822
    %865 = vmatprep.subr.mxu0 0.0
    %866 = vmatpush1.msra.mxu0 %v821
    %867 = vmatprep.subr.mxu0 0.0
    %868 = vmatpush1.msra.mxu0 %v820
    %869 = vmatprep.subr.mxu0 0.0
    %870 = vmatpush1.msra.mxu0 %v819
    %871 = vmatprep.subr.mxu0 0.0
    %872 = vmatpush1.msra.mxu0 %v818
    %873 = vmatprep.subr.mxu0 0.0
    %874 = vmatpush1.msra.mxu0 %v817
    %875 = vmatprep.subr.mxu0 0.0
    %876 = vmatpush1.msra.mxu0 %v816
    %877 = vmatprep.subr.mxu0 0.0
    %878 = vmatpush1.msra.mxu0 %v815
    %879 = vmatprep.subr.mxu0 0.0
    %880 = vmatpush2.msra.mxu0 %v846
    %881 = vmatprep.subr.mxu0 0.0
    %882 = vmatpush2.msra.mxu0 %v845
    %883 = vmatprep.subr.mxu0 0.0
    %884 = vmatpush2.msra.mxu0 %v844
    %885 = vmatprep.subr.mxu0 0.0
    %886 = vmatpush2.msra.mxu0 %v843
    %887 = vmatprep.subr.mxu0 0.0
    %888 = vmatpush2.msra.mxu0 %v842
    %889 = vmatprep.subr.mxu0 0.0
    %890 = vmatpush2.msra.mxu0 %v841
    %891 = vmatprep.subr.mxu0 0.0
    %892 = vmatpush2.msra.mxu0 %v840
    %893 = vmatprep.subr.mxu0 0.0
    %894 = vmatpush2.msra.mxu0 %v839
    %895 = vmatprep.subr.mxu0 0.0
    %896 = vmatpush2.msra.mxu0 %v838
    %897 = vmatprep.subr.mxu0 0.0
    %898 = vmatpush2.msra.mxu0 %v837
    %899 = vmatprep.subr.mxu0 0.0
    %900 = vmatpush2.msra.mxu0 %v836
    %901 = vmatprep.subr.mxu0 0.0
    %902 = vmatpush2.msra.mxu0 %v835
    %903 = vmatprep.subr.mxu0 0.0
    %904 = vmatpush2.msra.mxu0 %v834
    %905 = vmatprep.subr.mxu0 0.0
    %906 = vmatpush2.msra.mxu0 %v833
    %907 = vmatprep.subr.mxu0 0.0
    %908 = vmatpush2.msra.mxu0 %v832
    %909 = vmatprep.subr.mxu0 0.0
    %910 = vmatpush2.msra.mxu0 %v831
    %911 = vmatprep.mubr.f32.mxu0 0.0
    %912 = vmatmul.mubr.f32.gmra.mxu0 0.0
    %v913 = vpop.f32.mrf.mxu0
    %v914 = vadd.f32 0.0, %v913
    %v915 = vpop.f32.mrf.mxu0
    %916 = vmatprep.mubr.f32.mxu0 %v430
    %917 = vmatmul.mubr.f32.gmra.mxu0 %v428
    %v918 = vpop.f32.mrf.mxu0
    %v919 = vadd.f32 0.0, %v918
    %v920 = vpop.f32.mrf.mxu0
    %921 = vmatprep.mubr.f32.mxu0 %v436
    %922 = vmatmul.mubr.f32.gmra.mxu0 %v434
    %v923 = vpop.f32.mrf.mxu0
    %v924 = vadd.f32 0.0, %v923
    %v925 = vpop.f32.mrf.mxu0
    %926 = vmatprep.mubr.f32.mxu0 0.0
    %927 = vmatmul.mubr.f32.gmra.mxu0 0.0
    %v928 = vpop.f32.mrf.mxu0
    %v929 = vpop.f32.mrf.mxu0
    %930 = vmatprep.mubr.f32.mxu0 0.0
    %931 = vmatmul.mubr.f32.gmra.mxu0 0.0
    %v932 = vpop.f32.mrf.mxu0
    %v933 = vadd.f32 0.0, %v932
    %v934 = vpop.f32.mrf.mxu0
    %935 = vmatprep.mubr.f32.mxu0 %v442
    %936 = vmatmul.mubr.f32.gmra.mxu0 %v440
    %v937 = vpop.f32.mrf.mxu0
    %v938 = vadd.f32 0.0, %v937
    %v939 = vpop.f32.mrf.mxu0
    %940 = vmatprep.mubr.f32.mxu0 %v448
    %941 = vmatmul.mubr.f32.gmra.mxu0 %v446
    %v942 = vpop.f32.mrf.mxu0
    %v943 = vadd.f32 0.0, %v942
    %v944 = vpop.f32.mrf.mxu0
    %945 = vmatprep.mubr.f32.mxu0 0.0
    %946 = vmatmul.mubr.f32.gmra.mxu0 0.0
    %v947 = vpop.f32.mrf.mxu0
    %v948 = vpop.f32.mrf.mxu0
    %949 = vdwg.mxu0
    %vm953 = vcmask 1043456
    %v954 = vrot.slane %v914, 4
    %v955 = vrot.slane %v919, 4
    %v956 = vsel %vm953, %v954, %v955
    %v957 = vrot.slane %v924, 4
    %v958 = vsel %vm953, %v955, %v957
    %v961 = vadd.f32 %v799, %v956
    %v962 = vadd.f32 %v800, %v958
    %v966 = vrot.slane %v933, 4
    %v967 = vrot.slane %v938, 4
    %v968 = vsel %vm953, %v966, %v967
    %v969 = vrot.slane %v943, 4
    %v970 = vsel %vm953, %v967, %v969
    %v973 = vadd.f32 %v812, %v968
    %v974 = vadd.f32 %v813, %v970
    %vm975 = vcmask 1042432
    %v976 = vrot.slane %v914, 5
    %v977 = vrot.slane %v919, 5
    %v978 = vsel %vm975, %v976, %v977
    %v979 = vrot.slane %v924, 5
    %v980 = vsel %vm975, %v977, %v979
    %981 = vrot.lane.b32.xlu0 %v978, 64
    %v982 = vpop.permute.xlu0 %981
    %983 = vrot.lane.b32.xlu0 %v980, 64
    %v984 = vpop.permute.xlu0 %983
    %v987 = vadd.f32 %v961, %v982
    %v988 = vadd.f32 %v962, %v984
    %v989 = vrot.slane %v933, 5
    %v990 = vrot.slane %v938, 5
    %v991 = vsel %vm975, %v989, %v990
    %v992 = vrot.slane %v943, 5
    %v993 = vsel %vm975, %v990, %v992
    %994 = vrot.lane.b32.xlu0 %v991, 64
    %v995 = vpop.permute.xlu0 %994
    %996 = vrot.lane.b32.xlu0 %v993, 64
    %v997 = vpop.permute.xlu0 %996
    %v1000 = vadd.f32 %v973, %v995
    %v1001 = vadd.f32 %v974, %v997
    %s1002 = scalar_lea.vmem [#allocation5], 768
    %v1003 = vld [vmem:[%s1002] sm:$0xff]
    %v1004 = vld [vmem:[%s1002 + $0x8] sm:$0xff]
    %v1005 = vld [vmem:[%s1002 + $0x10] sm:$0xff]
    %v1006 = vld [vmem:[%s1002 + $0x18] sm:$0xff]
    %v1007 = vld [vmem:[%s1002 + $0x20] sm:$0xff]
    %v1008 = vld [vmem:[%s1002 + $0x28] sm:$0xff]
    %v1009 = vld [vmem:[%s1002 + $0x30] sm:$0xff]
    %v1010 = vld [vmem:[%s1002 + $0x38] sm:$0xff]
    %v1011 = vld [vmem:[%s1002 + $0x40] sm:$0xff]
    %v1012 = vld [vmem:[%s1002 + $0x48] sm:$0xff]
    %v1013 = vld [vmem:[%s1002 + $0x50] sm:$0xff]
    %v1014 = vld [vmem:[%s1002 + $0x58] sm:$0xff]
    %v1015 = vld [vmem:[%s1002 + $0x60] sm:$0xff]
    %v1016 = vld [vmem:[%s1002 + $0x68] sm:$0xff]
    %v1017 = vld [vmem:[%s1002 + $0x70] sm:$0xff]
    %v1018 = vld [vmem:[%s1002 + $0x78] sm:$0xff]
    %v1019 = vld [vmem:[%s1002 + $0x80] sm:$0xff]
    %v1020 = vld [vmem:[%s1002 + $0x88] sm:$0xff]
    %v1021 = vld [vmem:[%s1002 + $0x90] sm:$0xff]
    %v1022 = vld [vmem:[%s1002 + $0x98] sm:$0xff]
    %v1023 = vld [vmem:[%s1002 + $0xa0] sm:$0xff]
    %v1024 = vld [vmem:[%s1002 + $0xa8] sm:$0xff]
    %v1025 = vld [vmem:[%s1002 + $0xb0] sm:$0xff]
    %v1026 = vld [vmem:[%s1002 + $0xb8] sm:$0xff]
    %v1027 = vld [vmem:[%s1002 + $0xc0] sm:$0xff]
    %v1028 = vld [vmem:[%s1002 + $0xc8] sm:$0xff]
    %v1029 = vld [vmem:[%s1002 + $0xd0] sm:$0xff]
    %v1030 = vld [vmem:[%s1002 + $0xd8] sm:$0xff]
    %v1031 = vld [vmem:[%s1002 + $0xe0] sm:$0xff]
    %v1032 = vld [vmem:[%s1002 + $0xe8] sm:$0xff]
    %v1033 = vld [vmem:[%s1002 + $0xf0] sm:$0xff]
    %v1034 = vld [vmem:[%s1002 + $0xf8] sm:$0xff]
    %1035 = vmatprep.subr.mxu0 0.0
    %1036 = vmatpush1.msra.mxu0 %v1018
    %1037 = vmatprep.subr.mxu0 0.0
    %1038 = vmatpush1.msra.mxu0 %v1017
    %1039 = vmatprep.subr.mxu0 0.0
    %1040 = vmatpush1.msra.mxu0 %v1016
    %1041 = vmatprep.subr.mxu0 0.0
    %1042 = vmatpush1.msra.mxu0 %v1015
    %1043 = vmatprep.subr.mxu0 0.0
    %1044 = vmatpush1.msra.mxu0 %v1014
    %1045 = vmatprep.subr.mxu0 0.0
    %1046 = vmatpush1.msra.mxu0 %v1013
    %1047 = vmatprep.subr.mxu0 0.0
    %1048 = vmatpush1.msra.mxu0 %v1012
    %1049 = vmatprep.subr.mxu0 0.0
    %1050 = vmatpush1.msra.mxu0 %v1011
    %1051 = vmatprep.subr.mxu0 0.0
    %1052 = vmatpush1.msra.mxu0 %v1010
    %1053 = vmatprep.subr.mxu0 0.0
    %1054 = vmatpush1.msra.mxu0 %v1009
    %1055 = vmatprep.subr.mxu0 0.0
    %1056 = vmatpush1.msra.mxu0 %v1008
    %1057 = vmatprep.subr.mxu0 0.0
    %1058 = vmatpush1.msra.mxu0 %v1007
    %1059 = vmatprep.subr.mxu0 0.0
    %1060 = vmatpush1.msra.mxu0 %v1006
    %1061 = vmatprep.subr.mxu0 0.0
    %1062 = vmatpush1.msra.mxu0 %v1005
    %1063 = vmatprep.subr.mxu0 0.0
    %1064 = vmatpush1.msra.mxu0 %v1004
    %1065 = vmatprep.subr.mxu0 0.0
    %1066 = vmatpush1.msra.mxu0 %v1003
    %1067 = vmatprep.subr.mxu0 0.0
    %1068 = vmatpush2.msra.mxu0 %v1034
    %1069 = vmatprep.subr.mxu0 0.0
    %1070 = vmatpush2.msra.mxu0 %v1033
    %1071 = vmatprep.subr.mxu0 0.0
    %1072 = vmatpush2.msra.mxu0 %v1032
    %1073 = vmatprep.subr.mxu0 0.0
    %1074 = vmatpush2.msra.mxu0 %v1031
    %1075 = vmatprep.subr.mxu0 0.0
    %1076 = vmatpush2.msra.mxu0 %v1030
    %1077 = vmatprep.subr.mxu0 0.0
    %1078 = vmatpush2.msra.mxu0 %v1029
    %1079 = vmatprep.subr.mxu0 0.0
    %1080 = vmatpush2.msra.mxu0 %v1028
    %1081 = vmatprep.subr.mxu0 0.0
    %1082 = vmatpush2.msra.mxu0 %v1027
    %1083 = vmatprep.subr.mxu0 0.0
    %1084 = vmatpush2.msra.mxu0 %v1026
    %1085 = vmatprep.subr.mxu0 0.0
    %1086 = vmatpush2.msra.mxu0 %v1025
    %1087 = vmatprep.subr.mxu0 0.0
    %1088 = vmatpush2.msra.mxu0 %v1024
    %1089 = vmatprep.subr.mxu0 0.0
    %1090 = vmatpush2.msra.mxu0 %v1023
    %1091 = vmatprep.subr.mxu0 0.0
    %1092 = vmatpush2.msra.mxu0 %v1022
    %1093 = vmatprep.subr.mxu0 0.0
    %1094 = vmatpush2.msra.mxu0 %v1021
    %1095 = vmatprep.subr.mxu0 0.0
    %1096 = vmatpush2.msra.mxu0 %v1020
    %1097 = vmatprep.subr.mxu0 0.0
    %1098 = vmatpush2.msra.mxu0 %v1019
    %1099 = vmatprep.mubr.f32.mxu0 0.0
    %1100 = vmatmul.mubr.f32.gmra.mxu0 0.0
    %v1101 = vpop.f32.mrf.mxu0
    %v1102 = vadd.f32 0.0, %v1101
    %v1103 = vpop.f32.mrf.mxu0
    %1104 = vmatprep.mubr.f32.mxu0 %v430
    %1105 = vmatmul.mubr.f32.gmra.mxu0 %v428
    %v1106 = vpop.f32.mrf.mxu0
    %v1107 = vadd.f32 0.0, %v1106
    %v1108 = vpop.f32.mrf.mxu0
    %1109 = vmatprep.mubr.f32.mxu0 %v436
    %1110 = vmatmul.mubr.f32.gmra.mxu0 %v434
    %v1111 = vpop.f32.mrf.mxu0
    %v1112 = vadd.f32 0.0, %v1111
    %v1113 = vpop.f32.mrf.mxu0
    %1114 = vmatprep.mubr.f32.mxu0 0.0
    %1115 = vmatmul.mubr.f32.gmra.mxu0 0.0
    %v1116 = vpop.f32.mrf.mxu0
    %v1117 = vpop.f32.mrf.mxu0
    %1118 = vmatprep.mubr.f32.mxu0 0.0
    %1119 = vmatmul.mubr.f32.gmra.mxu0 0.0
    %v1120 = vpop.f32.mrf.mxu0
    %v1121 = vadd.f32 0.0, %v1120
    %v1122 = vpop.f32.mrf.mxu0
    %1123 = vmatprep.mubr.f32.mxu0 %v442
    %1124 = vmatmul.mubr.f32.gmra.mxu0 %v440
    %v1125 = vpop.f32.mrf.mxu0
    %v1126 = vadd.f32 0.0, %v1125
    %v1127 = vpop.f32.mrf.mxu0
    %1128 = vmatprep.mubr.f32.mxu0 %v448
    %1129 = vmatmul.mubr.f32.gmra.mxu0 %v446
    %v1130 = vpop.f32.mrf.mxu0
    %v1131 = vadd.f32 0.0, %v1130
    %v1132 = vpop.f32.mrf.mxu0
    %1133 = vmatprep.mubr.f32.mxu0 0.0
    %1134 = vmatmul.mubr.f32.gmra.mxu0 0.0
    %v1135 = vpop.f32.mrf.mxu0
    %v1136 = vpop.f32.mrf.mxu0
    %1137 = vdwg.mxu0
    %vm1141 = vcmask 1041408
    %v1142 = vrot.slane %v1102, 6
    %v1143 = vrot.slane %v1107, 6
    %v1144 = vsel %vm1141, %v1142, %v1143
    %v1145 = vrot.slane %v1112, 6
    %v1146 = vsel %vm1141, %v1143, %v1145
    %v1149 = vadd.f32 %v987, %v1144
    %v1150 = vadd.f32 %v988, %v1146
    %v1154 = vrot.slane %v1121, 6
    %v1155 = vrot.slane %v1126, 6
    %v1156 = vsel %vm1141, %v1154, %v1155
    %v1157 = vrot.slane %v1131, 6
    %v1158 = vsel %vm1141, %v1155, %v1157
    %v1161 = vadd.f32 %v1000, %v1156
    %v1162 = vadd.f32 %v1001, %v1158
    %vm1163 = vcmask 1040384
    %v1164 = vrot.slane %v1102, 7
    %v1165 = vrot.slane %v1107, 7
    %v1166 = vsel %vm1163, %v1164, %v1165
    %v1167 = vrot.slane %v1112, 7
    %v1168 = vsel %vm1163, %v1165, %v1167
    %1169 = vrot.lane.b32.xlu0 %v1166, 64
    %v1170 = vpop.permute.xlu0 %1169
    %1171 = vrot.lane.b32.xlu0 %v1168, 64
    %v1172 = vpop.permute.xlu0 %1171
    %v1175 = vadd.f32 %v1149, %v1170
    %v1176 = vadd.f32 %v1150, %v1172
    %v1177 = vrot.slane %v1121, 7
    %v1178 = vrot.slane %v1126, 7
    %v1179 = vsel %vm1163, %v1177, %v1178
    %v1180 = vrot.slane %v1131, 7
    %v1181 = vsel %vm1163, %v1178, %v1180
    %1182 = vrot.lane.b32.xlu0 %v1179, 64
    %v1183 = vpop.permute.xlu0 %1182
    %1184 = vrot.lane.b32.xlu0 %v1181, 64
    %v1185 = vpop.permute.xlu0 %1184
    %v1188 = vadd.f32 %v1161, %v1183
    %v1189 = vadd.f32 %v1162, %v1185
    %s1190 = scalar_lea.vmem [#allocation5], 1024
    %v1191 = vld [vmem:[%s1190] sm:$0xff]
    %v1192 = vld [vmem:[%s1190 + $0x8] sm:$0xff]
    %v1193 = vld [vmem:[%s1190 + $0x10] sm:$0xff]
    %v1194 = vld [vmem:[%s1190 + $0x18] sm:$0xff]
    %v1195 = vld [vmem:[%s1190 + $0x20] sm:$0xff]
    %v1196 = vld [vmem:[%s1190 + $0x28] sm:$0xff]
    %v1197 = vld [vmem:[%s1190 + $0x30] sm:$0xff]
    %v1198 = vld [vmem:[%s1190 + $0x38] sm:$0xff]
    %v1199 = vld [vmem:[%s1190 + $0x40] sm:$0xff]
    %v1200 = vld [vmem:[%s1190 + $0x48] sm:$0xff]
    %v1201 = vld [vmem:[%s1190 + $0x50] sm:$0xff]
    %v1202 = vld [vmem:[%s1190 + $0x58] sm:$0xff]
    %v1203 = vld [vmem:[%s1190 + $0x60] sm:$0xff]
    %v1204 = vld [vmem:[%s1190 + $0x68] sm:$0xff]
    %v1205 = vld [vmem:[%s1190 + $0x70] sm:$0xff]
    %v1206 = vld [vmem:[%s1190 + $0x78] sm:$0xff]
    %v1207 = vld [vmem:[%s1190 + $0x80] sm:$0xff]
    %v1208 = vld [vmem:[%s1190 + $0x88] sm:$0xff]
    %v1209 = vld [vmem:[%s1190 + $0x90] sm:$0xff]
    %v1210 = vld [vmem:[%s1190 + $0x98] sm:$0xff]
    %v1211 = vld [vmem:[%s1190 + $0xa0] sm:$0xff]
    %v1212 = vld [vmem:[%s1190 + $0xa8] sm:$0xff]
    %v1213 = vld [vmem:[%s1190 + $0xb0] sm:$0xff]
    %v1214 = vld [vmem:[%s1190 + $0xb8] sm:$0xff]
    %v1215 = vld [vmem:[%s1190 + $0xc0] sm:$0xff]
    %v1216 = vld [vmem:[%s1190 + $0xc8] sm:$0xff]
    %v1217 = vld [vmem:[%s1190 + $0xd0] sm:$0xff]
    %v1218 = vld [vmem:[%s1190 + $0xd8] sm:$0xff]
    %v1219 = vld [vmem:[%s1190 + $0xe0] sm:$0xff]
    %v1220 = vld [vmem:[%s1190 + $0xe8] sm:$0xff]
    %v1221 = vld [vmem:[%s1190 + $0xf0] sm:$0xff]
    %v1222 = vld [vmem:[%s1190 + $0xf8] sm:$0xff]
    %1223 = vmatprep.subr.mxu0 0.0
    %1224 = vmatpush1.msra.mxu0 %v1206
    %1225 = vmatprep.subr.mxu0 0.0
    %1226 = vmatpush1.msra.mxu0 %v1205
    %1227 = vmatprep.subr.mxu0 0.0
    %1228 = vmatpush1.msra.mxu0 %v1204
    %1229 = vmatprep.subr.mxu0 0.0
    %1230 = vmatpush1.msra.mxu0 %v1203
    %1231 = vmatprep.subr.mxu0 0.0
    %1232 = vmatpush1.msra.mxu0 %v1202
    %1233 = vmatprep.subr.mxu0 0.0
    %1234 = vmatpush1.msra.mxu0 %v1201
    %1235 = vmatprep.subr.mxu0 0.0
    %1236 = vmatpush1.msra.mxu0 %v1200
    %1237 = vmatprep.subr.mxu0 0.0
    %1238 = vmatpush1.msra.mxu0 %v1199
    %1239 = vmatprep.subr.mxu0 0.0
    %1240 = vmatpush1.msra.mxu0 %v1198
    %1241 = vmatprep.subr.mxu0 0.0
    %1242 = vmatpush1.msra.mxu0 %v1197
    %1243 = vmatprep.subr.mxu0 0.0
    %1244 = vmatpush1.msra.mxu0 %v1196
    %1245 = vmatprep.subr.mxu0 0.0
    %1246 = vmatpush1.msra.mxu0 %v1195
    %1247 = vmatprep.subr.mxu0 0.0
    %1248 = vmatpush1.msra.mxu0 %v1194
    %1249 = vmatprep.subr.mxu0 0.0
    %1250 = vmatpush1.msra.mxu0 %v1193
    %1251 = vmatprep.subr.mxu0 0.0
    %1252 = vmatpush1.msra.mxu0 %v1192
    %1253 = vmatprep.subr.mxu0 0.0
    %1254 = vmatpush1.msra.mxu0 %v1191
    %1255 = vmatprep.subr.mxu0 0.0
    %1256 = vmatpush2.msra.mxu0 %v1222
    %1257 = vmatprep.subr.mxu0 0.0
    %1258 = vmatpush2.msra.mxu0 %v1221
    %1259 = vmatprep.subr.mxu0 0.0
    %1260 = vmatpush2.msra.mxu0 %v1220
    %1261 = vmatprep.subr.mxu0 0.0
    %1262 = vmatpush2.msra.mxu0 %v1219
    %1263 = vmatprep.subr.mxu0 0.0
    %1264 = vmatpush2.msra.mxu0 %v1218
    %1265 = vmatprep.subr.mxu0 0.0
    %1266 = vmatpush2.msra.mxu0 %v1217
    %1267 = vmatprep.subr.mxu0 0.0
    %1268 = vmatpush2.msra.mxu0 %v1216
    %1269 = vmatprep.subr.mxu0 0.0
    %1270 = vmatpush2.msra.mxu0 %v1215
    %1271 = vmatprep.subr.mxu0 0.0
    %1272 = vmatpush2.msra.mxu0 %v1214
    %1273 = vmatprep.subr.mxu0 0.0
    %1274 = vmatpush2.msra.mxu0 %v1213
    %1275 = vmatprep.subr.mxu0 0.0
    %1276 = vmatpush2.msra.mxu0 %v1212
    %1277 = vmatprep.subr.mxu0 0.0
    %1278 = vmatpush2.msra.mxu0 %v1211
    %1279 = vmatprep.subr.mxu0 0.0
    %1280 = vmatpush2.msra.mxu0 %v1210
    %1281 = vmatprep.subr.mxu0 0.0
    %1282 = vmatpush2.msra.mxu0 %v1209
    %1283 = vmatprep.subr.mxu0 0.0
    %1284 = vmatpush2.msra.mxu0 %v1208
    %1285 = vmatprep.subr.mxu0 0.0
    %1286 = vmatpush2.msra.mxu0 %v1207
    %1287 = vmatprep.mubr.f32.mxu0 0.0
    %1288 = vmatmul.mubr.f32.gmra.mxu0 0.0
    %v1289 = vpop.f32.mrf.mxu0
    %v1290 = vpop.f32.mrf.mxu0
    %1291 = vmatprep.mubr.f32.mxu0 %v430
    %1292 = vmatmul.mubr.f32.gmra.mxu0 %v428
    %v1293 = vpop.f32.mrf.mxu0
    %v1294 = vadd.f32 0.0, %v1293
    %v1295 = vpop.f32.mrf.mxu0
    %1296 = vmatprep.mubr.f32.mxu0 %v436
    %1297 = vmatmul.mubr.f32.gmra.mxu0 %v434
    %v1298 = vpop.f32.mrf.mxu0
    %v1299 = vadd.f32 0.0, %v1298
    %v1300 = vpop.f32.mrf.mxu0
    %1301 = vmatprep.mubr.f32.mxu0 0.0
    %1302 = vmatmul.mubr.f32.gmra.mxu0 0.0
    %v1303 = vpop.f32.mrf.mxu0
    %v1304 = vadd.f32 0.0, %v1303
    %v1305 = vpop.f32.mrf.mxu0
    %1306 = vmatprep.mubr.f32.mxu0 0.0
    %1307 = vmatmul.mubr.f32.gmra.mxu0 0.0
    %v1308 = vpop.f32.mrf.mxu0
    %v1309 = vpop.f32.mrf.mxu0
    %1310 = vmatprep.mubr.f32.mxu0 %v442
    %1311 = vmatmul.mubr.f32.gmra.mxu0 %v440
    %v1312 = vpop.f32.mrf.mxu0
    %v1313 = vadd.f32 0.0, %v1312
    %v1314 = vpop.f32.mrf.mxu0
    %1315 = vmatprep.mubr.f32.mxu0 %v448
    %1316 = vmatmul.mubr.f32.gmra.mxu0 %v446
    %v1317 = vpop.f32.mrf.mxu0
    %v1318 = vadd.f32 0.0, %v1317
    %v1319 = vpop.f32.mrf.mxu0
    %1320 = vmatprep.mubr.f32.mxu0 0.0
    %1321 = vmatmul.mubr.f32.gmra.mxu0 0.0
    %v1322 = vpop.f32.mrf.mxu0
    %v1323 = vadd.f32 0.0, %v1322
    %v1324 = vpop.f32.mrf.mxu0
    %1325 = vdwg.mxu0
    %v1326 = vadd.f32 %v1175, %v1294
    %v1327 = vadd.f32 %v1176, %v1299
    %v1328 = vadd.f32 %v1188, %v1313
    %v1329 = vadd.f32 %v1189, %v1318
    %v1333 = vrot.slane %v1294, 1
    %v1334 = vrot.slane %v1299, 1
    %v1335 = vsel %vm596, %v1333, %v1334
    %v1336 = vrot.slane %v1304, 1
    %v1337 = vsel %vm596, %v1334, %v1336
    %1338 = vrot.lane.b32.xlu0 %v1335, 64
    %v1339 = vpop.permute.xlu0 %1338
    %1340 = vrot.lane.b32.xlu0 %v1337, 64
    %v1341 = vpop.permute.xlu0 %1340
    %v1344 = vadd.f32 %v1326, %v1339
    %v1345 = vadd.f32 %v1327, %v1341
    %v1349 = vrot.slane %v1313, 1
    %v1350 = vrot.slane %v1318, 1
    %v1351 = vsel %vm596, %v1349, %v1350
    %v1352 = vrot.slane %v1323, 1
    %v1353 = vsel %vm596, %v1350, %v1352
    %1354 = vrot.lane.b32.xlu0 %v1351, 64
    %v1355 = vpop.permute.xlu0 %1354
    %1356 = vrot.lane.b32.xlu0 %v1353, 64
    %v1357 = vpop.permute.xlu0 %1356
    %v1360 = vadd.f32 %v1328, %v1355
    %v1361 = vadd.f32 %v1329, %v1357
    %s1362 = scalar_lea.vmem [#allocation5], 1280
    %v1363 = vld [vmem:[%s1362] sm:$0xff]
    %v1364 = vld [vmem:[%s1362 + $0x8] sm:$0xff]
    %v1365 = vld [vmem:[%s1362 + $0x10] sm:$0xff]
    %v1366 = vld [vmem:[%s1362 + $0x18] sm:$0xff]
    %v1367 = vld [vmem:[%s1362 + $0x20] sm:$0xff]
    %v1368 = vld [vmem:[%s1362 + $0x28] sm:$0xff]
    %v1369 = vld [vmem:[%s1362 + $0x30] sm:$0xff]
    %v1370 = vld [vmem:[%s1362 + $0x38] sm:$0xff]
    %v1371 = vld [vmem:[%s1362 + $0x40] sm:$0xff]
    %v1372 = vld [vmem:[%s1362 + $0x48] sm:$0xff]
    %v1373 = vld [vmem:[%s1362 + $0x50] sm:$0xff]
    %v1374 = vld [vmem:[%s1362 + $0x58] sm:$0xff]
    %v1375 = vld [vmem:[%s1362 + $0x60] sm:$0xff]
    %v1376 = vld [vmem:[%s1362 + $0x68] sm:$0xff]
    %v1377 = vld [vmem:[%s1362 + $0x70] sm:$0xff]
    %v1378 = vld [vmem:[%s1362 + $0x78] sm:$0xff]
    %v1379 = vld [vmem:[%s1362 + $0x80] sm:$0xff]
    %v1380 = vld [vmem:[%s1362 + $0x88] sm:$0xff]
    %v1381 = vld [vmem:[%s1362 + $0x90] sm:$0xff]
    %v1382 = vld [vmem:[%s1362 + $0x98] sm:$0xff]
    %v1383 = vld [vmem:[%s1362 + $0xa0] sm:$0xff]
    %v1384 = vld [vmem:[%s1362 + $0xa8] sm:$0xff]
    %v1385 = vld [vmem:[%s1362 + $0xb0] sm:$0xff]
    %v1386 = vld [vmem:[%s1362 + $0xb8] sm:$0xff]
    %v1387 = vld [vmem:[%s1362 + $0xc0] sm:$0xff]
    %v1388 = vld [vmem:[%s1362 + $0xc8] sm:$0xff]
    %v1389 = vld [vmem:[%s1362 + $0xd0] sm:$0xff]
    %v1390 = vld [vmem:[%s1362 + $0xd8] sm:$0xff]
    %v1391 = vld [vmem:[%s1362 + $0xe0] sm:$0xff]
    %v1392 = vld [vmem:[%s1362 + $0xe8] sm:$0xff]
    %v1393 = vld [vmem:[%s1362 + $0xf0] sm:$0xff]
    %v1394 = vld [vmem:[%s1362 + $0xf8] sm:$0xff]
    %1395 = vmatprep.subr.mxu0 0.0
    %1396 = vmatpush1.msra.mxu0 %v1378
    %1397 = vmatprep.subr.mxu0 0.0
    %1398 = vmatpush1.msra.mxu0 %v1377
    %1399 = vmatprep.subr.mxu0 0.0
    %1400 = vmatpush1.msra.mxu0 %v1376
    %1401 = vmatprep.subr.mxu0 0.0
    %1402 = vmatpush1.msra.mxu0 %v1375
    %1403 = vmatprep.subr.mxu0 0.0
    %1404 = vmatpush1.msra.mxu0 %v1374
    %1405 = vmatprep.subr.mxu0 0.0
    %1406 = vmatpush1.msra.mxu0 %v1373
    %1407 = vmatprep.subr.mxu0 0.0
    %1408 = vmatpush1.msra.mxu0 %v1372
    %1409 = vmatprep.subr.mxu0 0.0
    %1410 = vmatpush1.msra.mxu0 %v1371
    %1411 = vmatprep.subr.mxu0 0.0
    %1412 = vmatpush1.msra.mxu0 %v1370
    %1413 = vmatprep.subr.mxu0 0.0
    %1414 = vmatpush1.msra.mxu0 %v1369
    %1415 = vmatprep.subr.mxu0 0.0
    %1416 = vmatpush1.msra.mxu0 %v1368
    %1417 = vmatprep.subr.mxu0 0.0
    %1418 = vmatpush1.msra.mxu0 %v1367
    %1419 = vmatprep.subr.mxu0 0.0
    %1420 = vmatpush1.msra.mxu0 %v1366
    %1421 = vmatprep.subr.mxu0 0.0
    %1422 = vmatpush1.msra.mxu0 %v1365
    %1423 = vmatprep.subr.mxu0 0.0
    %1424 = vmatpush1.msra.mxu0 %v1364
    %1425 = vmatprep.subr.mxu0 0.0
    %1426 = vmatpush1.msra.mxu0 %v1363
    %1427 = vmatprep.subr.mxu0 0.0
    %1428 = vmatpush2.msra.mxu0 %v1394
    %1429 = vmatprep.subr.mxu0 0.0
    %1430 = vmatpush2.msra.mxu0 %v1393
    %1431 = vmatprep.subr.mxu0 0.0
    %1432 = vmatpush2.msra.mxu0 %v1392
    %1433 = vmatprep.subr.mxu0 0.0
    %1434 = vmatpush2.msra.mxu0 %v1391
    %1435 = vmatprep.subr.mxu0 0.0
    %1436 = vmatpush2.msra.mxu0 %v1390
    %1437 = vmatprep.subr.mxu0 0.0
    %1438 = vmatpush2.msra.mxu0 %v1389
    %1439 = vmatprep.subr.mxu0 0.0
    %1440 = vmatpush2.msra.mxu0 %v1388
    %1441 = vmatprep.subr.mxu0 0.0
    %1442 = vmatpush2.msra.mxu0 %v1387
    %1443 = vmatprep.subr.mxu0 0.0
    %1444 = vmatpush2.msra.mxu0 %v1386
    %1445 = vmatprep.subr.mxu0 0.0
    %1446 = vmatpush2.msra.mxu0 %v1385
    %1447 = vmatprep.subr.mxu0 0.0
    %1448 = vmatpush2.msra.mxu0 %v1384
    %1449 = vmatprep.subr.mxu0 0.0
    %1450 = vmatpush2.msra.mxu0 %v1383
    %1451 = vmatprep.subr.mxu0 0.0
    %1452 = vmatpush2.msra.mxu0 %v1382
    %1453 = vmatprep.subr.mxu0 0.0
    %1454 = vmatpush2.msra.mxu0 %v1381
    %1455 = vmatprep.subr.mxu0 0.0
    %1456 = vmatpush2.msra.mxu0 %v1380
    %1457 = vmatprep.subr.mxu0 0.0
    %1458 = vmatpush2.msra.mxu0 %v1379
    %1459 = vmatprep.mubr.f32.mxu0 0.0
    %1460 = vmatmul.mubr.f32.gmra.mxu0 0.0
    %v1461 = vpop.f32.mrf.mxu0
    %v1462 = vpop.f32.mrf.mxu0
    %1463 = vmatprep.mubr.f32.mxu0 %v430
    %1464 = vmatmul.mubr.f32.gmra.mxu0 %v428
    %v1465 = vpop.f32.mrf.mxu0
    %v1466 = vadd.f32 0.0, %v1465
    %v1467 = vpop.f32.mrf.mxu0
    %1468 = vmatprep.mubr.f32.mxu0 %v436
    %1469 = vmatmul.mubr.f32.gmra.mxu0 %v434
    %v1470 = vpop.f32.mrf.mxu0
    %v1471 = vadd.f32 0.0, %v1470
    %v1472 = vpop.f32.mrf.mxu0
    %1473 = vmatprep.mubr.f32.mxu0 0.0
    %1474 = vmatmul.mubr.f32.gmra.mxu0 0.0
    %v1475 = vpop.f32.mrf.mxu0
    %v1476 = vadd.f32 0.0, %v1475
    %v1477 = vpop.f32.mrf.mxu0
    %1478 = vmatprep.mubr.f32.mxu0 0.0
    %1479 = vmatmul.mubr.f32.gmra.mxu0 0.0
    %v1480 = vpop.f32.mrf.mxu0
    %v1481 = vpop.f32.mrf.mxu0
    %1482 = vmatprep.mubr.f32.mxu0 %v442
    %1483 = vmatmul.mubr.f32.gmra.mxu0 %v440
    %v1484 = vpop.f32.mrf.mxu0
    %v1485 = vadd.f32 0.0, %v1484
    %v1486 = vpop.f32.mrf.mxu0
    %1487 = vmatprep.mubr.f32.mxu0 %v448
    %1488 = vmatmul.mubr.f32.gmra.mxu0 %v446
    %v1489 = vpop.f32.mrf.mxu0
    %v1490 = vadd.f32 0.0, %v1489
    %v1491 = vpop.f32.mrf.mxu0
    %1492 = vmatprep.mubr.f32.mxu0 0.0
    %1493 = vmatmul.mubr.f32.gmra.mxu0 0.0
    %v1494 = vpop.f32.mrf.mxu0
    %v1495 = vadd.f32 0.0, %v1494
    %v1496 = vpop.f32.mrf.mxu0
    %1497 = vdwg.mxu0
    %v1501 = vrot.slane %v1466, 2
    %v1502 = vrot.slane %v1471, 2
    %v1503 = vsel %vm765, %v1501, %v1502
    %v1504 = vrot.slane %v1476, 2
    %v1505 = vsel %vm765, %v1502, %v1504
    %v1508 = vadd.f32 %v1344, %v1503
    %v1509 = vadd.f32 %v1345, %v1505
    %v1513 = vrot.slane %v1485, 2
    %v1514 = vrot.slane %v1490, 2
    %v1515 = vsel %vm765, %v1513, %v1514
    %v1516 = vrot.slane %v1495, 2
    %v1517 = vsel %vm765, %v1514, %v1516
    %v1520 = vadd.f32 %v1360, %v1515
    %v1521 = vadd.f32 %v1361, %v1517
    %v1522 = vrot.slane %v1466, 3
    %v1523 = vrot.slane %v1471, 3
    %v1524 = vsel %vm787, %v1522, %v1523
    %v1525 = vrot.slane %v1476, 3
    %v1526 = vsel %vm787, %v1523, %v1525
    %1527 = vrot.lane.b32.xlu0 %v1524, 64
    %v1528 = vpop.permute.xlu0 %1527
    %1529 = vrot.lane.b32.xlu0 %v1526, 64
    %v1530 = vpop.permute.xlu0 %1529
    %v1533 = vadd.f32 %v1508, %v1528
    %v1534 = vadd.f32 %v1509, %v1530
    %v1535 = vrot.slane %v1485, 3
    %v1536 = vrot.slane %v1490, 3
    %v1537 = vsel %vm787, %v1535, %v1536
    %v1538 = vrot.slane %v1495, 3
    %v1539 = vsel %vm787, %v1536, %v1538
    %1540 = vrot.lane.b32.xlu0 %v1537, 64
    %v1541 = vpop.permute.xlu0 %1540
    %1542 = vrot.lane.b32.xlu0 %v1539, 64
    %v1543 = vpop.permute.xlu0 %1542
    %v1546 = vadd.f32 %v1520, %v1541
    %v1547 = vadd.f32 %v1521, %v1543
    %s1548 = scalar_lea.vmem [#allocation5], 1536
    %v1549 = vld [vmem:[%s1548] sm:$0xff]
    %v1550 = vld [vmem:[%s1548 + $0x8] sm:$0xff]
    %v1551 = vld [vmem:[%s1548 + $0x10] sm:$0xff]
    %v1552 = vld [vmem:[%s1548 + $0x18] sm:$0xff]
    %v1553 = vld [vmem:[%s1548 + $0x20] sm:$0xff]
    %v1554 = vld [vmem:[%s1548 + $0x28] sm:$0xff]
    %v1555 = vld [vmem:[%s1548 + $0x30] sm:$0xff]
    %v1556 = vld [vmem:[%s1548 + $0x38] sm:$0xff]
    %v1557 = vld [vmem:[%s1548 + $0x40] sm:$0xff]
    %v1558 = vld [vmem:[%s1548 + $0x48] sm:$0xff]
    %v1559 = vld [vmem:[%s1548 + $0x50] sm:$0xff]
    %v1560 = vld [vmem:[%s1548 + $0x58] sm:$0xff]
    %v1561 = vld [vmem:[%s1548 + $0x60] sm:$0xff]
    %v1562 = vld [vmem:[%s1548 + $0x68] sm:$0xff]
    %v1563 = vld [vmem:[%s1548 + $0x70] sm:$0xff]
    %v1564 = vld [vmem:[%s1548 + $0x78] sm:$0xff]
    %v1565 = vld [vmem:[%s1548 + $0x80] sm:$0xff]
    %v1566 = vld [vmem:[%s1548 + $0x88] sm:$0xff]
    %v1567 = vld [vmem:[%s1548 + $0x90] sm:$0xff]
    %v1568 = vld [vmem:[%s1548 + $0x98] sm:$0xff]
    %v1569 = vld [vmem:[%s1548 + $0xa0] sm:$0xff]
    %v1570 = vld [vmem:[%s1548 + $0xa8] sm:$0xff]
    %v1571 = vld [vmem:[%s1548 + $0xb0] sm:$0xff]
    %v1572 = vld [vmem:[%s1548 + $0xb8] sm:$0xff]
    %v1573 = vld [vmem:[%s1548 + $0xc0] sm:$0xff]
    %v1574 = vld [vmem:[%s1548 + $0xc8] sm:$0xff]
    %v1575 = vld [vmem:[%s1548 + $0xd0] sm:$0xff]
    %v1576 = vld [vmem:[%s1548 + $0xd8] sm:$0xff]
    %v1577 = vld [vmem:[%s1548 + $0xe0] sm:$0xff]
    %v1578 = vld [vmem:[%s1548 + $0xe8] sm:$0xff]
    %v1579 = vld [vmem:[%s1548 + $0xf0] sm:$0xff]
    %v1580 = vld [vmem:[%s1548 + $0xf8] sm:$0xff]
    %1581 = vmatprep.subr.mxu0 0.0
    %1582 = vmatpush1.msra.mxu0 %v1564
    %1583 = vmatprep.subr.mxu0 0.0
    %1584 = vmatpush1.msra.mxu0 %v1563
    %1585 = vmatprep.subr.mxu0 0.0
    %1586 = vmatpush1.msra.mxu0 %v1562
    %1587 = vmatprep.subr.mxu0 0.0
    %1588 = vmatpush1.msra.mxu0 %v1561
    %1589 = vmatprep.subr.mxu0 0.0
    %1590 = vmatpush1.msra.mxu0 %v1560
    %1591 = vmatprep.subr.mxu0 0.0
    %1592 = vmatpush1.msra.mxu0 %v1559
    %1593 = vmatprep.subr.mxu0 0.0
    %1594 = vmatpush1.msra.mxu0 %v1558
    %1595 = vmatprep.subr.mxu0 0.0
    %1596 = vmatpush1.msra.mxu0 %v1557
    %1597 = vmatprep.subr.mxu0 0.0
    %1598 = vmatpush1.msra.mxu0 %v1556
    %1599 = vmatprep.subr.mxu0 0.0
    %1600 = vmatpush1.msra.mxu0 %v1555
    %1601 = vmatprep.subr.mxu0 0.0
    %1602 = vmatpush1.msra.mxu0 %v1554
    %1603 = vmatprep.subr.mxu0 0.0
    %1604 = vmatpush1.msra.mxu0 %v1553
    %1605 = vmatprep.subr.mxu0 0.0
    %1606 = vmatpush1.msra.mxu0 %v1552
    %1607 = vmatprep.subr.mxu0 0.0
    %1608 = vmatpush1.msra.mxu0 %v1551
    %1609 = vmatprep.subr.mxu0 0.0
    %1610 = vmatpush1.msra.mxu0 %v1550
    %1611 = vmatprep.subr.mxu0 0.0
    %1612 = vmatpush1.msra.mxu0 %v1549
    %1613 = vmatprep.subr.mxu0 0.0
    %1614 = vmatpush2.msra.mxu0 %v1580
    %1615 = vmatprep.subr.mxu0 0.0
    %1616 = vmatpush2.msra.mxu0 %v1579
    %1617 = vmatprep.subr.mxu0 0.0
    %1618 = vmatpush2.msra.mxu0 %v1578
    %1619 = vmatprep.subr.mxu0 0.0
    %1620 = vmatpush2.msra.mxu0 %v1577
    %1621 = vmatprep.subr.mxu0 0.0
    %1622 = vmatpush2.msra.mxu0 %v1576
    %1623 = vmatprep.subr.mxu0 0.0
    %1624 = vmatpush2.msra.mxu0 %v1575
    %1625 = vmatprep.subr.mxu0 0.0
    %1626 = vmatpush2.msra.mxu0 %v1574
    %1627 = vmatprep.subr.mxu0 0.0
    %1628 = vmatpush2.msra.mxu0 %v1573
    %1629 = vmatprep.subr.mxu0 0.0
    %1630 = vmatpush2.msra.mxu0 %v1572
    %1631 = vmatprep.subr.mxu0 0.0
    %1632 = vmatpush2.msra.mxu0 %v1571
    %1633 = vmatprep.subr.mxu0 0.0
    %1634 = vmatpush2.msra.mxu0 %v1570
    %1635 = vmatprep.subr.mxu0 0.0
    %1636 = vmatpush2.msra.mxu0 %v1569
    %1637 = vmatprep.subr.mxu0 0.0
    %1638 = vmatpush2.msra.mxu0 %v1568
    %1639 = vmatprep.subr.mxu0 0.0
    %1640 = vmatpush2.msra.mxu0 %v1567
    %1641 = vmatprep.subr.mxu0 0.0
    %1642 = vmatpush2.msra.mxu0 %v1566
    %1643 = vmatprep.subr.mxu0 0.0
    %1644 = vmatpush2.msra.mxu0 %v1565
    %1645 = vmatprep.mubr.f32.mxu0 0.0
    %1646 = vmatmul.mubr.f32.gmra.mxu0 0.0
    %v1647 = vpop.f32.mrf.mxu0
    %v1648 = vpop.f32.mrf.mxu0
    %1649 = vmatprep.mubr.f32.mxu0 %v430
    %1650 = vmatmul.mubr.f32.gmra.mxu0 %v428
    %v1651 = vpop.f32.mrf.mxu0
    %v1652 = vadd.f32 0.0, %v1651
    %v1653 = vpop.f32.mrf.mxu0
    %1654 = vmatprep.mubr.f32.mxu0 %v436
    %1655 = vmatmul.mubr.f32.gmra.mxu0 %v434
    %v1656 = vpop.f32.mrf.mxu0
    %v1657 = vadd.f32 0.0, %v1656
    %v1658 = vpop.f32.mrf.mxu0
    %1659 = vmatprep.mubr.f32.mxu0 0.0
    %1660 = vmatmul.mubr.f32.gmra.mxu0 0.0
    %v1661 = vpop.f32.mrf.mxu0
    %v1662 = vadd.f32 0.0, %v1661
    %v1663 = vpop.f32.mrf.mxu0
    %1664 = vmatprep.mubr.f32.mxu0 0.0
    %1665 = vmatmul.mubr.f32.gmra.mxu0 0.0
    %v1666 = vpop.f32.mrf.mxu0
    %v1667 = vpop.f32.mrf.mxu0
    %1668 = vmatprep.mubr.f32.mxu0 %v442
    %1669 = vmatmul.mubr.f32.gmra.mxu0 %v440
    %v1670 = vpop.f32.mrf.mxu0
    %v1671 = vadd.f32 0.0, %v1670
    %v1672 = vpop.f32.mrf.mxu0
    %1673 = vmatprep.mubr.f32.mxu0 %v448
    %1674 = vmatmul.mubr.f32.gmra.mxu0 %v446
    %v1675 = vpop.f32.mrf.mxu0
    %v1676 = vadd.f32 0.0, %v1675
    %v1677 = vpop.f32.mrf.mxu0
    %1678 = vmatprep.mubr.f32.mxu0 0.0
    %1679 = vmatmul.mubr.f32.gmra.mxu0 0.0
    %v1680 = vpop.f32.mrf.mxu0
    %v1681 = vadd.f32 0.0, %v1680
    %v1682 = vpop.f32.mrf.mxu0
    %1683 = vdwg.mxu0
    %v1687 = vrot.slane %v1652, 4
    %v1688 = vrot.slane %v1657, 4
    %v1689 = vsel %vm953, %v1687, %v1688
    %v1690 = vrot.slane %v1662, 4
    %v1691 = vsel %vm953, %v1688, %v1690
    %v1694 = vadd.f32 %v1533, %v1689
    %v1695 = vadd.f32 %v1534, %v1691
    %v1699 = vrot.slane %v1671, 4
    %v1700 = vrot.slane %v1676, 4
    %v1701 = vsel %vm953, %v1699, %v1700
    %v1702 = vrot.slane %v1681, 4
    %v1703 = vsel %vm953, %v1700, %v1702
    %v1706 = vadd.f32 %v1546, %v1701
    %v1707 = vadd.f32 %v1547, %v1703
    %v1708 = vrot.slane %v1652, 5
    %v1709 = vrot.slane %v1657, 5
    %v1710 = vsel %vm975, %v1708, %v1709
    %v1711 = vrot.slane %v1662, 5
    %v1712 = vsel %vm975, %v1709, %v1711
    %1713 = vrot.lane.b32.xlu0 %v1710, 64
    %v1714 = vpop.permute.xlu0 %1713
    %1715 = vrot.lane.b32.xlu0 %v1712, 64
    %v1716 = vpop.permute.xlu0 %1715
    %v1719 = vadd.f32 %v1694, %v1714
    %v1720 = vadd.f32 %v1695, %v1716
    %v1721 = vrot.slane %v1671, 5
    %v1722 = vrot.slane %v1676, 5
    %v1723 = vsel %vm975, %v1721, %v1722
    %v1724 = vrot.slane %v1681, 5
    %v1725 = vsel %vm975, %v1722, %v1724
    %1726 = vrot.lane.b32.xlu0 %v1723, 64
    %v1727 = vpop.permute.xlu0 %1726
    %1728 = vrot.lane.b32.xlu0 %v1725, 64
    %v1729 = vpop.permute.xlu0 %1728
    %v1732 = vadd.f32 %v1706, %v1727
    %v1733 = vadd.f32 %v1707, %v1729
    %s1734 = scalar_lea.vmem [#allocation5], 1792
    %v1735 = vld [vmem:[%s1734] sm:$0xff]
    %v1736 = vld [vmem:[%s1734 + $0x8] sm:$0xff]
    %v1737 = vld [vmem:[%s1734 + $0x10] sm:$0xff]
    %v1738 = vld [vmem:[%s1734 + $0x18] sm:$0xff]
    %v1739 = vld [vmem:[%s1734 + $0x20] sm:$0xff]
    %v1740 = vld [vmem:[%s1734 + $0x28] sm:$0xff]
    %v1741 = vld [vmem:[%s1734 + $0x30] sm:$0xff]
    %v1742 = vld [vmem:[%s1734 + $0x38] sm:$0xff]
    %v1743 = vld [vmem:[%s1734 + $0x40] sm:$0xff]
    %v1744 = vld [vmem:[%s1734 + $0x48] sm:$0xff]
    %v1745 = vld [vmem:[%s1734 + $0x50] sm:$0xff]
    %v1746 = vld [vmem:[%s1734 + $0x58] sm:$0xff]
    %v1747 = vld [vmem:[%s1734 + $0x60] sm:$0xff]
    %v1748 = vld [vmem:[%s1734 + $0x68] sm:$0xff]
    %v1749 = vld [vmem:[%s1734 + $0x70] sm:$0xff]
    %v1750 = vld [vmem:[%s1734 + $0x78] sm:$0xff]
    %v1751 = vld [vmem:[%s1734 + $0x80] sm:$0xff]
    %v1752 = vld [vmem:[%s1734 + $0x88] sm:$0xff]
    %v1753 = vld [vmem:[%s1734 + $0x90] sm:$0xff]
    %v1754 = vld [vmem:[%s1734 + $0x98] sm:$0xff]
    %v1755 = vld [vmem:[%s1734 + $0xa0] sm:$0xff]
    %v1756 = vld [vmem:[%s1734 + $0xa8] sm:$0xff]
    %v1757 = vld [vmem:[%s1734 + $0xb0] sm:$0xff]
    %v1758 = vld [vmem:[%s1734 + $0xb8] sm:$0xff]
    %v1759 = vld [vmem:[%s1734 + $0xc0] sm:$0xff]
    %v1760 = vld [vmem:[%s1734 + $0xc8] sm:$0xff]
    %v1761 = vld [vmem:[%s1734 + $0xd0] sm:$0xff]
    %v1762 = vld [vmem:[%s1734 + $0xd8] sm:$0xff]
    %v1763 = vld [vmem:[%s1734 + $0xe0] sm:$0xff]
    %v1764 = vld [vmem:[%s1734 + $0xe8] sm:$0xff]
    %v1765 = vld [vmem:[%s1734 + $0xf0] sm:$0xff]
    %v1766 = vld [vmem:[%s1734 + $0xf8] sm:$0xff]
    %1767 = vmatprep.subr.mxu0 0.0
    %1768 = vmatpush1.msra.mxu0 %v1750
    %1769 = vmatprep.subr.mxu0 0.0
    %1770 = vmatpush1.msra.mxu0 %v1749
    %1771 = vmatprep.subr.mxu0 0.0
    %1772 = vmatpush1.msra.mxu0 %v1748
    %1773 = vmatprep.subr.mxu0 0.0
    %1774 = vmatpush1.msra.mxu0 %v1747
    %1775 = vmatprep.subr.mxu0 0.0
    %1776 = vmatpush1.msra.mxu0 %v1746
    %1777 = vmatprep.subr.mxu0 0.0
    %1778 = vmatpush1.msra.mxu0 %v1745
    %1779 = vmatprep.subr.mxu0 0.0
    %1780 = vmatpush1.msra.mxu0 %v1744
    %1781 = vmatprep.subr.mxu0 0.0
    %1782 = vmatpush1.msra.mxu0 %v1743
    %1783 = vmatprep.subr.mxu0 0.0
    %1784 = vmatpush1.msra.mxu0 %v1742
    %1785 = vmatprep.subr.mxu0 0.0
    %1786 = vmatpush1.msra.mxu0 %v1741
    %1787 = vmatprep.subr.mxu0 0.0
    %1788 = vmatpush1.msra.mxu0 %v1740
    %1789 = vmatprep.subr.mxu0 0.0
    %1790 = vmatpush1.msra.mxu0 %v1739
    %1791 = vmatprep.subr.mxu0 0.0
    %1792 = vmatpush1.msra.mxu0 %v1738
    %1793 = vmatprep.subr.mxu0 0.0
    %1794 = vmatpush1.msra.mxu0 %v1737
    %1795 = vmatprep.subr.mxu0 0.0
    %1796 = vmatpush1.msra.mxu0 %v1736
    %1797 = vmatprep.subr.mxu0 0.0
    %1798 = vmatpush1.msra.mxu0 %v1735
    %1799 = vmatprep.subr.mxu0 0.0
    %1800 = vmatpush2.msra.mxu0 %v1766
    %1801 = vmatprep.subr.mxu0 0.0
    %1802 = vmatpush2.msra.mxu0 %v1765
    %1803 = vmatprep.subr.mxu0 0.0
    %1804 = vmatpush2.msra.mxu0 %v1764
    %1805 = vmatprep.subr.mxu0 0.0
    %1806 = vmatpush2.msra.mxu0 %v1763
    %1807 = vmatprep.subr.mxu0 0.0
    %1808 = vmatpush2.msra.mxu0 %v1762
    %1809 = vmatprep.subr.mxu0 0.0
    %1810 = vmatpush2.msra.mxu0 %v1761
    %1811 = vmatprep.subr.mxu0 0.0
    %1812 = vmatpush2.msra.mxu0 %v1760
    %1813 = vmatprep.subr.mxu0 0.0
    %1814 = vmatpush2.msra.mxu0 %v1759
    %1815 = vmatprep.subr.mxu0 0.0
    %1816 = vmatpush2.msra.mxu0 %v1758
    %1817 = vmatprep.subr.mxu0 0.0
    %1818 = vmatpush2.msra.mxu0 %v1757
    %1819 = vmatprep.subr.mxu0 0.0
    %1820 = vmatpush2.msra.mxu0 %v1756
    %1821 = vmatprep.subr.mxu0 0.0
    %1822 = vmatpush2.msra.mxu0 %v1755
    %1823 = vmatprep.subr.mxu0 0.0
    %1824 = vmatpush2.msra.mxu0 %v1754
    %1825 = vmatprep.subr.mxu0 0.0
    %1826 = vmatpush2.msra.mxu0 %v1753
    %1827 = vmatprep.subr.mxu0 0.0
    %1828 = vmatpush2.msra.mxu0 %v1752
    %1829 = vmatprep.subr.mxu0 0.0
    %1830 = vmatpush2.msra.mxu0 %v1751
    %1831 = vmatprep.mubr.f32.mxu0 0.0
    %1832 = vmatmul.mubr.f32.gmra.mxu0 0.0
    %v1833 = vpop.f32.mrf.mxu0
    %v1834 = vpop.f32.mrf.mxu0
    %1835 = vmatprep.mubr.f32.mxu0 %v430
    %1836 = vmatmul.mubr.f32.gmra.mxu0 %v428
    %v1837 = vpop.f32.mrf.mxu0
    %v1838 = vadd.f32 0.0, %v1837
    %v1839 = vpop.f32.mrf.mxu0
    %1840 = vmatprep.mubr.f32.mxu0 %v436
    %1841 = vmatmul.mubr.f32.gmra.mxu0 %v434
    %v1842 = vpop.f32.mrf.mxu0
    %v1843 = vadd.f32 0.0, %v1842
    %v1844 = vpop.f32.mrf.mxu0
    %1845 = vmatprep.mubr.f32.mxu0 0.0
    %1846 = vmatmul.mubr.f32.gmra.mxu0 0.0
    %v1847 = vpop.f32.mrf.mxu0
    %v1848 = vadd.f32 0.0, %v1847
    %v1849 = vpop.f32.mrf.mxu0
    %1850 = vmatprep.mubr.f32.mxu0 0.0
    %1851 = vmatmul.mubr.f32.gmra.mxu0 0.0
    %v1852 = vpop.f32.mrf.mxu0
    %v1853 = vpop.f32.mrf.mxu0
    %1854 = vmatprep.mubr.f32.mxu0 %v442
    %1855 = vmatmul.mubr.f32.gmra.mxu0 %v440
    %v1856 = vpop.f32.mrf.mxu0
    %v1857 = vadd.f32 0.0, %v1856
    %v1858 = vpop.f32.mrf.mxu0
    %1859 = vmatprep.mubr.f32.mxu0 %v448
    %1860 = vmatmul.mubr.f32.gmra.mxu0 %v446
    %v1861 = vpop.f32.mrf.mxu0
    %v1862 = vadd.f32 0.0, %v1861
    %v1863 = vpop.f32.mrf.mxu0
    %1864 = vmatprep.mubr.f32.mxu0 0.0
    %1865 = vmatmul.mubr.f32.gmra.mxu0 0.0
    %v1866 = vpop.f32.mrf.mxu0
    %v1867 = vadd.f32 0.0, %v1866
    %v1868 = vpop.f32.mrf.mxu0
    %1869 = vdwg.mxu0
    %v1873 = vrot.slane %v1838, 6
    %v1874 = vrot.slane %v1843, 6
    %v1875 = vsel %vm1141, %v1873, %v1874
    %v1876 = vrot.slane %v1848, 6
    %v1877 = vsel %vm1141, %v1874, %v1876
    %v1880 = vadd.f32 %v1719, %v1875
    %v1881 = vadd.f32 %v1720, %v1877
    %v1885 = vrot.slane %v1857, 6
    %v1886 = vrot.slane %v1862, 6
    %v1887 = vsel %vm1141, %v1885, %v1886
    %v1888 = vrot.slane %v1867, 6
    %v1889 = vsel %vm1141, %v1886, %v1888
    %v1892 = vadd.f32 %v1732, %v1887
    %v1893 = vadd.f32 %v1733, %v1889
    %v1894 = vrot.slane %v1838, 7
    %v1895 = vrot.slane %v1843, 7
    %v1896 = vsel %vm1163, %v1894, %v1895
    %v1897 = vrot.slane %v1848, 7
    %v1898 = vsel %vm1163, %v1895, %v1897
    %1899 = vrot.lane.b32.xlu0 %v1896, 64
    %v1900 = vpop.permute.xlu0 %1899
    %1901 = vrot.lane.b32.xlu0 %v1898, 64
    %v1902 = vpop.permute.xlu0 %1901
    %v1905 = vadd.f32 %v1880, %v1900
    %v1906 = vadd.f32 %v1881, %v1902
    %v1907 = vrot.slane %v1857, 7
    %v1908 = vrot.slane %v1862, 7
    %v1909 = vsel %vm1163, %v1907, %v1908
    %v1910 = vrot.slane %v1867, 7
    %v1911 = vsel %vm1163, %v1908, %v1910
    %1912 = vrot.lane.b32.xlu0 %v1909, 64
    %v1913 = vpop.permute.xlu0 %1912
    %1914 = vrot.lane.b32.xlu0 %v1911, 64
    %v1915 = vpop.permute.xlu0 %1914
    %v1918 = vadd.f32 %v1892, %v1913
    %v1919 = vadd.f32 %v1893, %v1915
    %s1920 = scalar_lea.vmem [#allocation5], 2048
    %v1921 = vld [vmem:[%s1920] sm:$0xff]
    %v1922 = vld [vmem:[%s1920 + $0x8] sm:$0xff]
    %v1923 = vld [vmem:[%s1920 + $0x10] sm:$0xff]
    %v1924 = vld [vmem:[%s1920 + $0x18] sm:$0xff]
    %v1925 = vld [vmem:[%s1920 + $0x20] sm:$0xff]
    %v1926 = vld [vmem:[%s1920 + $0x28] sm:$0xff]
    %v1927 = vld [vmem:[%s1920 + $0x30] sm:$0xff]
    %v1928 = vld [vmem:[%s1920 + $0x38] sm:$0xff]
    %v1929 = vld [vmem:[%s1920 + $0x40] sm:$0xff]
    %v1930 = vld [vmem:[%s1920 + $0x48] sm:$0xff]
    %v1931 = vld [vmem:[%s1920 + $0x50] sm:$0xff]
    %v1932 = vld [vmem:[%s1920 + $0x58] sm:$0xff]
    %v1933 = vld [vmem:[%s1920 + $0x60] sm:$0xff]
    %v1934 = vld [vmem:[%s1920 + $0x68] sm:$0xff]
    %v1935 = vld [vmem:[%s1920 + $0x70] sm:$0xff]
    %v1936 = vld [vmem:[%s1920 + $0x78] sm:$0xff]
    %v1937 = vld [vmem:[%s1920 + $0x80] sm:$0xff]
    %v1938 = vld [vmem:[%s1920 + $0x88] sm:$0xff]
    %v1939 = vld [vmem:[%s1920 + $0x90] sm:$0xff]
    %v1940 = vld [vmem:[%s1920 + $0x98] sm:$0xff]
    %v1941 = vld [vmem:[%s1920 + $0xa0] sm:$0xff]
    %v1942 = vld [vmem:[%s1920 + $0xa8] sm:$0xff]
    %v1943 = vld [vmem:[%s1920 + $0xb0] sm:$0xff]
    %v1944 = vld [vmem:[%s1920 + $0xb8] sm:$0xff]
    %v1945 = vld [vmem:[%s1920 + $0xc0] sm:$0xff]
    %v1946 = vld [vmem:[%s1920 + $0xc8] sm:$0xff]
    %v1947 = vld [vmem:[%s1920 + $0xd0] sm:$0xff]
    %v1948 = vld [vmem:[%s1920 + $0xd8] sm:$0xff]
    %v1949 = vld [vmem:[%s1920 + $0xe0] sm:$0xff]
    %v1950 = vld [vmem:[%s1920 + $0xe8] sm:$0xff]
    %v1951 = vld [vmem:[%s1920 + $0xf0] sm:$0xff]
    %v1952 = vld [vmem:[%s1920 + $0xf8] sm:$0xff]
    %1953 = vmatprep.subr.mxu0 0.0
    %1954 = vmatpush1.msra.mxu0 %v1936
    %1955 = vmatprep.subr.mxu0 0.0
    %1956 = vmatpush1.msra.mxu0 %v1935
    %1957 = vmatprep.subr.mxu0 0.0
    %1958 = vmatpush1.msra.mxu0 %v1934
    %1959 = vmatprep.subr.mxu0 0.0
    %1960 = vmatpush1.msra.mxu0 %v1933
    %1961 = vmatprep.subr.mxu0 0.0
    %1962 = vmatpush1.msra.mxu0 %v1932
    %1963 = vmatprep.subr.mxu0 0.0
    %1964 = vmatpush1.msra.mxu0 %v1931
    %1965 = vmatprep.subr.mxu0 0.0
    %1966 = vmatpush1.msra.mxu0 %v1930
    %1967 = vmatprep.subr.mxu0 0.0
    %1968 = vmatpush1.msra.mxu0 %v1929
    %1969 = vmatprep.subr.mxu0 0.0
    %1970 = vmatpush1.msra.mxu0 %v1928
    %1971 = vmatprep.subr.mxu0 0.0
    %1972 = vmatpush1.msra.mxu0 %v1927
    %1973 = vmatprep.subr.mxu0 0.0
    %1974 = vmatpush1.msra.mxu0 %v1926
    %1975 = vmatprep.subr.mxu0 0.0
    %1976 = vmatpush1.msra.mxu0 %v1925
    %1977 = vmatprep.subr.mxu0 0.0
    %1978 = vmatpush1.msra.mxu0 %v1924
    %1979 = vmatprep.subr.mxu0 0.0
    %1980 = vmatpush1.msra.mxu0 %v1923
    %1981 = vmatprep.subr.mxu0 0.0
    %1982 = vmatpush1.msra.mxu0 %v1922
    %1983 = vmatprep.subr.mxu0 0.0
    %1984 = vmatpush1.msra.mxu0 %v1921
    %1985 = vmatprep.subr.mxu0 0.0
    %1986 = vmatpush2.msra.mxu0 %v1952
    %1987 = vmatprep.subr.mxu0 0.0
    %1988 = vmatpush2.msra.mxu0 %v1951
    %1989 = vmatprep.subr.mxu0 0.0
    %1990 = vmatpush2.msra.mxu0 %v1950
    %1991 = vmatprep.subr.mxu0 0.0
    %1992 = vmatpush2.msra.mxu0 %v1949
    %1993 = vmatprep.subr.mxu0 0.0
    %1994 = vmatpush2.msra.mxu0 %v1948
    %1995 = vmatprep.subr.mxu0 0.0
    %1996 = vmatpush2.msra.mxu0 %v1947
    %1997 = vmatprep.subr.mxu0 0.0
    %1998 = vmatpush2.msra.mxu0 %v1946
    %1999 = vmatprep.subr.mxu0 0.0
    %2000 = vmatpush2.msra.mxu0 %v1945
    %2001 = vmatprep.subr.mxu0 0.0
    %2002 = vmatpush2.msra.mxu0 %v1944
    %2003 = vmatprep.subr.mxu0 0.0
    %2004 = vmatpush2.msra.mxu0 %v1943
    %2005 = vmatprep.subr.mxu0 0.0
    %2006 = vmatpush2.msra.mxu0 %v1942
    %2007 = vmatprep.subr.mxu0 0.0
    %2008 = vmatpush2.msra.mxu0 %v1941
    %2009 = vmatprep.subr.mxu0 0.0
    %2010 = vmatpush2.msra.mxu0 %v1940
    %2011 = vmatprep.subr.mxu0 0.0
    %2012 = vmatpush2.msra.mxu0 %v1939
    %2013 = vmatprep.subr.mxu0 0.0
    %2014 = vmatpush2.msra.mxu0 %v1938
    %2015 = vmatprep.subr.mxu0 0.0
    %2016 = vmatpush2.msra.mxu0 %v1937
    %2017 = vmatprep.mubr.f32.mxu0 0.0
    %2018 = vmatmul.mubr.f32.gmra.mxu0 0.0
    %v2019 = vpop.f32.mrf.mxu0
    %v2020 = vpop.f32.mrf.mxu0
    %2021 = vmatprep.mubr.f32.mxu0 %v430
    %2022 = vmatmul.mubr.f32.gmra.mxu0 %v428
    %v2023 = vpop.f32.mrf.mxu0
    %v2024 = vpop.f32.mrf.mxu0
    %2025 = vmatprep.mubr.f32.mxu0 %v436
    %2026 = vmatmul.mubr.f32.gmra.mxu0 %v434
    %v2027 = vpop.f32.mrf.mxu0
    %v2028 = vadd.f32 0.0, %v2027
    %v2029 = vpop.f32.mrf.mxu0
    %2030 = vmatprep.mubr.f32.mxu0 0.0
    %2031 = vmatmul.mubr.f32.gmra.mxu0 0.0
    %v2032 = vpop.f32.mrf.mxu0
    %v2033 = vadd.f32 0.0, %v2032
    %v2034 = vpop.f32.mrf.mxu0
    %2035 = vmatprep.mubr.f32.mxu0 0.0
    %2036 = vmatmul.mubr.f32.gmra.mxu0 0.0
    %v2037 = vpop.f32.mrf.mxu0
    %v2038 = vpop.f32.mrf.mxu0
    %2039 = vmatprep.mubr.f32.mxu0 %v442
    %2040 = vmatmul.mubr.f32.gmra.mxu0 %v440
    %v2041 = vpop.f32.mrf.mxu0
    %v2042 = vpop.f32.mrf.mxu0
    %2043 = vmatprep.mubr.f32.mxu0 %v448
    %2044 = vmatmul.mubr.f32.gmra.mxu0 %v446
    %v2045 = vpop.f32.mrf.mxu0
    %v2046 = vadd.f32 0.0, %v2045
    %v2047 = vpop.f32.mrf.mxu0
    %2048 = vmatprep.mubr.f32.mxu0 0.0
    %2049 = vmatmul.mubr.f32.gmra.mxu0 0.0
    %v2050 = vpop.f32.mrf.mxu0
    %v2051 = vadd.f32 0.0, %v2050
    %v2052 = vpop.f32.mrf.mxu0
    %2053 = vdwg.mxu0
    %v2054 = vadd.f32 %v1905, %v2028
    %v2055 = vadd.f32 %v1906, %v2033
    %v2056 = vadd.f32 %v1918, %v2046
    %v2057 = vadd.f32 %v1919, %v2051
    %v2058 = vld [vmem:[#allocation10] sm:$0xff]
    %v2059 = vld [vmem:[#allocation10 + $0x8] sm:$0xff]
    %v2060 = vld [vmem:[#allocation10 + $0x10] sm:$0xff]
    %v2061 = vld [vmem:[#allocation10 + $0x18] sm:$0xff]
    %v2062 = vlaneseq
    %v2063 = vshrl.u32 %v2062, 7
    %v2064 = vsub.s32 5, %v2063
    %v2065 = vrot.slane %v130, %v2064
    %vm2066 = vcmask 261120
    %v2068 = vsel %vm2066, %v126, 0
    %v2071 = vsel %vm2066, %v127, 0
    %v2074 = vsel %vm2066, %v128, 0
    %v2077 = vsel %vm2066, %v129, 0
    %2079 = vmatprep.subr.mxu0 0.0
    %2080 = vmatpush1.msra.mxu0 0.0
    %2081 = vmatprep.subr.mxu0 0.0
    %2082 = vmatpush1.msra.mxu0 0.0
    %2083 = vmatprep.subr.mxu0 0.0
    %2084 = vmatpush1.msra.mxu0 0.0
    %2085 = vmatprep.subr.mxu0 0.0
    %2086 = vmatpush1.msra.mxu0 0.0
    %2087 = vmatprep.subr.mxu0 0.0
    %2088 = vmatpush1.msra.mxu0 0.0
    %2089 = vmatprep.subr.mxu0 0.0
    %2090 = vmatpush1.msra.mxu0 0.0
    %2091 = vmatprep.subr.mxu0 0.0
    %2092 = vmatpush1.msra.mxu0 0.0
    %2093 = vmatprep.subr.mxu0 0.0
    %2094 = vmatpush1.msra.mxu0 0.0
    %2095 = vmatprep.subr.mxu0 0.0
    %2096 = vmatpush1.msra.mxu0 0.0
    %2097 = vmatprep.subr.mxu0 0.0
    %2098 = vmatpush1.msra.mxu0 0.0
    %2099 = vmatprep.subr.mxu0 0.0
    %2100 = vmatpush1.msra.mxu0 0.0
    %2101 = vmatprep.subr.mxu0 0.0
    %2102 = vmatpush1.msra.mxu0 0.0
    %2103 = vmatprep.subr.mxu0 0.0
    %2104 = vmatpush1.msra.mxu0 %v2061
    %2105 = vmatprep.subr.mxu0 0.0
    %2106 = vmatpush1.msra.mxu0 %v2060
    %2107 = vmatprep.subr.mxu0 0.0
    %2108 = vmatpush1.msra.mxu0 %v2059
    %2109 = vmatprep.subr.mxu0 0.0
    %2110 = vmatpush1.msra.mxu0 %v2058
    %2111 = vmatprep.subr.mxu0 0.0
    %2112 = vmatpush2.msra.mxu0 0.0
    %2113 = vmatprep.subr.mxu0 0.0
    %2114 = vmatpush2.msra.mxu0 0.0
    %2115 = vmatprep.subr.mxu0 0.0
    %2116 = vmatpush2.msra.mxu0 0.0
    %2117 = vmatprep.subr.mxu0 0.0
    %2118 = vmatpush2.msra.mxu0 0.0
    %2119 = vmatprep.subr.mxu0 0.0
    %2120 = vmatpush2.msra.mxu0 0.0
    %2121 = vmatprep.subr.mxu0 0.0
    %2122 = vmatpush2.msra.mxu0 0.0
    %2123 = vmatprep.subr.mxu0 0.0
    %2124 = vmatpush2.msra.mxu0 0.0
    %2125 = vmatprep.subr.mxu0 0.0
    %2126 = vmatpush2.msra.mxu0 0.0
    %2127 = vmatprep.subr.mxu0 0.0
    %2128 = vmatpush2.msra.mxu0 0.0
    %2129 = vmatprep.subr.mxu0 0.0
    %2130 = vmatpush2.msra.mxu0 0.0
    %2131 = vmatprep.subr.mxu0 0.0
    %2132 = vmatpush2.msra.mxu0 0.0
    %2133 = vmatprep.subr.mxu0 0.0
    %2134 = vmatpush2.msra.mxu0 0.0
    %2135 = vmatprep.subr.mxu0 0.0
    %2136 = vmatpush2.msra.mxu0 0.0
    %2137 = vmatprep.subr.mxu0 0.0
    %2138 = vmatpush2.msra.mxu0 0.0
    %2139 = vmatprep.subr.mxu0 0.0
    %2140 = vmatpush2.msra.mxu0 0.0
    %2141 = vmatprep.subr.mxu0 0.0
    %2142 = vmatpush2.msra.mxu0 0.0
    %2143 = vmatprep.mubr.f32.mxu0 0.0
    %2144 = vmatmul.mubr.f32.gmra.mxu0 %v2068
    %v2145 = vpop.f32.mrf.mxu0
    %v2146 = vadd.f32 %v2065, %v2145
    %v2147 = vpop.f32.mrf.mxu0
    %2148 = vmatprep.mubr.f32.mxu0 0.0
    %2149 = vmatmul.mubr.f32.gmra.mxu0 %v2071
    %v2150 = vpop.f32.mrf.mxu0
    %v2151 = vadd.f32 %v2065, %v2150
    %v2152 = vpop.f32.mrf.mxu0
    %2153 = vmatprep.mubr.f32.mxu0 0.0
    %2154 = vmatmul.mubr.f32.gmra.mxu0 %v2074
    %v2155 = vpop.f32.mrf.mxu0
    %v2156 = vadd.f32 %v2065, %v2155
    %v2157 = vpop.f32.mrf.mxu0
    %2158 = vmatprep.mubr.f32.mxu0 0.0
    %2159 = vmatmul.mubr.f32.gmra.mxu0 %v2077
    %v2160 = vpop.f32.mrf.mxu0
    %v2161 = vadd.f32 %v2065, %v2160
    %v2162 = vpop.f32.mrf.mxu0
    %2163 = vdwg.mxu0
    %v2164 = vtanh.pop %v2146
    %v2165 = vtanh.pop %v2151
    %v2166 = vtanh.pop %v2156
    %v2167 = vtanh.pop %v2161
    %vm2168 = vcmask 130048
    %v2169 = vsel %vm2168, 0.0625, 0.0
    %v2170 = vsel %vm2168, 0.0, 0.0625
    %v2172 = vsel %vm2066, %v2169, 0
    %v2175 = vsel %vm2066, %v2170, 0
    %2177 = vmatprep.subr.mxu0 0.0
    %2178 = vmatpush1.msra.mxu0 0.0
    %2179 = vmatprep.subr.mxu0 0.0
    %2180 = vmatpush1.msra.mxu0 0.0
    %2181 = vmatprep.subr.mxu0 0.0
    %2182 = vmatpush1.msra.mxu0 0.0
    %2183 = vmatprep.subr.mxu0 0.0
    %2184 = vmatpush1.msra.mxu0 0.0
    %2185 = vmatprep.subr.mxu0 0.0
    %2186 = vmatpush1.msra.mxu0 0.0
    %2187 = vmatprep.subr.mxu0 0.0
    %2188 = vmatpush1.msra.mxu0 0.0
    %2189 = vmatprep.subr.mxu0 0.0
    %2190 = vmatpush1.msra.mxu0 0.0
    %2191 = vmatprep.subr.mxu0 0.0
    %2192 = vmatpush1.msra.mxu0 0.0
    %2193 = vmatprep.subr.mxu0 0.0
    %2194 = vmatpush1.msra.mxu0 0.0
    %2195 = vmatprep.subr.mxu0 0.0
    %2196 = vmatpush1.msra.mxu0 0.0
    %2197 = vmatprep.subr.mxu0 0.0
    %2198 = vmatpush1.msra.mxu0 0.0
    %2199 = vmatprep.subr.mxu0 0.0
    %2200 = vmatpush1.msra.mxu0 0.0
    %2201 = vmatprep.subr.mxu0 0.0
    %2202 = vmatpush1.msra.mxu0 %v2167
    %2203 = vmatprep.subr.mxu0 0.0
    %2204 = vmatpush1.msra.mxu0 %v2166
    %2205 = vmatprep.subr.mxu0 0.0
    %2206 = vmatpush1.msra.mxu0 %v2165
    %2207 = vmatprep.subr.mxu0 0.0
    %2208 = vmatpush1.msra.mxu0 %v2164
    %2209 = vmatprep.subr.mxu0 0.0
    %2210 = vmatpush2.msra.mxu0 0.0
    %2211 = vmatprep.subr.mxu0 0.0
    %2212 = vmatpush2.msra.mxu0 0.0
    %2213 = vmatprep.subr.mxu0 0.0
    %2214 = vmatpush2.msra.mxu0 0.0
    %2215 = vmatprep.subr.mxu0 0.0
    %2216 = vmatpush2.msra.mxu0 0.0
    %2217 = vmatprep.subr.mxu0 0.0
    %2218 = vmatpush2.msra.mxu0 0.0
    %2219 = vmatprep.subr.mxu0 0.0
    %2220 = vmatpush2.msra.mxu0 0.0
    %2221 = vmatprep.subr.mxu0 0.0
    %2222 = vmatpush2.msra.mxu0 0.0
    %2223 = vmatprep.subr.mxu0 0.0
    %2224 = vmatpush2.msra.mxu0 0.0
    %2225 = vmatprep.subr.mxu0 0.0
    %2226 = vmatpush2.msra.mxu0 0.0
    %2227 = vmatprep.subr.mxu0 0.0
    %2228 = vmatpush2.msra.mxu0 0.0
    %2229 = vmatprep.subr.mxu0 0.0
    %2230 = vmatpush2.msra.mxu0 0.0
    %2231 = vmatprep.subr.mxu0 0.0
    %2232 = vmatpush2.msra.mxu0 0.0
    %2233 = vmatprep.subr.mxu0 0.0
    %2234 = vmatpush2.msra.mxu0 0.0
    %2235 = vmatprep.subr.mxu0 0.0
    %2236 = vmatpush2.msra.mxu0 0.0
    %2237 = vmatprep.subr.mxu0 0.0
    %2238 = vmatpush2.msra.mxu0 0.0
    %2239 = vmatprep.subr.mxu0 0.0
    %2240 = vmatpush2.msra.mxu0 0.0
    %2241 = vmatprep.mubr.f32.mxu0 0.0
    %2242 = vmatmul.mubr.f32.gmra.mxu0 %v2172
    %v2243 = vpop.f32.mrf.mxu0
    %v2244 = vadd.f32 0.0, %v2243
    %v2245 = vpop.f32.mrf.mxu0
    %2246 = vmatprep.mubr.f32.mxu0 0.0
    %2247 = vmatmul.mubr.f32.gmra.mxu0 %v2172
    %v2248 = vpop.f32.mrf.mxu0
    %v2249 = vadd.f32 0.0, %v2248
    %v2250 = vpop.f32.mrf.mxu0
    %2251 = vmatprep.mubr.f32.mxu0 0.0
    %2252 = vmatmul.mubr.f32.gmra.mxu0 %v2175
    %v2253 = vpop.f32.mrf.mxu0
    %v2254 = vadd.f32 0.0, %v2253
    %v2255 = vpop.f32.mrf.mxu0
    %2256 = vmatprep.mubr.f32.mxu0 0.0
    %2257 = vmatmul.mubr.f32.gmra.mxu0 %v2175
    %v2258 = vpop.f32.mrf.mxu0
    %v2259 = vadd.f32 0.0, %v2258
    %v2260 = vpop.f32.mrf.mxu0
    %2261 = vdwg.mxu0
    %v2262 = vld [vmem:[#allocation11] sm:$0xff]
    %v2263 = vld [vmem:[#allocation11 + $0x8] sm:$0xff]
    %v2264 = vld [vmem:[#allocation11 + $0x10] sm:$0xff]
    %v2265 = vld [vmem:[#allocation11 + $0x18] sm:$0xff]
    %v2266 = vadd.f32 %v126, %v2262
    %v2267 = vadd.f32 %v127, %v2263
    %v2268 = vadd.f32 %v128, %v2264
    %v2269 = vadd.f32 %v129, %v2265
    %v2270 = vadd.f32 %v2266, %v2244
    %v2271 = vadd.f32 %v2267, %v2249
    %v2272 = vadd.f32 %v2268, %v2254
    %v2273 = vadd.f32 %v2269, %v2259
    %v2274 = vsel %vm2066, %v2270, 0.0
    %2275 = vadd.xlane.f32.xlu0 %v2274
    %v2276 = vpop.xlane.xlu0 %2275
    %v2277 = vsel %vm2066, %v2271, 0.0
    %2278 = vadd.xlane.f32.xlu0 %v2277
    %v2279 = vpop.xlane.xlu0 %2278
    %v2280 = vsel %vm2066, %v2272, 0.0
    %2281 = vadd.xlane.f32.xlu0 %v2280
    %v2282 = vpop.xlane.xlu0 %2281
    %v2283 = vsel %vm2066, %v2273, 0.0
    %2284 = vadd.xlane.f32.xlu0 %v2283
    %v2285 = vpop.xlane.xlu0 %2284
    %v2286 = vrcp.pop 32.0
    %v2287 = vmul.f32 %v2276, %v2286
    %v2288 = vmul.f32 %v2279, %v2286
    %v2289 = vmul.f32 %v2282, %v2286
    %v2290 = vmul.f32 %v2285, %v2286
    %v2291 = vsub.f32 %v2270, %v2287
    %v2292 = vsub.f32 %v2271, %v2288
    %v2293 = vsub.f32 %v2272, %v2289
    %v2294 = vsub.f32 %v2273, %v2290
    %v2295 = vmul.f32 %v2291, %v2291
    %v2296 = vmul.f32 %v2292, %v2292
    %v2297 = vmul.f32 %v2293, %v2293
    %v2298 = vmul.f32 %v2294, %v2294
    %v2299 = vsel %vm2066, %v2295, 0.0
    %2300 = vadd.xlane.f32.xlu0 %v2299
    %v2301 = vpop.xlane.xlu0 %2300
    %v2302 = vsel %vm2066, %v2296, 0.0
    %2303 = vadd.xlane.f32.xlu0 %v2302
    %v2304 = vpop.xlane.xlu0 %2303
    %v2305 = vsel %vm2066, %v2297, 0.0
    %2306 = vadd.xlane.f32.xlu0 %v2305
    %v2307 = vpop.xlane.xlu0 %2306
    %v2308 = vsel %vm2066, %v2298, 0.0
    %2309 = vadd.xlane.f32.xlu0 %v2308
    %v2310 = vpop.xlane.xlu0 %2309
    %v2311 = vmul.f32 %v2301, %v2286
    %v2312 = vmul.f32 %v2304, %v2286
    %v2313 = vmul.f32 %v2307, %v2286
    %v2314 = vmul.f32 %v2310, %v2286
    %v2315 = vadd.f32 %v2311, 1e-05
    %v2316 = vadd.f32 %v2312, 1e-05
    %v2317 = vadd.f32 %v2313, 1e-05
    %v2318 = vadd.f32 %v2314, 1e-05
    %v2319 = vrsqrt.pop %v2315
    %v2320 = vrsqrt.pop %v2316
    %v2321 = vrsqrt.pop %v2317
    %v2322 = vrsqrt.pop %v2318
    %v2323 = vmul.f32 %v2291, %v2319
    %v2324 = vmul.f32 %v2292, %v2320
    %v2325 = vmul.f32 %v2293, %v2321
    %v2326 = vmul.f32 %v2294, %v2322
    %2328 = vrot.lane.b32.xlu0 %v2065, 96
    %v2329 = vpop.permute.xlu0 %2328
    %v2331 = vmul.f32 %v2323, %v2329
    %v2332 = vmul.f32 %v2324, %v2329
    %v2333 = vmul.f32 %v2325, %v2329
    %v2334 = vmul.f32 %v2326, %v2329
    %2335 = vrot.lane.b32.xlu0 %v2065, 64
    %v2336 = vpop.permute.xlu0 %2335
    %v2338 = vadd.f32 %v2331, %v2336
    %v2339 = vadd.f32 %v2332, %v2336
    %v2340 = vadd.f32 %v2333, %v2336
    %v2341 = vadd.f32 %v2334, %v2336
    %v2342 = vld [vmem:[#allocation7] sm:$0xff]
    %v2343 = vld [vmem:[#allocation7 + $0x8] sm:$0xff]
    %v2344 = vld [vmem:[#allocation7 + $0x10] sm:$0xff]
    %v2345 = vld [vmem:[#allocation7 + $0x18] sm:$0xff]
    %v2346 = vlaneseq
    %v2347 = vshrl.u32 %v2346, 7
    %v2348 = vsub.s32 0, %v2347
    %v2349 = vrot.slane %v130, %v2348
    %2350 = vmatprep.subr.mxu0 0.0
    %2351 = vmatpush1.msra.mxu0 0.0
    %2352 = vmatprep.subr.mxu0 0.0
    %2353 = vmatpush1.msra.mxu0 0.0
    %2354 = vmatprep.subr.mxu0 0.0
    %2355 = vmatpush1.msra.mxu0 0.0
    %2356 = vmatprep.subr.mxu0 0.0
    %2357 = vmatpush1.msra.mxu0 0.0
    %2358 = vmatprep.subr.mxu0 0.0
    %2359 = vmatpush1.msra.mxu0 0.0
    %2360 = vmatprep.subr.mxu0 0.0
    %2361 = vmatpush1.msra.mxu0 0.0
    %2362 = vmatprep.subr.mxu0 0.0
    %2363 = vmatpush1.msra.mxu0 0.0
    %2364 = vmatprep.subr.mxu0 0.0
    %2365 = vmatpush1.msra.mxu0 0.0
    %2366 = vmatprep.subr.mxu0 0.0
    %2367 = vmatpush1.msra.mxu0 0.0
    %2368 = vmatprep.subr.mxu0 0.0
    %2369 = vmatpush1.msra.mxu0 0.0
    %2370 = vmatprep.subr.mxu0 0.0
    %2371 = vmatpush1.msra.mxu0 0.0
    %2372 = vmatprep.subr.mxu0 0.0
    %2373 = vmatpush1.msra.mxu0 0.0
    %2374 = vmatprep.subr.mxu0 0.0
    %2375 = vmatpush1.msra.mxu0 %v2345
    %2376 = vmatprep.subr.mxu0 0.0
    %2377 = vmatpush1.msra.mxu0 %v2344
    %2378 = vmatprep.subr.mxu0 0.0
    %2379 = vmatpush1.msra.mxu0 %v2343
    %2380 = vmatprep.subr.mxu0 0.0
    %2381 = vmatpush1.msra.mxu0 %v2342
    %2382 = vmatprep.subr.mxu0 0.0
    %2383 = vmatpush2.msra.mxu0 0.0
    %2384 = vmatprep.subr.mxu0 0.0
    %2385 = vmatpush2.msra.mxu0 0.0
    %2386 = vmatprep.subr.mxu0 0.0
    %2387 = vmatpush2.msra.mxu0 0.0
    %2388 = vmatprep.subr.mxu0 0.0
    %2389 = vmatpush2.msra.mxu0 0.0
    %2390 = vmatprep.subr.mxu0 0.0
    %2391 = vmatpush2.msra.mxu0 0.0
    %2392 = vmatprep.subr.mxu0 0.0
    %2393 = vmatpush2.msra.mxu0 0.0
    %2394 = vmatprep.subr.mxu0 0.0
    %2395 = vmatpush2.msra.mxu0 0.0
    %2396 = vmatprep.subr.mxu0 0.0
    %2397 = vmatpush2.msra.mxu0 0.0
    %2398 = vmatprep.subr.mxu0 0.0
    %2399 = vmatpush2.msra.mxu0 0.0
    %2400 = vmatprep.subr.mxu0 0.0
    %2401 = vmatpush2.msra.mxu0 0.0
    %2402 = vmatprep.subr.mxu0 0.0
    %2403 = vmatpush2.msra.mxu0 0.0
    %2404 = vmatprep.subr.mxu0 0.0
    %2405 = vmatpush2.msra.mxu0 0.0
    %2406 = vmatprep.subr.mxu0 0.0
    %2407 = vmatpush2.msra.mxu0 0.0
    %2408 = vmatprep.subr.mxu0 0.0
    %2409 = vmatpush2.msra.mxu0 0.0
    %2410 = vmatprep.subr.mxu0 0.0
    %2411 = vmatpush2.msra.mxu0 0.0
    %2412 = vmatprep.subr.mxu0 0.0
    %2413 = vmatpush2.msra.mxu0 0.0
    %2414 = vmatprep.mubr.f32.mxu0 0.0
    %2415 = vmatmul.mubr.f32.gmra.mxu0 %v2068
    %v2416 = vpop.f32.mrf.mxu0
    %v2417 = vadd.f32 %v2349, %v2416
    %v2418 = vpop.f32.mrf.mxu0
    %2419 = vmatprep.mubr.f32.mxu0 0.0
    %2420 = vmatmul.mubr.f32.gmra.mxu0 %v2071
    %v2421 = vpop.f32.mrf.mxu0
    %v2422 = vadd.f32 %v2349, %v2421
    %v2423 = vpop.f32.mrf.mxu0
    %2424 = vmatprep.mubr.f32.mxu0 0.0
    %2425 = vmatmul.mubr.f32.gmra.mxu0 %v2074
    %v2426 = vpop.f32.mrf.mxu0
    %v2427 = vadd.f32 %v2349, %v2426
    %v2428 = vpop.f32.mrf.mxu0
    %2429 = vmatprep.mubr.f32.mxu0 0.0
    %2430 = vmatmul.mubr.f32.gmra.mxu0 %v2077
    %v2431 = vpop.f32.mrf.mxu0
    %v2432 = vadd.f32 %v2349, %v2431
    %v2433 = vpop.f32.mrf.mxu0
    %2434 = vdwg.mxu0
    %v2435 = vtanh.pop %v2417
    %v2436 = vtanh.pop %v2422
    %v2437 = vtanh.pop %v2427
    %v2438 = vtanh.pop %v2432
    %v2439 = vsel %vm2168, %v2054, 0.0
    %v2440 = vsel %vm2168, %v2055, 0.0
    %2443 = vrot.lane.b32.xlu0 %v2056, 16
    %v2444 = vpop.permute.xlu0 %2443
    %2445 = vrot.lane.b32.xlu0 %v2057, 16
    %v2446 = vpop.permute.xlu0 %2445
    %v2449 = vsel %vm2168, 0.0, %v2444
    %v2450 = vsel %vm2168, 0.0, %v2446
    %v2452 = vsel %vm2066, %v2439, 0
    %v2455 = vsel %vm2066, %v2440, 0
    %v2458 = vsel %vm2066, %v2449, 0
    %v2461 = vsel %vm2066, %v2450, 0
    %2463 = vmatprep.subr.mxu0 0.0
    %2464 = vmatpush1.msra.mxu0 0.0
    %2465 = vmatprep.subr.mxu0 0.0
    %2466 = vmatpush1.msra.mxu0 0.0
    %2467 = vmatprep.subr.mxu0 0.0
    %2468 = vmatpush1.msra.mxu0 0.0
    %2469 = vmatprep.subr.mxu0 0.0
    %2470 = vmatpush1.msra.mxu0 0.0
    %2471 = vmatprep.subr.mxu0 0.0
    %2472 = vmatpush1.msra.mxu0 0.0
    %2473 = vmatprep.subr.mxu0 0.0
    %2474 = vmatpush1.msra.mxu0 0.0
    %2475 = vmatprep.subr.mxu0 0.0
    %2476 = vmatpush1.msra.mxu0 0.0
    %2477 = vmatprep.subr.mxu0 0.0
    %2478 = vmatpush1.msra.mxu0 0.0
    %2479 = vmatprep.subr.mxu0 0.0
    %2480 = vmatpush1.msra.mxu0 0.0
    %2481 = vmatprep.subr.mxu0 0.0
    %2482 = vmatpush1.msra.mxu0 0.0
    %2483 = vmatprep.subr.mxu0 0.0
    %2484 = vmatpush1.msra.mxu0 0.0
    %2485 = vmatprep.subr.mxu0 0.0
    %2486 = vmatpush1.msra.mxu0 0.0
    %2487 = vmatprep.subr.mxu0 0.0
    %2488 = vmatpush1.msra.mxu0 %v2438
    %2489 = vmatprep.subr.mxu0 0.0
    %2490 = vmatpush1.msra.mxu0 %v2437
    %2491 = vmatprep.subr.mxu0 0.0
    %2492 = vmatpush1.msra.mxu0 %v2436
    %2493 = vmatprep.subr.mxu0 0.0
    %2494 = vmatpush1.msra.mxu0 %v2435
    %2495 = vmatprep.subr.mxu0 0.0
    %2496 = vmatpush2.msra.mxu0 0.0
    %2497 = vmatprep.subr.mxu0 0.0
    %2498 = vmatpush2.msra.mxu0 0.0
    %2499 = vmatprep.subr.mxu0 0.0
    %2500 = vmatpush2.msra.mxu0 0.0
    %2501 = vmatprep.subr.mxu0 0.0
    %2502 = vmatpush2.msra.mxu0 0.0
    %2503 = vmatprep.subr.mxu0 0.0
    %2504 = vmatpush2.msra.mxu0 0.0
    %2505 = vmatprep.subr.mxu0 0.0
    %2506 = vmatpush2.msra.mxu0 0.0
    %2507 = vmatprep.subr.mxu0 0.0
    %2508 = vmatpush2.msra.mxu0 0.0
    %2509 = vmatprep.subr.mxu0 0.0
    %2510 = vmatpush2.msra.mxu0 0.0
    %2511 = vmatprep.subr.mxu0 0.0
    %2512 = vmatpush2.msra.mxu0 0.0
    %2513 = vmatprep.subr.mxu0 0.0
    %2514 = vmatpush2.msra.mxu0 0.0
    %2515 = vmatprep.subr.mxu0 0.0
    %2516 = vmatpush2.msra.mxu0 0.0
    %2517 = vmatprep.subr.mxu0 0.0
    %2518 = vmatpush2.msra.mxu0 0.0
    %2519 = vmatprep.subr.mxu0 0.0
    %2520 = vmatpush2.msra.mxu0 0.0
    %2521 = vmatprep.subr.mxu0 0.0
    %2522 = vmatpush2.msra.mxu0 0.0
    %2523 = vmatprep.subr.mxu0 0.0
    %2524 = vmatpush2.msra.mxu0 0.0
    %2525 = vmatprep.subr.mxu0 0.0
    %2526 = vmatpush2.msra.mxu0 0.0
    %2527 = vmatprep.mubr.f32.mxu0 0.0
    %2528 = vmatmul.mubr.f32.gmra.mxu0 %v2452
    %v2529 = vpop.f32.mrf.mxu0
    %v2530 = vadd.f32 0.0, %v2529
    %v2531 = vpop.f32.mrf.mxu0
    %2532 = vmatprep.mubr.f32.mxu0 0.0
    %2533 = vmatmul.mubr.f32.gmra.mxu0 %v2455
    %v2534 = vpop.f32.mrf.mxu0
    %v2535 = vadd.f32 0.0, %v2534
    %v2536 = vpop.f32.mrf.mxu0
    %2537 = vmatprep.mubr.f32.mxu0 0.0
    %2538 = vmatmul.mubr.f32.gmra.mxu0 %v2458
    %v2539 = vpop.f32.mrf.mxu0
    %v2540 = vadd.f32 0.0, %v2539
    %v2541 = vpop.f32.mrf.mxu0
    %2542 = vmatprep.mubr.f32.mxu0 0.0
    %2543 = vmatmul.mubr.f32.gmra.mxu0 %v2461
    %v2544 = vpop.f32.mrf.mxu0
    %v2545 = vadd.f32 0.0, %v2544
    %v2546 = vpop.f32.mrf.mxu0
    %2547 = vdwg.mxu0
    %v2548 = vadd.f32 %v126, %v2530
    %v2549 = vadd.f32 %v127, %v2535
    %v2550 = vadd.f32 %v128, %v2540
    %v2551 = vadd.f32 %v129, %v2545
    %v2552 = vld [vmem:[#allocation8] sm:$0xff]
    %v2553 = vld [vmem:[#allocation8 + $0x8] sm:$0xff]
    %v2554 = vld [vmem:[#allocation8 + $0x10] sm:$0xff]
    %v2555 = vld [vmem:[#allocation8 + $0x18] sm:$0xff]
    %v2556 = vlaneseq
    %v2557 = vshrl.u32 %v2556, 7
    %v2558 = vsub.s32 1, %v2557
    %v2559 = vrot.slane %v130, %v2558
    %v2561 = vsel %vm2066, %v2548, 0
    %v2564 = vsel %vm2066, %v2549, 0
    %v2567 = vsel %vm2066, %v2550, 0
    %v2570 = vsel %vm2066, %v2551, 0
    %2572 = vmatprep.subr.mxu0 0.0
    %2573 = vmatpush1.msra.mxu0 0.0
    %2574 = vmatprep.subr.mxu0 0.0
    %2575 = vmatpush1.msra.mxu0 0.0
    %2576 = vmatprep.subr.mxu0 0.0
    %2577 = vmatpush1.msra.mxu0 0.0
    %2578 = vmatprep.subr.mxu0 0.0
    %2579 = vmatpush1.msra.mxu0 0.0
    %2580 = vmatprep.subr.mxu0 0.0
    %2581 = vmatpush1.msra.mxu0 0.0
    %2582 = vmatprep.subr.mxu0 0.0
    %2583 = vmatpush1.msra.mxu0 0.0
    %2584 = vmatprep.subr.mxu0 0.0
    %2585 = vmatpush1.msra.mxu0 0.0
    %2586 = vmatprep.subr.mxu0 0.0
    %2587 = vmatpush1.msra.mxu0 0.0
    %2588 = vmatprep.subr.mxu0 0.0
    %2589 = vmatpush1.msra.mxu0 0.0
    %2590 = vmatprep.subr.mxu0 0.0
    %2591 = vmatpush1.msra.mxu0 0.0
    %2592 = vmatprep.subr.mxu0 0.0
    %2593 = vmatpush1.msra.mxu0 0.0
    %2594 = vmatprep.subr.mxu0 0.0
    %2595 = vmatpush1.msra.mxu0 0.0
    %2596 = vmatprep.subr.mxu0 0.0
    %2597 = vmatpush1.msra.mxu0 %v2555
    %2598 = vmatprep.subr.mxu0 0.0
    %2599 = vmatpush1.msra.mxu0 %v2554
    %2600 = vmatprep.subr.mxu0 0.0
    %2601 = vmatpush1.msra.mxu0 %v2553
    %2602 = vmatprep.subr.mxu0 0.0
    %2603 = vmatpush1.msra.mxu0 %v2552
    %2604 = vmatprep.subr.mxu0 0.0
    %2605 = vmatpush2.msra.mxu0 0.0
    %2606 = vmatprep.subr.mxu0 0.0
    %2607 = vmatpush2.msra.mxu0 0.0
    %2608 = vmatprep.subr.mxu0 0.0
    %2609 = vmatpush2.msra.mxu0 0.0
    %2610 = vmatprep.subr.mxu0 0.0
    %2611 = vmatpush2.msra.mxu0 0.0
    %2612 = vmatprep.subr.mxu0 0.0
    %2613 = vmatpush2.msra.mxu0 0.0
    %2614 = vmatprep.subr.mxu0 0.0
    %2615 = vmatpush2.msra.mxu0 0.0
    %2616 = vmatprep.subr.mxu0 0.0
    %2617 = vmatpush2.msra.mxu0 0.0
    %2618 = vmatprep.subr.mxu0 0.0
    %2619 = vmatpush2.msra.mxu0 0.0
    %2620 = vmatprep.subr.mxu0 0.0
    %2621 = vmatpush2.msra.mxu0 0.0
    %2622 = vmatprep.subr.mxu0 0.0
    %2623 = vmatpush2.msra.mxu0 0.0
    %2624 = vmatprep.subr.mxu0 0.0
    %2625 = vmatpush2.msra.mxu0 0.0
    %2626 = vmatprep.subr.mxu0 0.0
    %2627 = vmatpush2.msra.mxu0 0.0
    %2628 = vmatprep.subr.mxu0 0.0
    %2629 = vmatpush2.msra.mxu0 0.0
    %2630 = vmatprep.subr.mxu0 0.0
    %2631 = vmatpush2.msra.mxu0 0.0
    %2632 = vmatprep.subr.mxu0 0.0
    %2633 = vmatpush2.msra.mxu0 0.0
    %2634 = vmatprep.subr.mxu0 0.0
    %2635 = vmatpush2.msra.mxu0 0.0
    %2636 = vmatprep.mubr.f32.mxu0 0.0
    %2637 = vmatmul.mubr.f32.gmra.mxu0 %v2561
    %v2638 = vpop.f32.mrf.mxu0
    %v2639 = vadd.f32 %v2559, %v2638
    %v2640 = vpop.f32.mrf.mxu0
    %2641 = vmatprep.mubr.f32.mxu0 0.0
    %2642 = vmatmul.mubr.f32.gmra.mxu0 %v2564
    %v2643 = vpop.f32.mrf.mxu0
    %v2644 = vadd.f32 %v2559, %v2643
    %v2645 = vpop.f32.mrf.mxu0
    %2646 = vmatprep.mubr.f32.mxu0 0.0
    %2647 = vmatmul.mubr.f32.gmra.mxu0 %v2567
    %v2648 = vpop.f32.mrf.mxu0
    %v2649 = vadd.f32 %v2559, %v2648
    %v2650 = vpop.f32.mrf.mxu0
    %2651 = vmatprep.mubr.f32.mxu0 0.0
    %2652 = vmatmul.mubr.f32.gmra.mxu0 %v2570
    %v2653 = vpop.f32.mrf.mxu0
    %v2654 = vadd.f32 %v2559, %v2653
    %v2655 = vpop.f32.mrf.mxu0
    %2656 = vdwg.mxu0
    %v2657 = vtanh.pop %v2639
    %v2658 = vtanh.pop %v2644
    %v2659 = vtanh.pop %v2649
    %v2660 = vtanh.pop %v2654
    %v2661 = vsel %vm2066, %v2657, 0.0
    %2662 = vadd.xlane.f32.xlu0 %v2661
    %v2663 = vpop.xlane.xlu0 %2662
    %v2664 = vsel %vm2066, %v2658, 0.0
    %2665 = vadd.xlane.f32.xlu0 %v2664
    %v2666 = vpop.xlane.xlu0 %2665
    %v2667 = vsel %vm2066, %v2659, 0.0
    %2668 = vadd.xlane.f32.xlu0 %v2667
    %v2669 = vpop.xlane.xlu0 %2668
    %v2670 = vsel %vm2066, %v2660, 0.0
    %2671 = vadd.xlane.f32.xlu0 %v2670
    %v2672 = vpop.xlane.xlu0 %2671
    %v2673 = vmul.f32 %v2663, %v2286
    %v2674 = vmul.f32 %v2666, %v2286
    %v2675 = vmul.f32 %v2669, %v2286
    %v2676 = vmul.f32 %v2672, %v2286
    %v2677 = vsub.f32 %v2657, %v2673
    %v2678 = vsub.f32 %v2658, %v2674
    %v2679 = vsub.f32 %v2659, %v2675
    %v2680 = vsub.f32 %v2660, %v2676
    %v2681 = vmul.f32 %v2677, %v2677
    %v2682 = vmul.f32 %v2678, %v2678
    %v2683 = vmul.f32 %v2679, %v2679
    %v2684 = vmul.f32 %v2680, %v2680
    %v2685 = vsel %vm2066, %v2681, 0.0
    %2686 = vadd.xlane.f32.xlu0 %v2685
    %v2687 = vpop.xlane.xlu0 %2686
    %v2688 = vsel %vm2066, %v2682, 0.0
    %2689 = vadd.xlane.f32.xlu0 %v2688
    %v2690 = vpop.xlane.xlu0 %2689
    %v2691 = vsel %vm2066, %v2683, 0.0
    %2692 = vadd.xlane.f32.xlu0 %v2691
    %v2693 = vpop.xlane.xlu0 %2692
    %v2694 = vsel %vm2066, %v2684, 0.0
    %2695 = vadd.xlane.f32.xlu0 %v2694
    %v2696 = vpop.xlane.xlu0 %2695
    %v2697 = vmul.f32 %v2687, %v2286
    %v2698 = vmul.f32 %v2690, %v2286
    %v2699 = vmul.f32 %v2693, %v2286
    %v2700 = vmul.f32 %v2696, %v2286
    %v2701 = vadd.f32 %v2697, 1e-05
    %v2702 = vadd.f32 %v2698, 1e-05
    %v2703 = vadd.f32 %v2699, 1e-05
    %v2704 = vadd.f32 %v2700, 1e-05
    %v2705 = vrsqrt.pop %v2701
    %v2706 = vrsqrt.pop %v2702
    %v2707 = vrsqrt.pop %v2703
    %v2708 = vrsqrt.pop %v2704
    %v2709 = vmul.f32 %v2677, %v2705
    %v2710 = vmul.f32 %v2678, %v2706
    %v2711 = vmul.f32 %v2679, %v2707
    %v2712 = vmul.f32 %v2680, %v2708
    %v2713 = vlaneseq
    %v2714 = vshrl.u32 %v2713, 7
    %v2715 = vsub.s32 2, %v2714
    %v2716 = vrot.slane %v130, %v2715
    %v2717 = vmul.f32 %v2709, %v2716
    %v2718 = vmul.f32 %v2710, %v2716
    %v2719 = vmul.f32 %v2711, %v2716
    %v2720 = vmul.f32 %v2712, %v2716
    %v2721 = vlaneseq
    %v2722 = vshrl.u32 %v2721, 7
    %v2723 = vsub.s32 3, %v2722
    %v2724 = vrot.slane %v130, %v2723
    %v2725 = vadd.f32 %v2717, %v2724
    %v2726 = vadd.f32 %v2718, %v2724
    %v2727 = vadd.f32 %v2719, %v2724
    %v2728 = vadd.f32 %v2720, %v2724
    %2731 = vrot.lane.b32.xlu0 %v2054, 112
    %v2732 = vpop.permute.xlu0 %2731
    %2733 = vrot.lane.b32.xlu0 %v2055, 112
    %v2734 = vpop.permute.xlu0 %2733
    %v2737 = vsel %vm2168, %v2732, 0.0
    %v2738 = vsel %vm2168, %v2734, 0.0
    %v2739 = vsel %vm2168, 0.0, %v2056
    %v2740 = vsel %vm2168, 0.0, %v2057
    %2745 = vrot.lane.b32.xlu0 %v2435, 96
    %v2746 = vpop.permute.xlu0 %2745
    %2747 = vrot.lane.b32.xlu0 %v2436, 96
    %v2748 = vpop.permute.xlu0 %2747
    %2749 = vrot.lane.b32.xlu0 %v2437, 96
    %v2750 = vpop.permute.xlu0 %2749
    %2751 = vrot.lane.b32.xlu0 %v2438, 96
    %v2752 = vpop.permute.xlu0 %2751
    %v2758 = vsel %vm2066, %v2737, 0
    %v2761 = vsel %vm2066, %v2738, 0
    %v2764 = vsel %vm2066, %v2739, 0
    %v2767 = vsel %vm2066, %v2740, 0
    %2769 = vmatprep.subr.mxu0 0.0
    %2770 = vmatpush1.msra.mxu0 0.0
    %2771 = vmatprep.subr.mxu0 0.0
    %2772 = vmatpush1.msra.mxu0 0.0
    %2773 = vmatprep.subr.mxu0 0.0
    %2774 = vmatpush1.msra.mxu0 0.0
    %2775 = vmatprep.subr.mxu0 0.0
    %2776 = vmatpush1.msra.mxu0 0.0
    %2777 = vmatprep.subr.mxu0 0.0
    %2778 = vmatpush1.msra.mxu0 0.0
    %2779 = vmatprep.subr.mxu0 0.0
    %2780 = vmatpush1.msra.mxu0 0.0
    %2781 = vmatprep.subr.mxu0 0.0
    %2782 = vmatpush1.msra.mxu0 0.0
    %2783 = vmatprep.subr.mxu0 0.0
    %2784 = vmatpush1.msra.mxu0 0.0
    %2785 = vmatprep.subr.mxu0 0.0
    %2786 = vmatpush1.msra.mxu0 0.0
    %2787 = vmatprep.subr.mxu0 0.0
    %2788 = vmatpush1.msra.mxu0 0.0
    %2789 = vmatprep.subr.mxu0 0.0
    %2790 = vmatpush1.msra.mxu0 0.0
    %2791 = vmatprep.subr.mxu0 0.0
    %2792 = vmatpush1.msra.mxu0 0.0
    %2793 = vmatprep.subr.mxu0 0.0
    %2794 = vmatpush1.msra.mxu0 %v2752
    %2795 = vmatprep.subr.mxu0 0.0
    %2796 = vmatpush1.msra.mxu0 %v2750
    %2797 = vmatprep.subr.mxu0 0.0
    %2798 = vmatpush1.msra.mxu0 %v2748
    %2799 = vmatprep.subr.mxu0 0.0
    %2800 = vmatpush1.msra.mxu0 %v2746
    %2801 = vmatprep.subr.mxu0 0.0
    %2802 = vmatpush2.msra.mxu0 0.0
    %2803 = vmatprep.subr.mxu0 0.0
    %2804 = vmatpush2.msra.mxu0 0.0
    %2805 = vmatprep.subr.mxu0 0.0
    %2806 = vmatpush2.msra.mxu0 0.0
    %2807 = vmatprep.subr.mxu0 0.0
    %2808 = vmatpush2.msra.mxu0 0.0
    %2809 = vmatprep.subr.mxu0 0.0
    %2810 = vmatpush2.msra.mxu0 0.0
    %2811 = vmatprep.subr.mxu0 0.0
    %2812 = vmatpush2.msra.mxu0 0.0
    %2813 = vmatprep.subr.mxu0 0.0
    %2814 = vmatpush2.msra.mxu0 0.0
    %2815 = vmatprep.subr.mxu0 0.0
    %2816 = vmatpush2.msra.mxu0 0.0
    %2817 = vmatprep.subr.mxu0 0.0
    %2818 = vmatpush2.msra.mxu0 0.0
    %2819 = vmatprep.subr.mxu0 0.0
    %2820 = vmatpush2.msra.mxu0 0.0
    %2821 = vmatprep.subr.mxu0 0.0
    %2822 = vmatpush2.msra.mxu0 0.0
    %2823 = vmatprep.subr.mxu0 0.0
    %2824 = vmatpush2.msra.mxu0 0.0
    %2825 = vmatprep.subr.mxu0 0.0
    %2826 = vmatpush2.msra.mxu0 0.0
    %2827 = vmatprep.subr.mxu0 0.0
    %2828 = vmatpush2.msra.mxu0 0.0
    %2829 = vmatprep.subr.mxu0 0.0
    %2830 = vmatpush2.msra.mxu0 0.0
    %2831 = vmatprep.subr.mxu0 0.0
    %2832 = vmatpush2.msra.mxu0 0.0
    %2833 = vmatprep.mubr.f32.mxu0 0.0
    %2834 = vmatmul.mubr.f32.gmra.mxu0 %v2758
    %v2835 = vpop.f32.mrf.mxu0
    %v2836 = vadd.f32 0.0, %v2835
    %v2837 = vpop.f32.mrf.mxu0
    %2838 = vmatprep.mubr.f32.mxu0 0.0
    %2839 = vmatmul.mubr.f32.gmra.mxu0 %v2761
    %v2840 = vpop.f32.mrf.mxu0
    %v2841 = vadd.f32 0.0, %v2840
    %v2842 = vpop.f32.mrf.mxu0
    %2843 = vmatprep.mubr.f32.mxu0 0.0
    %2844 = vmatmul.mubr.f32.gmra.mxu0 %v2764
    %v2845 = vpop.f32.mrf.mxu0
    %v2846 = vadd.f32 0.0, %v2845
    %v2847 = vpop.f32.mrf.mxu0
    %2848 = vmatprep.mubr.f32.mxu0 0.0
    %2849 = vmatmul.mubr.f32.gmra.mxu0 %v2767
    %v2850 = vpop.f32.mrf.mxu0
    %v2851 = vadd.f32 0.0, %v2850
    %v2852 = vpop.f32.mrf.mxu0
    %2853 = vdwg.mxu0
    %v2854 = vadd.f32 %v126, %v2836
    %v2855 = vadd.f32 %v127, %v2841
    %v2856 = vadd.f32 %v128, %v2846
    %v2857 = vadd.f32 %v129, %v2851
    %2862 = vrot.lane.b32.xlu0 %v2552, 96
    %v2863 = vpop.permute.xlu0 %2862
    %2864 = vrot.lane.b32.xlu0 %v2553, 96
    %v2865 = vpop.permute.xlu0 %2864
    %2866 = vrot.lane.b32.xlu0 %v2554, 96
    %v2867 = vpop.permute.xlu0 %2866
    %2868 = vrot.lane.b32.xlu0 %v2555, 96
    %v2869 = vpop.permute.xlu0 %2868
    %2875 = vrot.lane.b32.xlu0 %v2559, 96
    %v2876 = vpop.permute.xlu0 %2875
    %v2879 = vsel %vm2066, %v2854, 0
    %v2882 = vsel %vm2066, %v2855, 0
    %v2885 = vsel %vm2066, %v2856, 0
    %v2888 = vsel %vm2066, %v2857, 0
    %2890 = vmatprep.subr.mxu0 0.0
    %2891 = vmatpush1.msra.mxu0 0.0
    %2892 = vmatprep.subr.mxu0 0.0
    %2893 = vmatpush1.msra.mxu0 0.0
    %2894 = vmatprep.subr.mxu0 0.0
    %2895 = vmatpush1.msra.mxu0 0.0
    %2896 = vmatprep.subr.mxu0 0.0
    %2897 = vmatpush1.msra.mxu0 0.0
    %2898 = vmatprep.subr.mxu0 0.0
    %2899 = vmatpush1.msra.mxu0 0.0
    %2900 = vmatprep.subr.mxu0 0.0
    %2901 = vmatpush1.msra.mxu0 0.0
    %2902 = vmatprep.subr.mxu0 0.0
    %2903 = vmatpush1.msra.mxu0 0.0
    %2904 = vmatprep.subr.mxu0 0.0
    %2905 = vmatpush1.msra.mxu0 0.0
    %2906 = vmatprep.subr.mxu0 0.0
    %2907 = vmatpush1.msra.mxu0 0.0
    %2908 = vmatprep.subr.mxu0 0.0
    %2909 = vmatpush1.msra.mxu0 0.0
    %2910 = vmatprep.subr.mxu0 0.0
    %2911 = vmatpush1.msra.mxu0 0.0
    %2912 = vmatprep.subr.mxu0 0.0
    %2913 = vmatpush1.msra.mxu0 0.0
    %2914 = vmatprep.subr.mxu0 0.0
    %2915 = vmatpush1.msra.mxu0 %v2869
    %2916 = vmatprep.subr.mxu0 0.0
    %2917 = vmatpush1.msra.mxu0 %v2867
    %2918 = vmatprep.subr.mxu0 0.0
    %2919 = vmatpush1.msra.mxu0 %v2865
    %2920 = vmatprep.subr.mxu0 0.0
    %2921 = vmatpush1.msra.mxu0 %v2863
    %2922 = vmatprep.subr.mxu0 0.0
    %2923 = vmatpush2.msra.mxu0 0.0
    %2924 = vmatprep.subr.mxu0 0.0
    %2925 = vmatpush2.msra.mxu0 0.0
    %2926 = vmatprep.subr.mxu0 0.0
    %2927 = vmatpush2.msra.mxu0 0.0
    %2928 = vmatprep.subr.mxu0 0.0
    %2929 = vmatpush2.msra.mxu0 0.0
    %2930 = vmatprep.subr.mxu0 0.0
    %2931 = vmatpush2.msra.mxu0 0.0
    %2932 = vmatprep.subr.mxu0 0.0
    %2933 = vmatpush2.msra.mxu0 0.0
    %2934 = vmatprep.subr.mxu0 0.0
    %2935 = vmatpush2.msra.mxu0 0.0
    %2936 = vmatprep.subr.mxu0 0.0
    %2937 = vmatpush2.msra.mxu0 0.0
    %2938 = vmatprep.subr.mxu0 0.0
    %2939 = vmatpush2.msra.mxu0 0.0
    %2940 = vmatprep.subr.mxu0 0.0
    %2941 = vmatpush2.msra.mxu0 0.0
    %2942 = vmatprep.subr.mxu0 0.0
    %2943 = vmatpush2.msra.mxu0 0.0
    %2944 = vmatprep.subr.mxu0 0.0
    %2945 = vmatpush2.msra.mxu0 0.0
    %2946 = vmatprep.subr.mxu0 0.0
    %2947 = vmatpush2.msra.mxu0 0.0
    %2948 = vmatprep.subr.mxu0 0.0
    %2949 = vmatpush2.msra.mxu0 0.0
    %2950 = vmatprep.subr.mxu0 0.0
    %2951 = vmatpush2.msra.mxu0 0.0
    %2952 = vmatprep.subr.mxu0 0.0
    %2953 = vmatpush2.msra.mxu0 0.0
    %2954 = vmatprep.mubr.f32.mxu0 0.0
    %2955 = vmatmul.mubr.f32.gmra.mxu0 %v2879
    %v2956 = vpop.f32.mrf.mxu0
    %v2957 = vadd.f32 %v2876, %v2956
    %v2958 = vpop.f32.mrf.mxu0
    %2959 = vmatprep.mubr.f32.mxu0 0.0
    %2960 = vmatmul.mubr.f32.gmra.mxu0 %v2882
    %v2961 = vpop.f32.mrf.mxu0
    %v2962 = vadd.f32 %v2876, %v2961
    %v2963 = vpop.f32.mrf.mxu0
    %2964 = vmatprep.mubr.f32.mxu0 0.0
    %2965 = vmatmul.mubr.f32.gmra.mxu0 %v2885
    %v2966 = vpop.f32.mrf.mxu0
    %v2967 = vadd.f32 %v2876, %v2966
    %v2968 = vpop.f32.mrf.mxu0
    %2969 = vmatprep.mubr.f32.mxu0 0.0
    %2970 = vmatmul.mubr.f32.gmra.mxu0 %v2888
    %v2971 = vpop.f32.mrf.mxu0
    %v2972 = vadd.f32 %v2876, %v2971
    %v2973 = vpop.f32.mrf.mxu0
    %2974 = vdwg.mxu0
    %v2975 = vtanh.pop %v2957
    %v2976 = vtanh.pop %v2962
    %v2977 = vtanh.pop %v2967
    %v2978 = vtanh.pop %v2972
    %v2979 = vsel %vm2066, %v2975, 0.0
    %2980 = vadd.xlane.f32.xlu0 %v2979
    %v2981 = vpop.xlane.xlu0 %2980
    %v2982 = vsel %vm2066, %v2976, 0.0
    %2983 = vadd.xlane.f32.xlu0 %v2982
    %v2984 = vpop.xlane.xlu0 %2983
    %v2985 = vsel %vm2066, %v2977, 0.0
    %2986 = vadd.xlane.f32.xlu0 %v2985
    %v2987 = vpop.xlane.xlu0 %2986
    %v2988 = vsel %vm2066, %v2978, 0.0
    %2989 = vadd.xlane.f32.xlu0 %v2988
    %v2990 = vpop.xlane.xlu0 %2989
    %v2991 = vmul.f32 %v2981, %v2286
    %v2992 = vmul.f32 %v2984, %v2286
    %v2993 = vmul.f32 %v2987, %v2286
    %v2994 = vmul.f32 %v2990, %v2286
    %v2995 = vsub.f32 %v2975, %v2991
    %v2996 = vsub.f32 %v2976, %v2992
    %v2997 = vsub.f32 %v2977, %v2993
    %v2998 = vsub.f32 %v2978, %v2994
    %v2999 = vmul.f32 %v2995, %v2995
    %v3000 = vmul.f32 %v2996, %v2996
    %v3001 = vmul.f32 %v2997, %v2997
    %v3002 = vmul.f32 %v2998, %v2998
    %v3003 = vsel %vm2066, %v2999, 0.0
    %3004 = vadd.xlane.f32.xlu0 %v3003
    %v3005 = vpop.xlane.xlu0 %3004
    %v3006 = vsel %vm2066, %v3000, 0.0
    %3007 = vadd.xlane.f32.xlu0 %v3006
    %v3008 = vpop.xlane.xlu0 %3007
    %v3009 = vsel %vm2066, %v3001, 0.0
    %3010 = vadd.xlane.f32.xlu0 %v3009
    %v3011 = vpop.xlane.xlu0 %3010
    %v3012 = vsel %vm2066, %v3002, 0.0
    %3013 = vadd.xlane.f32.xlu0 %v3012
    %v3014 = vpop.xlane.xlu0 %3013
    %v3015 = vmul.f32 %v3005, %v2286
    %v3016 = vmul.f32 %v3008, %v2286
    %v3017 = vmul.f32 %v3011, %v2286
    %v3018 = vmul.f32 %v3014, %v2286
    %v3019 = vadd.f32 %v3015, 1e-05
    %v3020 = vadd.f32 %v3016, 1e-05
    %v3021 = vadd.f32 %v3017, 1e-05
    %v3022 = vadd.f32 %v3018, 1e-05
    %v3023 = vrsqrt.pop %v3019
    %v3024 = vrsqrt.pop %v3020
    %v3025 = vrsqrt.pop %v3021
    %v3026 = vrsqrt.pop %v3022
    %v3027 = vmul.f32 %v2995, %v3023
    %v3028 = vmul.f32 %v2996, %v3024
    %v3029 = vmul.f32 %v2997, %v3025
    %v3030 = vmul.f32 %v2998, %v3026
    %3032 = vrot.lane.b32.xlu0 %v2716, 96
    %v3033 = vpop.permute.xlu0 %3032
    %v3035 = vmul.f32 %v3027, %v3033
    %v3036 = vmul.f32 %v3028, %v3033
    %v3037 = vmul.f32 %v3029, %v3033
    %v3038 = vmul.f32 %v3030, %v3033
    %3040 = vrot.lane.b32.xlu0 %v2724, 96
    %v3041 = vpop.permute.xlu0 %3040
    %v3043 = vadd.f32 %v3035, %v3041
    %v3044 = vadd.f32 %v3036, %v3041
    %v3045 = vadd.f32 %v3037, %v3041
    %v3046 = vadd.f32 %v3038, %v3041
    %v3047 = vadd.f32 %v2725, %v3043
    %v3048 = vadd.f32 %v2726, %v3044
    %v3049 = vadd.f32 %v2727, %v3045
    %v3050 = vadd.f32 %v2728, %v3046
    %v3051 = vadd.f32 %v2338, %v3047
    %v3052 = vadd.f32 %v2339, %v3048
    %v3053 = vadd.f32 %v2340, %v3049
    %v3054 = vadd.f32 %v2341, %v3050
    %3059 = vrot.lane.b32.xlu0 %v2342, 64
    %v3060 = vpop.permute.xlu0 %3059
    %3061 = vrot.lane.b32.xlu0 %v2343, 64
    %v3062 = vpop.permute.xlu0 %3061
    %3063 = vrot.lane.b32.xlu0 %v2344, 64
    %v3064 = vpop.permute.xlu0 %3063
    %3065 = vrot.lane.b32.xlu0 %v2345, 64
    %v3066 = vpop.permute.xlu0 %3065
    %3072 = vrot.lane.b32.xlu0 %v2349, 64
    %v3073 = vpop.permute.xlu0 %3072
    %v3076 = vsel %vm2066, %v3051, 0
    %v3079 = vsel %vm2066, %v3052, 0
    %v3082 = vsel %vm2066, %v3053, 0
    %v3085 = vsel %vm2066, %v3054, 0
    %3087 = vmatprep.subr.mxu0 0.0
    %3088 = vmatpush1.msra.mxu0 0.0
    %3089 = vmatprep.subr.mxu0 0.0
    %3090 = vmatpush1.msra.mxu0 0.0
    %3091 = vmatprep.subr.mxu0 0.0
    %3092 = vmatpush1.msra.mxu0 0.0
    %3093 = vmatprep.subr.mxu0 0.0
    %3094 = vmatpush1.msra.mxu0 0.0
    %3095 = vmatprep.subr.mxu0 0.0
    %3096 = vmatpush1.msra.mxu0 0.0
    %3097 = vmatprep.subr.mxu0 0.0
    %3098 = vmatpush1.msra.mxu0 0.0
    %3099 = vmatprep.subr.mxu0 0.0
    %3100 = vmatpush1.msra.mxu0 0.0
    %3101 = vmatprep.subr.mxu0 0.0
    %3102 = vmatpush1.msra.mxu0 0.0
    %3103 = vmatprep.subr.mxu0 0.0
    %3104 = vmatpush1.msra.mxu0 0.0
    %3105 = vmatprep.subr.mxu0 0.0
    %3106 = vmatpush1.msra.mxu0 0.0
    %3107 = vmatprep.subr.mxu0 0.0
    %3108 = vmatpush1.msra.mxu0 0.0
    %3109 = vmatprep.subr.mxu0 0.0
    %3110 = vmatpush1.msra.mxu0 0.0
    %3111 = vmatprep.subr.mxu0 0.0
    %3112 = vmatpush1.msra.mxu0 %v3066
    %3113 = vmatprep.subr.mxu0 0.0
    %3114 = vmatpush1.msra.mxu0 %v3064
    %3115 = vmatprep.subr.mxu0 0.0
    %3116 = vmatpush1.msra.mxu0 %v3062
    %3117 = vmatprep.subr.mxu0 0.0
    %3118 = vmatpush1.msra.mxu0 %v3060
    %3119 = vmatprep.subr.mxu0 0.0
    %3120 = vmatpush2.msra.mxu0 0.0
    %3121 = vmatprep.subr.mxu0 0.0
    %3122 = vmatpush2.msra.mxu0 0.0
    %3123 = vmatprep.subr.mxu0 0.0
    %3124 = vmatpush2.msra.mxu0 0.0
    %3125 = vmatprep.subr.mxu0 0.0
    %3126 = vmatpush2.msra.mxu0 0.0
    %3127 = vmatprep.subr.mxu0 0.0
    %3128 = vmatpush2.msra.mxu0 0.0
    %3129 = vmatprep.subr.mxu0 0.0
    %3130 = vmatpush2.msra.mxu0 0.0
    %3131 = vmatprep.subr.mxu0 0.0
    %3132 = vmatpush2.msra.mxu0 0.0
    %3133 = vmatprep.subr.mxu0 0.0
    %3134 = vmatpush2.msra.mxu0 0.0
    %3135 = vmatprep.subr.mxu0 0.0
    %3136 = vmatpush2.msra.mxu0 0.0
    %3137 = vmatprep.subr.mxu0 0.0
    %3138 = vmatpush2.msra.mxu0 0.0
    %3139 = vmatprep.subr.mxu0 0.0
    %3140 = vmatpush2.msra.mxu0 0.0
    %3141 = vmatprep.subr.mxu0 0.0
    %3142 = vmatpush2.msra.mxu0 0.0
    %3143 = vmatprep.subr.mxu0 0.0
    %3144 = vmatpush2.msra.mxu0 0.0
    %3145 = vmatprep.subr.mxu0 0.0
    %3146 = vmatpush2.msra.mxu0 0.0
    %3147 = vmatprep.subr.mxu0 0.0
    %3148 = vmatpush2.msra.mxu0 0.0
    %3149 = vmatprep.subr.mxu0 0.0
    %3150 = vmatpush2.msra.mxu0 0.0
    %3151 = vmatprep.mubr.f32.mxu0 0.0
    %3152 = vmatmul.mubr.f32.gmra.mxu0 %v3076
    %v3153 = vpop.f32.mrf.mxu0
    %v3154 = vadd.f32 %v3073, %v3153
    %v3155 = vpop.f32.mrf.mxu0
    %3156 = vmatprep.mubr.f32.mxu0 0.0
    %3157 = vmatmul.mubr.f32.gmra.mxu0 %v3079
    %v3158 = vpop.f32.mrf.mxu0
    %v3159 = vadd.f32 %v3073, %v3158
    %v3160 = vpop.f32.mrf.mxu0
    %3161 = vmatprep.mubr.f32.mxu0 0.0
    %3162 = vmatmul.mubr.f32.gmra.mxu0 %v3082
    %v3163 = vpop.f32.mrf.mxu0
    %v3164 = vadd.f32 %v3073, %v3163
    %v3165 = vpop.f32.mrf.mxu0
    %3166 = vmatprep.mubr.f32.mxu0 0.0
    %3167 = vmatmul.mubr.f32.gmra.mxu0 %v3085
    %v3168 = vpop.f32.mrf.mxu0
    %v3169 = vadd.f32 %v3073, %v3168
    %v3170 = vpop.f32.mrf.mxu0
    %3171 = vdwg.mxu0
    %v3172 = vtanh.pop %v3154
    %v3173 = vtanh.pop %v3159
    %v3174 = vtanh.pop %v3164
    %v3175 = vtanh.pop %v3169
    %3176 = vrot.lane.b32.xlu0 %v2054, 96
    %v3177 = vpop.permute.xlu0 %3176
    %3178 = vrot.lane.b32.xlu0 %v2055, 96
    %v3179 = vpop.permute.xlu0 %3178
    %v3182 = vsel %vm2168, %v3177, 0.0
    %v3183 = vsel %vm2168, %v3179, 0.0
    %3184 = vrot.lane.b32.xlu0 %v2056, 112
    %v3185 = vpop.permute.xlu0 %3184
    %3186 = vrot.lane.b32.xlu0 %v2057, 112
    %v3187 = vpop.permute.xlu0 %3186
    %v3190 = vsel %vm2168, 0.0, %v3185
    %v3191 = vsel %vm2168, 0.0, %v3187
    %v3193 = vsel %vm2066, %v3182, 0
    %v3196 = vsel %vm2066, %v3183, 0
    %v3199 = vsel %vm2066, %v3190, 0
    %v3202 = vsel %vm2066, %v3191, 0
    %3204 = vmatprep.subr.mxu0 0.0
    %3205 = vmatpush1.msra.mxu0 0.0
    %3206 = vmatprep.subr.mxu0 0.0
    %3207 = vmatpush1.msra.mxu0 0.0
    %3208 = vmatprep.subr.mxu0 0.0
    %3209 = vmatpush1.msra.mxu0 0.0
    %3210 = vmatprep.subr.mxu0 0.0
    %3211 = vmatpush1.msra.mxu0 0.0
    %3212 = vmatprep.subr.mxu0 0.0
    %3213 = vmatpush1.msra.mxu0 0.0
    %3214 = vmatprep.subr.mxu0 0.0
    %3215 = vmatpush1.msra.mxu0 0.0
    %3216 = vmatprep.subr.mxu0 0.0
    %3217 = vmatpush1.msra.mxu0 0.0
    %3218 = vmatprep.subr.mxu0 0.0
    %3219 = vmatpush1.msra.mxu0 0.0
    %3220 = vmatprep.subr.mxu0 0.0
    %3221 = vmatpush1.msra.mxu0 0.0
    %3222 = vmatprep.subr.mxu0 0.0
    %3223 = vmatpush1.msra.mxu0 0.0
    %3224 = vmatprep.subr.mxu0 0.0
    %3225 = vmatpush1.msra.mxu0 0.0
    %3226 = vmatprep.subr.mxu0 0.0
    %3227 = vmatpush1.msra.mxu0 0.0
    %3228 = vmatprep.subr.mxu0 0.0
    %3229 = vmatpush1.msra.mxu0 %v3175
    %3230 = vmatprep.subr.mxu0 0.0
    %3231 = vmatpush1.msra.mxu0 %v3174
    %3232 = vmatprep.subr.mxu0 0.0
    %3233 = vmatpush1.msra.mxu0 %v3173
    %3234 = vmatprep.subr.mxu0 0.0
    %3235 = vmatpush1.msra.mxu0 %v3172
    %3236 = vmatprep.subr.mxu0 0.0
    %3237 = vmatpush2.msra.mxu0 0.0
    %3238 = vmatprep.subr.mxu0 0.0
    %3239 = vmatpush2.msra.mxu0 0.0
    %3240 = vmatprep.subr.mxu0 0.0
    %3241 = vmatpush2.msra.mxu0 0.0
    %3242 = vmatprep.subr.mxu0 0.0
    %3243 = vmatpush2.msra.mxu0 0.0
    %3244 = vmatprep.subr.mxu0 0.0
    %3245 = vmatpush2.msra.mxu0 0.0
    %3246 = vmatprep.subr.mxu0 0.0
    %3247 = vmatpush2.msra.mxu0 0.0
    %3248 = vmatprep.subr.mxu0 0.0
    %3249 = vmatpush2.msra.mxu0 0.0
    %3250 = vmatprep.subr.mxu0 0.0
    %3251 = vmatpush2.msra.mxu0 0.0
    %3252 = vmatprep.subr.mxu0 0.0
    %3253 = vmatpush2.msra.mxu0 0.0
    %3254 = vmatprep.subr.mxu0 0.0
    %3255 = vmatpush2.msra.mxu0 0.0
    %3256 = vmatprep.subr.mxu0 0.0
    %3257 = vmatpush2.msra.mxu0 0.0
    %3258 = vmatprep.subr.mxu0 0.0
    %3259 = vmatpush2.msra.mxu0 0.0
    %3260 = vmatprep.subr.mxu0 0.0
    %3261 = vmatpush2.msra.mxu0 0.0
    %3262 = vmatprep.subr.mxu0 0.0
    %3263 = vmatpush2.msra.mxu0 0.0
    %3264 = vmatprep.subr.mxu0 0.0
    %3265 = vmatpush2.msra.mxu0 0.0
    %3266 = vmatprep.subr.mxu0 0.0
    %3267 = vmatpush2.msra.mxu0 0.0
    %3268 = vmatprep.mubr.f32.mxu0 0.0
    %3269 = vmatmul.mubr.f32.gmra.mxu0 %v3193
    %v3270 = vpop.f32.mrf.mxu0
    %v3271 = vadd.f32 0.0, %v3270
    %v3272 = vpop.f32.mrf.mxu0
    %3273 = vmatprep.mubr.f32.mxu0 0.0
    %3274 = vmatmul.mubr.f32.gmra.mxu0 %v3196
    %v3275 = vpop.f32.mrf.mxu0
    %v3276 = vadd.f32 0.0, %v3275
    %v3277 = vpop.f32.mrf.mxu0
    %3278 = vmatprep.mubr.f32.mxu0 0.0
    %3279 = vmatmul.mubr.f32.gmra.mxu0 %v3199
    %v3280 = vpop.f32.mrf.mxu0
    %v3281 = vadd.f32 0.0, %v3280
    %v3282 = vpop.f32.mrf.mxu0
    %3283 = vmatprep.mubr.f32.mxu0 0.0
    %3284 = vmatmul.mubr.f32.gmra.mxu0 %v3202
    %v3285 = vpop.f32.mrf.mxu0
    %v3286 = vadd.f32 0.0, %v3285
    %v3287 = vpop.f32.mrf.mxu0
    %3288 = vdwg.mxu0
    %v3289 = vadd.f32 %v3051, %v3271
    %v3290 = vadd.f32 %v3052, %v3276
    %v3291 = vadd.f32 %v3053, %v3281
    %v3292 = vadd.f32 %v3054, %v3286
    %3293 = vrot.lane.b32.xlu0 %v2552, 64
    %v3294 = vpop.permute.xlu0 %3293
    %3295 = vrot.lane.b32.xlu0 %v2553, 64
    %v3296 = vpop.permute.xlu0 %3295
    %3297 = vrot.lane.b32.xlu0 %v2554, 64
    %v3298 = vpop.permute.xlu0 %3297
    %3299 = vrot.lane.b32.xlu0 %v2555, 64
    %v3300 = vpop.permute.xlu0 %3299
    %3305 = vrot.lane.b32.xlu0 %v2559, 64
    %v3306 = vpop.permute.xlu0 %3305
    %v3309 = vsel %vm2066, %v3289, 0
    %v3312 = vsel %vm2066, %v3290, 0
    %v3315 = vsel %vm2066, %v3291, 0
    %v3318 = vsel %vm2066, %v3292, 0
    %3320 = vmatprep.subr.mxu0 0.0
    %3321 = vmatpush1.msra.mxu0 0.0
    %3322 = vmatprep.subr.mxu0 0.0
    %3323 = vmatpush1.msra.mxu0 0.0
    %3324 = vmatprep.subr.mxu0 0.0
    %3325 = vmatpush1.msra.mxu0 0.0
    %3326 = vmatprep.subr.mxu0 0.0
    %3327 = vmatpush1.msra.mxu0 0.0
    %3328 = vmatprep.subr.mxu0 0.0
    %3329 = vmatpush1.msra.mxu0 0.0
    %3330 = vmatprep.subr.mxu0 0.0
    %3331 = vmatpush1.msra.mxu0 0.0
    %3332 = vmatprep.subr.mxu0 0.0
    %3333 = vmatpush1.msra.mxu0 0.0
    %3334 = vmatprep.subr.mxu0 0.0
    %3335 = vmatpush1.msra.mxu0 0.0
    %3336 = vmatprep.subr.mxu0 0.0
    %3337 = vmatpush1.msra.mxu0 0.0
    %3338 = vmatprep.subr.mxu0 0.0
    %3339 = vmatpush1.msra.mxu0 0.0
    %3340 = vmatprep.subr.mxu0 0.0
    %3341 = vmatpush1.msra.mxu0 0.0
    %3342 = vmatprep.subr.mxu0 0.0
    %3343 = vmatpush1.msra.mxu0 0.0
    %3344 = vmatprep.subr.mxu0 0.0
    %3345 = vmatpush1.msra.mxu0 %v3300
    %3346 = vmatprep.subr.mxu0 0.0
    %3347 = vmatpush1.msra.mxu0 %v3298
    %3348 = vmatprep.subr.mxu0 0.0
    %3349 = vmatpush1.msra.mxu0 %v3296
    %3350 = vmatprep.subr.mxu0 0.0
    %3351 = vmatpush1.msra.mxu0 %v3294
    %3352 = vmatprep.subr.mxu0 0.0
    %3353 = vmatpush2.msra.mxu0 0.0
    %3354 = vmatprep.subr.mxu0 0.0
    %3355 = vmatpush2.msra.mxu0 0.0
    %3356 = vmatprep.subr.mxu0 0.0
    %3357 = vmatpush2.msra.mxu0 0.0
    %3358 = vmatprep.subr.mxu0 0.0
    %3359 = vmatpush2.msra.mxu0 0.0
    %3360 = vmatprep.subr.mxu0 0.0
    %3361 = vmatpush2.msra.mxu0 0.0
    %3362 = vmatprep.subr.mxu0 0.0
    %3363 = vmatpush2.msra.mxu0 0.0
    %3364 = vmatprep.subr.mxu0 0.0
    %3365 = vmatpush2.msra.mxu0 0.0
    %3366 = vmatprep.subr.mxu0 0.0
    %3367 = vmatpush2.msra.mxu0 0.0
    %3368 = vmatprep.subr.mxu0 0.0
    %3369 = vmatpush2.msra.mxu0 0.0
    %3370 = vmatprep.subr.mxu0 0.0
    %3371 = vmatpush2.msra.mxu0 0.0
    %3372 = vmatprep.subr.mxu0 0.0
    %3373 = vmatpush2.msra.mxu0 0.0
    %3374 = vmatprep.subr.mxu0 0.0
    %3375 = vmatpush2.msra.mxu0 0.0
    %3376 = vmatprep.subr.mxu0 0.0
    %3377 = vmatpush2.msra.mxu0 0.0
    %3378 = vmatprep.subr.mxu0 0.0
    %3379 = vmatpush2.msra.mxu0 0.0
    %3380 = vmatprep.subr.mxu0 0.0
    %3381 = vmatpush2.msra.mxu0 0.0
    %3382 = vmatprep.subr.mxu0 0.0
    %3383 = vmatpush2.msra.mxu0 0.0
    %3384 = vmatprep.mubr.f32.mxu0 0.0
    %3385 = vmatmul.mubr.f32.gmra.mxu0 %v3309
    %v3386 = vpop.f32.mrf.mxu0
    %v3387 = vadd.f32 %v3306, %v3386
    %v3388 = vpop.f32.mrf.mxu0
    %3389 = vmatprep.mubr.f32.mxu0 0.0
    %3390 = vmatmul.mubr.f32.gmra.mxu0 %v3312
    %v3391 = vpop.f32.mrf.mxu0
    %v3392 = vadd.f32 %v3306, %v3391
    %v3393 = vpop.f32.mrf.mxu0
    %3394 = vmatprep.mubr.f32.mxu0 0.0
    %3395 = vmatmul.mubr.f32.gmra.mxu0 %v3315
    %v3396 = vpop.f32.mrf.mxu0
    %v3397 = vadd.f32 %v3306, %v3396
    %v3398 = vpop.f32.mrf.mxu0
    %3399 = vmatprep.mubr.f32.mxu0 0.0
    %3400 = vmatmul.mubr.f32.gmra.mxu0 %v3318
    %v3401 = vpop.f32.mrf.mxu0
    %v3402 = vadd.f32 %v3306, %v3401
    %v3403 = vpop.f32.mrf.mxu0
    %3404 = vdwg.mxu0
    %v3405 = vtanh.pop %v3387
    %v3406 = vtanh.pop %v3392
    %v3407 = vtanh.pop %v3397
    %v3408 = vtanh.pop %v3402
    %v3409 = vsel %vm2066, %v3405, 0.0
    %3410 = vadd.xlane.f32.xlu0 %v3409
    %v3411 = vpop.xlane.xlu0 %3410
    %v3412 = vsel %vm2066, %v3406, 0.0
    %3413 = vadd.xlane.f32.xlu0 %v3412
    %v3414 = vpop.xlane.xlu0 %3413
    %v3415 = vsel %vm2066, %v3407, 0.0
    %3416 = vadd.xlane.f32.xlu0 %v3415
    %v3417 = vpop.xlane.xlu0 %3416
    %v3418 = vsel %vm2066, %v3408, 0.0
    %3419 = vadd.xlane.f32.xlu0 %v3418
    %v3420 = vpop.xlane.xlu0 %3419
    %v3421 = vmul.f32 %v3411, %v2286
    %v3422 = vmul.f32 %v3414, %v2286
    %v3423 = vmul.f32 %v3417, %v2286
    %v3424 = vmul.f32 %v3420, %v2286
    %v3425 = vsub.f32 %v3405, %v3421
    %v3426 = vsub.f32 %v3406, %v3422
    %v3427 = vsub.f32 %v3407, %v3423
    %v3428 = vsub.f32 %v3408, %v3424
    %v3429 = vmul.f32 %v3425, %v3425
    %v3430 = vmul.f32 %v3426, %v3426
    %v3431 = vmul.f32 %v3427, %v3427
    %v3432 = vmul.f32 %v3428, %v3428
    %v3433 = vsel %vm2066, %v3429, 0.0
    %3434 = vadd.xlane.f32.xlu0 %v3433
    %v3435 = vpop.xlane.xlu0 %3434
    %v3436 = vsel %vm2066, %v3430, 0.0
    %3437 = vadd.xlane.f32.xlu0 %v3436
    %v3438 = vpop.xlane.xlu0 %3437
    %v3439 = vsel %vm2066, %v3431, 0.0
    %3440 = vadd.xlane.f32.xlu0 %v3439
    %v3441 = vpop.xlane.xlu0 %3440
    %v3442 = vsel %vm2066, %v3432, 0.0
    %3443 = vadd.xlane.f32.xlu0 %v3442
    %v3444 = vpop.xlane.xlu0 %3443
    %v3445 = vmul.f32 %v3435, %v2286
    %v3446 = vmul.f32 %v3438, %v2286
    %v3447 = vmul.f32 %v3441, %v2286
    %v3448 = vmul.f32 %v3444, %v2286
    %v3449 = vadd.f32 %v3445, 1e-05
    %v3450 = vadd.f32 %v3446, 1e-05
    %v3451 = vadd.f32 %v3447, 1e-05
    %v3452 = vadd.f32 %v3448, 1e-05
    %v3453 = vrsqrt.pop %v3449
    %v3454 = vrsqrt.pop %v3450
    %v3455 = vrsqrt.pop %v3451
    %v3456 = vrsqrt.pop %v3452
    %v3457 = vmul.f32 %v3425, %v3453
    %v3458 = vmul.f32 %v3426, %v3454
    %v3459 = vmul.f32 %v3427, %v3455
    %v3460 = vmul.f32 %v3428, %v3456
    %3461 = vrot.lane.b32.xlu0 %v2716, 64
    %v3462 = vpop.permute.xlu0 %3461
    %v3464 = vmul.f32 %v3457, %v3462
    %v3465 = vmul.f32 %v3458, %v3462
    %v3466 = vmul.f32 %v3459, %v3462
    %v3467 = vmul.f32 %v3460, %v3462
    %3468 = vrot.lane.b32.xlu0 %v2724, 64
    %v3469 = vpop.permute.xlu0 %3468
    %v3471 = vadd.f32 %v3464, %v3469
    %v3472 = vadd.f32 %v3465, %v3469
    %v3473 = vadd.f32 %v3466, %v3469
    %v3474 = vadd.f32 %v3467, %v3469
    %3475 = vrot.lane.b32.xlu0 %v2054, 80
    %v3476 = vpop.permute.xlu0 %3475
    %3477 = vrot.lane.b32.xlu0 %v2055, 80
    %v3478 = vpop.permute.xlu0 %3477
    %v3481 = vsel %vm2168, %v3476, 0.0
    %v3482 = vsel %vm2168, %v3478, 0.0
    %3483 = vrot.lane.b32.xlu0 %v2056, 96
    %v3484 = vpop.permute.xlu0 %3483
    %3485 = vrot.lane.b32.xlu0 %v2057, 96
    %v3486 = vpop.permute.xlu0 %3485
    %v3489 = vsel %vm2168, 0.0, %v3484
    %v3490 = vsel %vm2168, 0.0, %v3486
    %3495 = vrot.lane.b32.xlu0 %v3172, 96
    %v3496 = vpop.permute.xlu0 %3495
    %3497 = vrot.lane.b32.xlu0 %v3173, 96
    %v3498 = vpop.permute.xlu0 %3497
    %3499 = vrot.lane.b32.xlu0 %v3174, 96
    %v3500 = vpop.permute.xlu0 %3499
    %3501 = vrot.lane.b32.xlu0 %v3175, 96
    %v3502 = vpop.permute.xlu0 %3501
    %v3508 = vsel %vm2066, %v3481, 0
    %v3511 = vsel %vm2066, %v3482, 0
    %v3514 = vsel %vm2066, %v3489, 0
    %v3517 = vsel %vm2066, %v3490, 0
    %3519 = vmatprep.subr.mxu0 0.0
    %3520 = vmatpush1.msra.mxu0 0.0
    %3521 = vmatprep.subr.mxu0 0.0
    %3522 = vmatpush1.msra.mxu0 0.0
    %3523 = vmatprep.subr.mxu0 0.0
    %3524 = vmatpush1.msra.mxu0 0.0
    %3525 = vmatprep.subr.mxu0 0.0
    %3526 = vmatpush1.msra.mxu0 0.0
    %3527 = vmatprep.subr.mxu0 0.0
    %3528 = vmatpush1.msra.mxu0 0.0
    %3529 = vmatprep.subr.mxu0 0.0
    %3530 = vmatpush1.msra.mxu0 0.0
    %3531 = vmatprep.subr.mxu0 0.0
    %3532 = vmatpush1.msra.mxu0 0.0
    %3533 = vmatprep.subr.mxu0 0.0
    %3534 = vmatpush1.msra.mxu0 0.0
    %3535 = vmatprep.subr.mxu0 0.0
    %3536 = vmatpush1.msra.mxu0 0.0
    %3537 = vmatprep.subr.mxu0 0.0
    %3538 = vmatpush1.msra.mxu0 0.0
    %3539 = vmatprep.subr.mxu0 0.0
    %3540 = vmatpush1.msra.mxu0 0.0
    %3541 = vmatprep.subr.mxu0 0.0
    %3542 = vmatpush1.msra.mxu0 0.0
    %3543 = vmatprep.subr.mxu0 0.0
    %3544 = vmatpush1.msra.mxu0 %v3502
    %3545 = vmatprep.subr.mxu0 0.0
    %3546 = vmatpush1.msra.mxu0 %v3500
    %3547 = vmatprep.subr.mxu0 0.0
    %3548 = vmatpush1.msra.mxu0 %v3498
    %3549 = vmatprep.subr.mxu0 0.0
    %3550 = vmatpush1.msra.mxu0 %v3496
    %3551 = vmatprep.subr.mxu0 0.0
    %3552 = vmatpush2.msra.mxu0 0.0
    %3553 = vmatprep.subr.mxu0 0.0
    %3554 = vmatpush2.msra.mxu0 0.0
    %3555 = vmatprep.subr.mxu0 0.0
    %3556 = vmatpush2.msra.mxu0 0.0
    %3557 = vmatprep.subr.mxu0 0.0
    %3558 = vmatpush2.msra.mxu0 0.0
    %3559 = vmatprep.subr.mxu0 0.0
    %3560 = vmatpush2.msra.mxu0 0.0
    %3561 = vmatprep.subr.mxu0 0.0
    %3562 = vmatpush2.msra.mxu0 0.0
    %3563 = vmatprep.subr.mxu0 0.0
    %3564 = vmatpush2.msra.mxu0 0.0
    %3565 = vmatprep.subr.mxu0 0.0
    %3566 = vmatpush2.msra.mxu0 0.0
    %3567 = vmatprep.subr.mxu0 0.0
    %3568 = vmatpush2.msra.mxu0 0.0
    %3569 = vmatprep.subr.mxu0 0.0
    %3570 = vmatpush2.msra.mxu0 0.0
    %3571 = vmatprep.subr.mxu0 0.0
    %3572 = vmatpush2.msra.mxu0 0.0
    %3573 = vmatprep.subr.mxu0 0.0
    %3574 = vmatpush2.msra.mxu0 0.0
    %3575 = vmatprep.subr.mxu0 0.0
    %3576 = vmatpush2.msra.mxu0 0.0
    %3577 = vmatprep.subr.mxu0 0.0
    %3578 = vmatpush2.msra.mxu0 0.0
    %3579 = vmatprep.subr.mxu0 0.0
    %3580 = vmatpush2.msra.mxu0 0.0
    %3581 = vmatprep.subr.mxu0 0.0
    %3582 = vmatpush2.msra.mxu0 0.0
    %3583 = vmatprep.mubr.f32.mxu0 0.0
    %3584 = vmatmul.mubr.f32.gmra.mxu0 %v3508
    %v3585 = vpop.f32.mrf.mxu0
    %v3586 = vadd.f32 0.0, %v3585
    %v3587 = vpop.f32.mrf.mxu0
    %3588 = vmatprep.mubr.f32.mxu0 0.0
    %3589 = vmatmul.mubr.f32.gmra.mxu0 %v3511
    %v3590 = vpop.f32.mrf.mxu0
    %v3591 = vadd.f32 0.0, %v3590
    %v3592 = vpop.f32.mrf.mxu0
    %3593 = vmatprep.mubr.f32.mxu0 0.0
    %3594 = vmatmul.mubr.f32.gmra.mxu0 %v3514
    %v3595 = vpop.f32.mrf.mxu0
    %v3596 = vadd.f32 0.0, %v3595
    %v3597 = vpop.f32.mrf.mxu0
    %3598 = vmatprep.mubr.f32.mxu0 0.0
    %3599 = vmatmul.mubr.f32.gmra.mxu0 %v3517
    %v3600 = vpop.f32.mrf.mxu0
    %v3601 = vadd.f32 0.0, %v3600
    %v3602 = vpop.f32.mrf.mxu0
    %3603 = vdwg.mxu0
    %v3604 = vadd.f32 %v3051, %v3586
    %v3605 = vadd.f32 %v3052, %v3591
    %v3606 = vadd.f32 %v3053, %v3596
    %v3607 = vadd.f32 %v3054, %v3601
    %3608 = vrot.lane.b32.xlu0 %v2552, 32
    %v3609 = vpop.permute.xlu0 %3608
    %3610 = vrot.lane.b32.xlu0 %v2553, 32
    %v3611 = vpop.permute.xlu0 %3610
    %3612 = vrot.lane.b32.xlu0 %v2554, 32
    %v3613 = vpop.permute.xlu0 %3612
    %3614 = vrot.lane.b32.xlu0 %v2555, 32
    %v3615 = vpop.permute.xlu0 %3614
    %3620 = vrot.lane.b32.xlu0 %v2559, 32
    %v3621 = vpop.permute.xlu0 %3620
    %v3624 = vsel %vm2066, %v3604, 0
    %v3627 = vsel %vm2066, %v3605, 0
    %v3630 = vsel %vm2066, %v3606, 0
    %v3633 = vsel %vm2066, %v3607, 0
    %3635 = vmatprep.subr.mxu0 0.0
    %3636 = vmatpush1.msra.mxu0 0.0
    %3637 = vmatprep.subr.mxu0 0.0
    %3638 = vmatpush1.msra.mxu0 0.0
    %3639 = vmatprep.subr.mxu0 0.0
    %3640 = vmatpush1.msra.mxu0 0.0
    %3641 = vmatprep.subr.mxu0 0.0
    %3642 = vmatpush1.msra.mxu0 0.0
    %3643 = vmatprep.subr.mxu0 0.0
    %3644 = vmatpush1.msra.mxu0 0.0
    %3645 = vmatprep.subr.mxu0 0.0
    %3646 = vmatpush1.msra.mxu0 0.0
    %3647 = vmatprep.subr.mxu0 0.0
    %3648 = vmatpush1.msra.mxu0 0.0
    %3649 = vmatprep.subr.mxu0 0.0
    %3650 = vmatpush1.msra.mxu0 0.0
    %3651 = vmatprep.subr.mxu0 0.0
    %3652 = vmatpush1.msra.mxu0 0.0
    %3653 = vmatprep.subr.mxu0 0.0
    %3654 = vmatpush1.msra.mxu0 0.0
    %3655 = vmatprep.subr.mxu0 0.0
    %3656 = vmatpush1.msra.mxu0 0.0
    %3657 = vmatprep.subr.mxu0 0.0
    %3658 = vmatpush1.msra.mxu0 0.0
    %3659 = vmatprep.subr.mxu0 0.0
    %3660 = vmatpush1.msra.mxu0 %v3615
    %3661 = vmatprep.subr.mxu0 0.0
    %3662 = vmatpush1.msra.mxu0 %v3613
    %3663 = vmatprep.subr.mxu0 0.0
    %3664 = vmatpush1.msra.mxu0 %v3611
    %3665 = vmatprep.subr.mxu0 0.0
    %3666 = vmatpush1.msra.mxu0 %v3609
    %3667 = vmatprep.subr.mxu0 0.0
    %3668 = vmatpush2.msra.mxu0 0.0
    %3669 = vmatprep.subr.mxu0 0.0
    %3670 = vmatpush2.msra.mxu0 0.0
    %3671 = vmatprep.subr.mxu0 0.0
    %3672 = vmatpush2.msra.mxu0 0.0
    %3673 = vmatprep.subr.mxu0 0.0
    %3674 = vmatpush2.msra.mxu0 0.0
    %3675 = vmatprep.subr.mxu0 0.0
    %3676 = vmatpush2.msra.mxu0 0.0
    %3677 = vmatprep.subr.mxu0 0.0
    %3678 = vmatpush2.msra.mxu0 0.0
    %3679 = vmatprep.subr.mxu0 0.0
    %3680 = vmatpush2.msra.mxu0 0.0
    %3681 = vmatprep.subr.mxu0 0.0
    %3682 = vmatpush2.msra.mxu0 0.0
    %3683 = vmatprep.subr.mxu0 0.0
    %3684 = vmatpush2.msra.mxu0 0.0
    %3685 = vmatprep.subr.mxu0 0.0
    %3686 = vmatpush2.msra.mxu0 0.0
    %3687 = vmatprep.subr.mxu0 0.0
    %3688 = vmatpush2.msra.mxu0 0.0
    %3689 = vmatprep.subr.mxu0 0.0
    %3690 = vmatpush2.msra.mxu0 0.0
    %3691 = vmatprep.subr.mxu0 0.0
    %3692 = vmatpush2.msra.mxu0 0.0
    %3693 = vmatprep.subr.mxu0 0.0
    %3694 = vmatpush2.msra.mxu0 0.0
    %3695 = vmatprep.subr.mxu0 0.0
    %3696 = vmatpush2.msra.mxu0 0.0
    %3697 = vmatprep.subr.mxu0 0.0
    %3698 = vmatpush2.msra.mxu0 0.0
    %3699 = vmatprep.mubr.f32.mxu0 0.0
    %3700 = vmatmul.mubr.f32.gmra.mxu0 %v3624
    %v3701 = vpop.f32.mrf.mxu0
    %v3702 = vadd.f32 %v3621, %v3701
    %v3703 = vpop.f32.mrf.mxu0
    %3704 = vmatprep.mubr.f32.mxu0 0.0
    %3705 = vmatmul.mubr.f32.gmra.mxu0 %v3627
    %v3706 = vpop.f32.mrf.mxu0
    %v3707 = vadd.f32 %v3621, %v3706
    %v3708 = vpop.f32.mrf.mxu0
    %3709 = vmatprep.mubr.f32.mxu0 0.0
    %3710 = vmatmul.mubr.f32.gmra.mxu0 %v3630
    %v3711 = vpop.f32.mrf.mxu0
    %v3712 = vadd.f32 %v3621, %v3711
    %v3713 = vpop.f32.mrf.mxu0
    %3714 = vmatprep.mubr.f32.mxu0 0.0
    %3715 = vmatmul.mubr.f32.gmra.mxu0 %v3633
    %v3716 = vpop.f32.mrf.mxu0
    %v3717 = vadd.f32 %v3621, %v3716
    %v3718 = vpop.f32.mrf.mxu0
    %3719 = vdwg.mxu0
    %v3720 = vtanh.pop %v3702
    %v3721 = vtanh.pop %v3707
    %v3722 = vtanh.pop %v3712
    %v3723 = vtanh.pop %v3717
    %v3724 = vsel %vm2066, %v3720, 0.0
    %3725 = vadd.xlane.f32.xlu0 %v3724
    %v3726 = vpop.xlane.xlu0 %3725
    %v3727 = vsel %vm2066, %v3721, 0.0
    %3728 = vadd.xlane.f32.xlu0 %v3727
    %v3729 = vpop.xlane.xlu0 %3728
    %v3730 = vsel %vm2066, %v3722, 0.0
    %3731 = vadd.xlane.f32.xlu0 %v3730
    %v3732 = vpop.xlane.xlu0 %3731
    %v3733 = vsel %vm2066, %v3723, 0.0
    %3734 = vadd.xlane.f32.xlu0 %v3733
    %v3735 = vpop.xlane.xlu0 %3734
    %v3736 = vmul.f32 %v3726, %v2286
    %v3737 = vmul.f32 %v3729, %v2286
    %v3738 = vmul.f32 %v3732, %v2286
    %v3739 = vmul.f32 %v3735, %v2286
    %v3740 = vsub.f32 %v3720, %v3736
    %v3741 = vsub.f32 %v3721, %v3737
    %v3742 = vsub.f32 %v3722, %v3738
    %v3743 = vsub.f32 %v3723, %v3739
    %v3744 = vmul.f32 %v3740, %v3740
    %v3745 = vmul.f32 %v3741, %v3741
    %v3746 = vmul.f32 %v3742, %v3742
    %v3747 = vmul.f32 %v3743, %v3743
    %v3748 = vsel %vm2066, %v3744, 0.0
    %3749 = vadd.xlane.f32.xlu0 %v3748
    %v3750 = vpop.xlane.xlu0 %3749
    %v3751 = vsel %vm2066, %v3745, 0.0
    %3752 = vadd.xlane.f32.xlu0 %v3751
    %v3753 = vpop.xlane.xlu0 %3752
    %v3754 = vsel %vm2066, %v3746, 0.0
    %3755 = vadd.xlane.f32.xlu0 %v3754
    %v3756 = vpop.xlane.xlu0 %3755
    %v3757 = vsel %vm2066, %v3747, 0.0
    %3758 = vadd.xlane.f32.xlu0 %v3757
    %v3759 = vpop.xlane.xlu0 %3758
    %v3760 = vmul.f32 %v3750, %v2286
    %v3761 = vmul.f32 %v3753, %v2286
    %v3762 = vmul.f32 %v3756, %v2286
    %v3763 = vmul.f32 %v3759, %v2286
    %v3764 = vadd.f32 %v3760, 1e-05
    %v3765 = vadd.f32 %v3761, 1e-05
    %v3766 = vadd.f32 %v3762, 1e-05
    %v3767 = vadd.f32 %v3763, 1e-05
    %v3768 = vrsqrt.pop %v3764
    %v3769 = vrsqrt.pop %v3765
    %v3770 = vrsqrt.pop %v3766
    %v3771 = vrsqrt.pop %v3767
    %v3772 = vmul.f32 %v3740, %v3768
    %v3773 = vmul.f32 %v3741, %v3769
    %v3774 = vmul.f32 %v3742, %v3770
    %v3775 = vmul.f32 %v3743, %v3771
    %3776 = vrot.lane.b32.xlu0 %v2716, 32
    %v3777 = vpop.permute.xlu0 %3776
    %v3779 = vmul.f32 %v3772, %v3777
    %v3780 = vmul.f32 %v3773, %v3777
    %v3781 = vmul.f32 %v3774, %v3777
    %v3782 = vmul.f32 %v3775, %v3777
    %3783 = vrot.lane.b32.xlu0 %v2724, 32
    %v3784 = vpop.permute.xlu0 %3783
    %v3786 = vadd.f32 %v3779, %v3784
    %v3787 = vadd.f32 %v3780, %v3784
    %v3788 = vadd.f32 %v3781, %v3784
    %v3789 = vadd.f32 %v3782, %v3784
    %v3790 = vadd.f32 %v3471, %v3786
    %v3791 = vadd.f32 %v3472, %v3787
    %v3792 = vadd.f32 %v3473, %v3788
    %v3793 = vadd.f32 %v3474, %v3789
    %v3794 = vadd.f32 %v3790, %v126
    %v3795 = vadd.f32 %v3791, %v127
    %v3796 = vadd.f32 %v3792, %v128
    %v3797 = vadd.f32 %v3793, %v129
    %3798 = vst.msk [vmem:[#allocation14] sm:$0xff] %vm2066, %v3794
    %3799 = vst.msk [vmem:[#allocation14 + $0x8] sm:$0xff] %vm2066, %v3795
    %3800 = vst.msk [vmem:[#allocation14 + $0x10] sm:$0xff] %vm2066, %v3796
    %3801 = vst.msk [vmem:[#allocation14 + $0x18] sm:$0xff] %vm2066, %v3797
    // Predicated region
    $region66: #{neighbor_attn_stage.1} parent=1 // pred_check
      _
    $region67: #{neighbor_attn_stage.1} parent=1 // pred_check_branch
      %3803 = sbr.rel (0) target = $region69
    $region68: #{neighbor_attn_stage.1} parent=1 // pred_region
      %s3805 = ssub.s32 512, 512
      %3806 = vsyncadd [#allocation4], %s3805
      %s3807 = sshll.u32 [#allocation14], 4
      %s3808 = int_to_ptr.vmem [resolvable:$true] %s3807
      %3813 = dma.vmem_to_hbm [thread:$0]  %s3808, 512, %s9, [#allocation4], 128, 128, 8
    $region69: #{neighbor_attn_stage.1} parent=1 // pred_fallthru
      _
    // Predicated region
    $region70: #{neighbor_attn_stage.1} parent=1 // pred_check
      _
    $region71: #{neighbor_attn_stage.1} parent=1 // pred_check_branch
      %3815 = sbr.rel (0) target = $region73
    $region72: #{neighbor_attn_stage.1} parent=1 // pred_region
      %3816 = dma.done [#allocation4], 512
    $region73: #{neighbor_attn_stage.1} parent=1 // pred_fallthru
      _
    %3817 = vsyncpa [#allocation3], 1
    %3818 = vsyncpa [#allocation6], 1
    %3819 = vsyncpa [#allocation9], 1
    %3820 = vsyncpa [#allocation12], 1
    %3821 = vsyncpa [#allocation4], 1

</llo_original>
